<compile_context>
chip_gen: v5e
topology: v5e:2x2
jax: 0.10.0
libtpu: 0.0.40
codegen_flags: <defaults>
</compile_context>

<pallas_src>
import jax
import jax.numpy as jnp
from jax.experimental import pallas as pl
from jax.experimental.pallas import tpu as pltpu

_INV_SQRT2 = 0.7071067811865476


def _round_up(a, b):
    return (a + b - 1) // b * b


def _vmem_budget_bytes():
    """~3/4 of physical VMEM, clamped to [32 MiB, 100 MiB] (48 MiB fallback)."""
    try:
        info = pltpu.get_tpu_info()
        cap = int(getattr(info, "vmem_capacity_bytes", 64 * 1024 * 1024))
    except Exception:
        cap = 64 * 1024 * 1024
    return max(32 * 1024 * 1024, min(cap * 3 // 4, 100 * 1024 * 1024))


# ---------------------------------------------------------------------------
# Pass 1: depthwise 3x3 conv ('same' padding, halo in-kernel) + per-image stats
# ---------------------------------------------------------------------------
def dwconv_stats_kernel(x_ref, wdw_ref, bdw_ref, conv_ref, sum_ref, sq_ref):
    _, H, W, C = x_ref.shape
    x = x_ref[0]                                            # (H, W, C) f32

    # Build the three W-shifted streams ONCE (dx = -1, 0, +1); zeros supply the
    # left/right halo, so no padded HBM input is needed.
    # TODO(synk): the dx=+-1 shifts could instead use pltpu.roll (XLU slot) +
    # lane masks; slice/concat kept here for guaranteed lowering.
    zcol = jnp.zeros((H, 1, C), jnp.float32)
    x_m = jnp.concatenate([zcol, x[:, :W - 1, :]], axis=1)  # x[:, w-1]
    x_p = jnp.concatenate([x[:, 1:, :], zcol], axis=1)      # x[:, w+1]
    shifted = (x_m, x, x_p)

    w = wdw_ref[...]                                        # (9, C), row-major (ky, kx)

    def rowsum(ky):
        return (shifted[0] * w[ky * 3 + 0, :] +
                shifted[1] * w[ky * 3 + 1, :] +
                shifted[2] * w[ky * 3 + 2, :])

    top = rowsum(0)     # contributes x[h-1, ...]
    mid = rowsum(1)     # contributes x[h,   ...]
    bot = rowsum(2)     # contributes x[h+1, ...]

    # Align the ky = 0 / 2 partial sums with two leading-dim concats (top/bottom
    # halo rows are zero).
    zrow = jnp.zeros((1, W, C), jnp.float32)
    acc = (mid
           + jnp.concatenate([zrow, top[:H - 1]], axis=0)
           + jnp.concatenate([bot[1:], zrow], axis=0)
           + bdw_ref[0, :])

    # TODO(synk): for large H*W*C, process in ~8-16 row strips (inner loop or an
    # H grid axis) so the accumulator stays in vregs and both TCs get work.
    conv_ref[0] = acc

    # Per-image partial sums so BatchNorm's global batch statistics survive tiling.
    sum_ref[0] = jnp.sum(jnp.sum(acc, axis=0), axis=0, keepdims=True)        # (1, C)
    sq_ref[0] = jnp.sum(jnp.sum(acc * acc, axis=0), axis=0, keepdims=True)   # (1, C)


# ---------------------------------------------------------------------------
# Pass 2: (BN folded into w1/b1) pwconv1 -> exact GELU -> pwconv2 (layer_scale
#          folded into w2/b2) -> + residual.  Weights VMEM-resident.
# ---------------------------------------------------------------------------
def pointwise_kernel(conv_ref, res_ref, w1_ref, b1_ref, w2_ref, b2_ref, out_ref):
    y = conv_ref[...].astype(w1_ref.dtype)                  # bf16 opt-in via weight dtype
    h = jnp.dot(y, w1_ref[...], preferred_element_type=jnp.float32) + b1_ref[0, :]
    h = 0.5 * h * (1.0 + jax.lax.erf(h * _INV_SQRT2))       # exact GELU (f32)
    h = h.astype(w2_ref.dtype)
    o = jnp.dot(h, w2_ref[...], preferred_element_type=jnp.float32) + b2_ref[0, :]

    res = res_ref[...]
    pad = out_ref.shape[-1] - res.shape[-1]                 # lane-pad residual in VMEM
    if pad:
        res = jnp.pad(res, ((0, 0), (0, pad)))
    out_ref[...] = res + o


def conv_encoder(x_nchw, params, eps=1e-5, row_tile=512, use_bf16_matmul=False):
    """x_nchw: (B, C, H, W) float32 -> (B, C, H, W) float32."""
    B, C, H, W = x_nchw.shape
    hidden = params["w1"].shape[1]

    x = jnp.transpose(x_nchw, (0, 2, 3, 1)).astype(jnp.float32)            # NHWC

    vmem_cap = _vmem_budget_bytes()

    # ----------------- pass 1: depthwise conv + partial stats -----------------
    dw_flops = (2 * 9 + 4) * B * H * W * C
    dw_bytes = 4 * (2 * B * H * W * C + 2 * B * C + 10 * C)
    conv, ssum, ssq = pl.pallas_call(
        dwconv_stats_kernel,
        out_shape=(jax.ShapeDtypeStruct((B, H, W, C), jnp.float32),
                   jax.ShapeDtypeStruct((B, 1, C), jnp.float32),
                   jax.ShapeDtypeStruct((B, 1, C), jnp.float32)),
        grid=(B,),
        in_specs=[pl.BlockSpec((1, H, W, C), lambda b: (b, 0, 0, 0)),
                  pl.BlockSpec((9, C), lambda b: (0, 0)),
                  pl.BlockSpec((1, C), lambda b: (0, 0))],
        out_specs=(pl.BlockSpec((1, H, W, C), lambda b: (b, 0, 0, 0)),
                   pl.BlockSpec((1, 1, C), lambda b: (b, 0, 0)),
                   pl.BlockSpec((1, 1, C), lambda b: (b, 0, 0))),
        compiler_params=pltpu.CompilerParams(
            dimension_semantics=("parallel",),
            vmem_limit_bytes=vmem_cap),
        cost_estimate=pl.CostEstimate(flops=dw_flops, transcendentals=0,
                                      bytes_accessed=dw_bytes),
    )(x, params["dw_w"].reshape(9, C), params["dw_b"].reshape(1, C))

    # ------- BatchNorm training-forward stats folded to a channel affine -------
    # NOTE: E[x^2] - E[x]^2 in f32 is adequate here (dwconv outputs are
    # small/centered); a centered two-pass reduction would be safer for huge n.
    n = B * H * W
    tot = jnp.sum(ssum[:, 0, :], axis=0)                 # (C,)
    tot_sq = jnp.sum(ssq[:, 0, :], axis=0)               # (C,)
    mean = tot / n
    var = jnp.maximum(tot_sq / n - mean * mean, 0.0)
    scale = params["bn_gamma"] * jax.lax.rsqrt(var + eps)
    shift = params["bn_beta"] - mean * scale

    # ----- fold BN affine into w1/b1 and layer_scale into w2/b2 (one-time) -----
    ls = params["layer_scale"]
    w1_eff = scale[:, None] * params["w1"]               # (C, hidden)
    b1_eff = params["b1"] + shift @ params["w1"]         # (hidden,)
    w2_eff = params["w2"] * ls[None, :]                  # (hidden, C)
    b2_eff = params["b2"] * ls                           # (C,)

    # Pad hidden / output channels to a lane-dense multiple of 128 (zero rows /
    # cols are exact: GELU(0)=0 and zero rows of w2 contribute nothing).
    Cp = _round_up(C, 128)
    Hh = _round_up(hidden, 128)
    w1_eff = jnp.pad(w1_eff, ((0, 0), (0, Hh - hidden)))
    b1_eff = jnp.pad(b1_eff, ((0, Hh - hidden),)).reshape(1, Hh)
    w2_eff = jnp.pad(w2_eff, ((0, Hh - hidden), (0, Cp - C)))
    b2_eff = jnp.pad(b2_eff, ((0, Cp - C),)).reshape(1, Cp)
    if use_bf16_matmul:                                  # opt-in: bf16 MXU operands,
        w1_eff = w1_eff.astype(jnp.bfloat16)             # f32 accumulation
        w2_eff = w2_eff.astype(jnp.bfloat16)

    # ------------- pass 2: tiled, pipelined pointwise/matmul stream -------------
    conv_flat = conv.reshape(n, C)                       # free row-major collapse
    res_flat = x.reshape(n, C)
    tile = n if n <= row_tile else row_tile              # MXU-friendly row tile
    grid2 = pl.cdiv(n, tile)                             # ragged tail masked by Pallas

    pw_flops = 2 * n * C * Hh + 2 * n * Hh * Cp
    pw_bytes = 4 * (2 * n * C + n * Cp + C * Hh + Hh * Cp + Hh + Cp)
    out_flat = pl.pallas_call(
        pointwise_kernel,
        out_shape=jax.ShapeDtypeStruct((n, Cp), jnp.float32),
        grid=(grid2,),
        in_specs=[pl.BlockSpec((tile, C), lambda i: (i, 0)),        # dwconv stream
                  pl.BlockSpec((tile, C), lambda i: (i, 0)),        # residual stream
                  pl.BlockSpec((C, Hh), lambda i: (0, 0)),          # w1 (resident)
                  pl.BlockSpec((1, Hh), lambda i: (0, 0)),          # b1
                  pl.BlockSpec((Hh, Cp), lambda i: (0, 0)),         # w2 (resident)
                  pl.BlockSpec((1, Cp), lambda i: (0, 0))],         # b2
        out_specs=pl.BlockSpec((tile, Cp), lambda i: (i, 0)),       # lane-dense stores
        compiler_params=pltpu.CompilerParams(
            dimension_semantics=("parallel",),
            vmem_limit_bytes=vmem_cap),
        cost_estimate=pl.CostEstimate(flops=pw_flops,
                                      transcendentals=n * Hh,
                                      bytes_accessed=pw_bytes),
    )(conv_flat, res_flat, w1_eff, b1_eff, w2_eff, b2_eff)

    out = out_flat[:, :C].reshape(B, H, W, C)            # drop channel padding
    return jnp.transpose(out, (0, 3, 1, 2))              # back to NCHW


def init_params(key, dim, hidden_dim):
    """Deterministic init mirroring the module shapes (trunc_normal std=0.02, zero bias)."""
    k = jax.random.split(key, 3)

    def trunc(kk, shape, std=0.02):
        return std * jax.random.truncated_normal(kk, -2.0, 2.0, shape, jnp.float32)

    return dict(
        dw_w=trunc(k[0], (3, 3, dim)),               # torch dwconv.weight (dim,1,3,3) permuted
        dw_b=jnp.zeros((dim,), jnp.float32),
        bn_gamma=jnp.ones((dim,), jnp.float32),      # BatchNorm2d weight
        bn_beta=jnp.zeros((dim,), jnp.float32),      # BatchNorm2d bias
        w1=trunc(k[1], (dim, hidden_dim)),           # torch pwconv1.weight (hidden,dim,1,1)^T
        b1=jnp.zeros((hidden_dim,), jnp.float32),
        w2=trunc(k[2], (hidden_dim, dim)),           # torch pwconv2.weight (dim,hidden,1,1)^T
        b2=jnp.zeros((dim,), jnp.float32),
        layer_scale=jnp.ones((dim,), jnp.float32),   # ones(dim,1,1)
    )


if __name__ == "__main__":
    dim, hidden_dim = 4, 32
    B, H, W = 2, 16, 16

    key = jax.random.PRNGKey(0)
    kx, kp = jax.random.split(key)
    x = jax.random.normal(kx, (B, dim, H, W), jnp.float32)
    params = init_params(kp, dim, hidden_dim)

    out = jax.jit(conv_encoder)(x, params)
    out = jax.block_until_ready(out)

    assert out.shape == (B, dim, H, W), out.shape
    assert bool(jnp.all(jnp.isfinite(out)))
    print("KERNEL_OK")
</pallas_src>

<mosaic_0001>
module attributes {stable_mosaic.version = 11 : i64} {
  func.func @dwconv_stats_kernel(%arg0: i32, %arg1: memref<1x16x16x4xf32, #tpu.memory_space<vmem>>, %arg2: memref<9x4xf32, #tpu.memory_space<vmem>>, %arg3: memref<1x4xf32, #tpu.memory_space<vmem>>, %arg4: memref<1x16x16x4xf32, #tpu.memory_space<vmem>>, %arg5: memref<1x1x4xf32, #tpu.memory_space<vmem>>, %arg6: memref<1x1x4xf32, #tpu.memory_space<vmem>>) attributes {dimension_semantics = [#tpu.dimension_semantics<parallel>], iteration_bounds = array<i64: 2>, scalar_prefetch = 0 : i64, scratch_operands = 0 : i64, tpu.core_type = #tpu.core_type<tc>, window_params = [{transform_indices = @transform_0, window_bounds = array<i64: 1, 16, 16, 4>}, {pipeline_mode = #tpu.pipeline_mode<synchronous>, transform_indices = @transform_1, window_bounds = array<i64: 9, 4>}, {pipeline_mode = #tpu.pipeline_mode<synchronous>, transform_indices = @transform_2, window_bounds = array<i64: 1, 4>}, {transform_indices = @transform_3, window_bounds = array<i64: 1, 16, 16, 4>}, {transform_indices = @transform_4, window_bounds = array<i64: 1, 1, 4>}, {transform_indices = @transform_5, window_bounds = array<i64: 1, 1, 4>}]} {
    %c0 = arith.constant 0 : index
    %c0_0 = arith.constant 0 : index
    %c0_1 = arith.constant 0 : index
    %c0_2 = arith.constant 0 : index
    %0 = vector.load %arg1[%c0, %c0_0, %c0_1, %c0_2] : memref<1x16x16x4xf32, #tpu.memory_space<vmem>>, vector<1x16x16x4xf32>
    %1 = vector.shape_cast %0 : vector<1x16x16x4xf32> to vector<16x16x4xf32>
    %cst = arith.constant 0.000000e+00 : f32
    %2 = vector.broadcast %cst : f32 to vector<16x1x4xf32>
    %3 = vector.extract_strided_slice %1 {offsets = [0, 0, 0], sizes = [16, 15, 4], strides = [1, 1, 1]} : vector<16x16x4xf32> to vector<16x15x4xf32>
    %4 = tpu.concatenate %2, %3 in 1 : vector<16x1x4xf32>, vector<16x15x4xf32> -> vector<16x16x4xf32>
    %5 = vector.extract_strided_slice %1 {offsets = [0, 1, 0], sizes = [16, 15, 4], strides = [1, 1, 1]} : vector<16x16x4xf32> to vector<16x15x4xf32>
    %6 = tpu.concatenate %5, %2 in 1 : vector<16x15x4xf32>, vector<16x1x4xf32> -> vector<16x16x4xf32>
    %c0_3 = arith.constant 0 : index
    %c0_4 = arith.constant 0 : index
    %7 = vector.load %arg2[%c0_3, %c0_4] : memref<9x4xf32, #tpu.memory_space<vmem>>, vector<9x4xf32>
    %8 = vector.extract_strided_slice %7 {offsets = [0, 0], sizes = [1, 4], strides = [1, 1]} : vector<9x4xf32> to vector<1x4xf32>
    %9 = vector.shape_cast %8 : vector<1x4xf32> to vector<4xf32>
    %10 = vector.shape_cast %9 : vector<4xf32> to vector<1x1x4xf32>
    %11 = vector.broadcast %10 : vector<1x1x4xf32> to vector<16x16x4xf32>
    %12 = arith.mulf %4, %11 : vector<16x16x4xf32>
    %13 = vector.extract_strided_slice %7 {offsets = [1, 0], sizes = [1, 4], strides = [1, 1]} : vector<9x4xf32> to vector<1x4xf32>
    %14 = vector.shape_cast %13 : vector<1x4xf32> to vector<4xf32>
    %15 = vector.shape_cast %14 : vector<4xf32> to vector<1x1x4xf32>
    %16 = vector.broadcast %15 : vector<1x1x4xf32> to vector<16x16x4xf32>
    %17 = arith.mulf %1, %16 : vector<16x16x4xf32>
    %18 = arith.addf %12, %17 : vector<16x16x4xf32>
    %19 = vector.extract_strided_slice %7 {offsets = [2, 0], sizes = [1, 4], strides = [1, 1]} : vector<9x4xf32> to vector<1x4xf32>
    %20 = vector.shape_cast %19 : vector<1x4xf32> to vector<4xf32>
    %21 = vector.shape_cast %20 : vector<4xf32> to vector<1x1x4xf32>
    %22 = vector.broadcast %21 : vector<1x1x4xf32> to vector<16x16x4xf32>
    %23 = arith.mulf %6, %22 : vector<16x16x4xf32>
    %24 = arith.addf %18, %23 : vector<16x16x4xf32>
    %25 = vector.extract_strided_slice %7 {offsets = [3, 0], sizes = [1, 4], strides = [1, 1]} : vector<9x4xf32> to vector<1x4xf32>
    %26 = vector.shape_cast %25 : vector<1x4xf32> to vector<4xf32>
    %27 = vector.shape_cast %26 : vector<4xf32> to vector<1x1x4xf32>
    %28 = vector.broadcast %27 : vector<1x1x4xf32> to vector<16x16x4xf32>
    %29 = arith.mulf %4, %28 : vector<16x16x4xf32>
    %30 = vector.extract_strided_slice %7 {offsets = [4, 0], sizes = [1, 4], strides = [1, 1]} : vector<9x4xf32> to vector<1x4xf32>
    %31 = vector.shape_cast %30 : vector<1x4xf32> to vector<4xf32>
    %32 = vector.shape_cast %31 : vector<4xf32> to vector<1x1x4xf32>
    %33 = vector.broadcast %32 : vector<1x1x4xf32> to vector<16x16x4xf32>
    %34 = arith.mulf %1, %33 : vector<16x16x4xf32>
    %35 = arith.addf %29, %34 : vector<16x16x4xf32>
    %36 = vector.extract_strided_slice %7 {offsets = [5, 0], sizes = [1, 4], strides = [1, 1]} : vector<9x4xf32> to vector<1x4xf32>
    %37 = vector.shape_cast %36 : vector<1x4xf32> to vector<4xf32>
    %38 = vector.shape_cast %37 : vector<4xf32> to vector<1x1x4xf32>
    %39 = vector.broadcast %38 : vector<1x1x4xf32> to vector<16x16x4xf32>
    %40 = arith.mulf %6, %39 : vector<16x16x4xf32>
    %41 = arith.addf %35, %40 : vector<16x16x4xf32>
    %42 = vector.extract_strided_slice %7 {offsets = [6, 0], sizes = [1, 4], strides = [1, 1]} : vector<9x4xf32> to vector<1x4xf32>
    %43 = vector.shape_cast %42 : vector<1x4xf32> to vector<4xf32>
    %44 = vector.shape_cast %43 : vector<4xf32> to vector<1x1x4xf32>
    %45 = vector.broadcast %44 : vector<1x1x4xf32> to vector<16x16x4xf32>
    %46 = arith.mulf %4, %45 : vector<16x16x4xf32>
    %47 = vector.extract_strided_slice %7 {offsets = [7, 0], sizes = [1, 4], strides = [1, 1]} : vector<9x4xf32> to vector<1x4xf32>
    %48 = vector.shape_cast %47 : vector<1x4xf32> to vector<4xf32>
    %49 = vector.shape_cast %48 : vector<4xf32> to vector<1x1x4xf32>
    %50 = vector.broadcast %49 : vector<1x1x4xf32> to vector<16x16x4xf32>
    %51 = arith.mulf %1, %50 : vector<16x16x4xf32>
    %52 = arith.addf %46, %51 : vector<16x16x4xf32>
    %53 = vector.extract_strided_slice %7 {offsets = [8, 0], sizes = [1, 4], strides = [1, 1]} : vector<9x4xf32> to vector<1x4xf32>
    %54 = vector.shape_cast %53 : vector<1x4xf32> to vector<4xf32>
    %55 = vector.shape_cast %54 : vector<4xf32> to vector<1x1x4xf32>
    %56 = vector.broadcast %55 : vector<1x1x4xf32> to vector<16x16x4xf32>
    %57 = arith.mulf %6, %56 : vector<16x16x4xf32>
    %58 = arith.addf %52, %57 : vector<16x16x4xf32>
    %cst_5 = arith.constant 0.000000e+00 : f32
    %59 = vector.broadcast %cst_5 : f32 to vector<1x16x4xf32>
    %60 = vector.extract_strided_slice %24 {offsets = [0, 0, 0], sizes = [15, 16, 4], strides = [1, 1, 1]} : vector<16x16x4xf32> to vector<15x16x4xf32>
    %61 = tpu.concatenate %59, %60 in 0 : vector<1x16x4xf32>, vector<15x16x4xf32> -> vector<16x16x4xf32>
    %62 = arith.addf %41, %61 : vector<16x16x4xf32>
    %63 = vector.extract_strided_slice %58 {offsets = [1, 0, 0], sizes = [15, 16, 4], strides = [1, 1, 1]} : vector<16x16x4xf32> to vector<15x16x4xf32>
    %64 = tpu.concatenate %63, %59 in 0 : vector<15x16x4xf32>, vector<1x16x4xf32> -> vector<16x16x4xf32>
    %65 = arith.addf %62, %64 : vector<16x16x4xf32>
    %c0_6 = arith.constant 0 : index
    %c0_7 = arith.constant 0 : index
    %66 = vector.load %arg3[%c0_6, %c0_7] : memref<1x4xf32, #tpu.memory_space<vmem>>, vector<1x4xf32>
    %67 = vector.shape_cast %66 : vector<1x4xf32> to vector<4xf32>
    %68 = vector.shape_cast %67 : vector<4xf32> to vector<1x1x4xf32>
    %69 = vector.broadcast %68 : vector<1x1x4xf32> to vector<16x16x4xf32>
    %70 = arith.addf %65, %69 : vector<16x16x4xf32>
    %c0_8 = arith.constant 0 : index
    %c0_9 = arith.constant 0 : index
    %c0_10 = arith.constant 0 : index
    %c0_11 = arith.constant 0 : index
    %71 = vector.load %arg4[%c0_8, %c0_9, %c0_10, %c0_11] : memref<1x16x16x4xf32, #tpu.memory_space<vmem>>, vector<1x16x16x4xf32>
    %72 = vector.shape_cast %71 : vector<1x16x16x4xf32> to vector<16x16x4xf32>
    %73 = vector.shape_cast %70 : vector<16x16x4xf32> to vector<1x16x16x4xf32>
    tpu.vector_store %arg4[%c0_8, %c0_9, %c0_10, %c0_11], %73 {strides = array<i32>} : memref<1x16x16x4xf32, #tpu.memory_space<vmem>>, vector<1x16x16x4xf32>,
    %cst_12 = arith.constant dense<0.000000e+00> : vector<16x4xf32>
    %74 = vector.multi_reduction <add>, %70, %cst_12 [0] : vector<16x16x4xf32> to vector<16x4xf32>
    %cst_13 = arith.constant dense<0.000000e+00> : vector<4xf32>
    %75 = vector.multi_reduction <add>, %74, %cst_13 [0] : vector<16x4xf32> to vector<4xf32>
    %76 = vector.shape_cast %75 : vector<4xf32> to vector<1x4xf32>
    %c0_14 = arith.constant 0 : index
    %c0_15 = arith.constant 0 : index
    %c0_16 = arith.constant 0 : index
    %77 = vector.load %arg5[%c0_14, %c0_15, %c0_16] : memref<1x1x4xf32, #tpu.memory_space<vmem>>, vector<1x1x4xf32>
    %78 = vector.shape_cast %77 : vector<1x1x4xf32> to vector<1x4xf32>
    %79 = vector.shape_cast %76 : vector<1x4xf32> to vector<1x1x4xf32>
    tpu.vector_store %arg5[%c0_14, %c0_15, %c0_16], %79 {strides = array<i32>} : memref<1x1x4xf32, #tpu.memory_space<vmem>>, vector<1x1x4xf32>,
    %80 = arith.mulf %70, %70 : vector<16x16x4xf32>
    %cst_17 = arith.constant dense<0.000000e+00> : vector<16x4xf32>
    %81 = vector.multi_reduction <add>, %80, %cst_17 [0] : vector<16x16x4xf32> to vector<16x4xf32>
    %cst_18 = arith.constant dense<0.000000e+00> : vector<4xf32>
    %82 = vector.multi_reduction <add>, %81, %cst_18 [0] : vector<16x4xf32> to vector<4xf32>
    %83 = vector.shape_cast %82 : vector<4xf32> to vector<1x4xf32>
    %c0_19 = arith.constant 0 : index
    %c0_20 = arith.constant 0 : index
    %c0_21 = arith.constant 0 : index
    %84 = vector.load %arg6[%c0_19, %c0_20, %c0_21] : memref<1x1x4xf32, #tpu.memory_space<vmem>>, vector<1x1x4xf32>
    %85 = vector.shape_cast %84 : vector<1x1x4xf32> to vector<1x4xf32>
    %86 = vector.shape_cast %83 : vector<1x4xf32> to vector<1x1x4xf32>
    tpu.vector_store %arg6[%c0_19, %c0_20, %c0_21], %86 {strides = array<i32>} : memref<1x1x4xf32, #tpu.memory_space<vmem>>, vector<1x1x4xf32>,
    return
  }
  func.func @transform_0(%arg0: i32) -> (i32, i32, i32, i32) {
    %c0_i32 = arith.constant 0 : i32
    %c0_i32_0 = arith.constant 0 : i32
    %c0_i32_1 = arith.constant 0 : i32
    %c0_i32_2 = arith.constant 0 : i32
    return %arg0, %c0_i32, %c0_i32_0, %c0_i32_1 : i32, i32, i32, i32
  }
  func.func @transform_1(%arg0: i32) -> (i32, i32) {
    %c0_i32 = arith.constant 0 : i32
    %c0_i32_0 = arith.constant 0 : i32
    %c0_i32_1 = arith.constant 0 : i32
    return %c0_i32, %c0_i32_0 : i32, i32
  }
  func.func @transform_2(%arg0: i32) -> (i32, i32) {
    %c0_i32 = arith.constant 0 : i32
    %c0_i32_0 = arith.constant 0 : i32
    %c0_i32_1 = arith.constant 0 : i32
    return %c0_i32, %c0_i32_0 : i32, i32
  }
  func.func @transform_3(%arg0: i32) -> (i32, i32, i32, i32) {
    %c0_i32 = arith.constant 0 : i32
    %c0_i32_0 = arith.constant 0 : i32
    %c0_i32_1 = arith.constant 0 : i32
    %c0_i32_2 = arith.constant 0 : i32
    return %arg0, %c0_i32, %c0_i32_0, %c0_i32_1 : i32, i32, i32, i32
  }
  func.func @transform_4(%arg0: i32) -> (i32, i32, i32) {
    %c0_i32 = arith.constant 0 : i32
    %c0_i32_0 = arith.constant 0 : i32
    %c0_i32_1 = arith.constant 0 : i32
    return %arg0, %c0_i32, %c0_i32_0 : i32, i32, i32
  }
  func.func @transform_5(%arg0: i32) -> (i32, i32, i32) {
    %c0_i32 = arith.constant 0 : i32
    %c0_i32_0 = arith.constant 0 : i32
    %c0_i32_1 = arith.constant 0 : i32
    return %arg0, %c0_i32, %c0_i32_0 : i32, i32, i32
  }
}

module attributes {stable_mosaic.version = 11 : i64} {
  func.func @pointwise_kernel(%arg0: i32, %arg1: memref<512x4xf32, #tpu.memory_space<vmem>>, %arg2: memref<512x4xf32, #tpu.memory_space<vmem>>, %arg3: memref<4x128xf32, #tpu.memory_space<vmem>>, %arg4: memref<1x128xf32, #tpu.memory_space<vmem>>, %arg5: memref<128x128xf32, #tpu.memory_space<vmem>>, %arg6: memref<1x128xf32, #tpu.memory_space<vmem>>, %arg7: memref<512x128xf32, #tpu.memory_space<vmem>>) attributes {dimension_semantics = [#tpu.dimension_semantics<parallel>], iteration_bounds = array<i64: 1>, scalar_prefetch = 0 : i64, scratch_operands = 0 : i64, tpu.core_type = #tpu.core_type<tc>, window_params = [{transform_indices = @transform_0, window_bounds = array<i64: 512, 4>}, {transform_indices = @transform_1, window_bounds = array<i64: 512, 4>}, {pipeline_mode = #tpu.pipeline_mode<synchronous>, transform_indices = @transform_2, window_bounds = array<i64: 4, 128>}, {pipeline_mode = #tpu.pipeline_mode<synchronous>, transform_indices = @transform_3, window_bounds = array<i64: 1, 128>}, {pipeline_mode = #tpu.pipeline_mode<synchronous>, transform_indices = @transform_4, window_bounds = array<i64: 128, 128>}, {pipeline_mode = #tpu.pipeline_mode<synchronous>, transform_indices = @transform_5, window_bounds = array<i64: 1, 128>}, {transform_indices = @transform_6, window_bounds = array<i64: 512, 128>}]} {
    %c0 = arith.constant 0 : index
    %c0_0 = arith.constant 0 : index
    %0 = vector.load %arg1[%c0, %c0_0] : memref<512x4xf32, #tpu.memory_space<vmem>>, vector<512x4xf32>
    %c0_1 = arith.constant 0 : index
    %c0_2 = arith.constant 0 : index
    %1 = vector.load %arg3[%c0_1, %c0_2] : memref<4x128xf32, #tpu.memory_space<vmem>>, vector<4x128xf32>
    %cst = arith.constant dense<0.000000e+00> : vector<512x128xf32>
    %2 = tpu.matmul %0, %1, %cst {dimension_numbers = #tpu.dot_dimension_numbers<[1], [0], [0], [1], [0, 0, 1, 1], [], []>} : vector<512x4xf32>, vector<4x128xf32>, vector<512x128xf32> -> vector<512x128xf32>
    %c0_3 = arith.constant 0 : index
    %c0_4 = arith.constant 0 : index
    %3 = vector.load %arg4[%c0_3, %c0_4] : memref<1x128xf32, #tpu.memory_space<vmem>>, vector<1x128xf32>
    %4 = vector.shape_cast %3 : vector<1x128xf32> to vector<128xf32>
    %5 = vector.shape_cast %4 : vector<128xf32> to vector<1x128xf32>
    %6 = vector.broadcast %5 : vector<1x128xf32> to vector<512x128xf32>
    %7 = arith.addf %2, %6 : vector<512x128xf32>
    %cst_5 = arith.constant 5.000000e-01 : f32
    %8 = vector.broadcast %cst_5 : f32 to vector<512x128xf32>
    %9 = arith.mulf %8, %7 : vector<512x128xf32>
    %cst_6 = arith.constant 0.707106769 : f32
    %10 = vector.broadcast %cst_6 : f32 to vector<512x128xf32>
    %11 = arith.mulf %7, %10 : vector<512x128xf32>
    %12 = math.erf %11 : vector<512x128xf32>
    %cst_7 = arith.constant 1.000000e+00 : f32
    %13 = vector.broadcast %cst_7 : f32 to vector<512x128xf32>
    %14 = arith.addf %13, %12 : vector<512x128xf32>
    %15 = arith.mulf %9, %14 : vector<512x128xf32>
    %c0_8 = arith.constant 0 : index
    %c0_9 = arith.constant 0 : index
    %16 = vector.load %arg5[%c0_8, %c0_9] : memref<128x128xf32, #tpu.memory_space<vmem>>, vector<128x128xf32>
    %cst_10 = arith.constant dense<0.000000e+00> : vector<512x128xf32>
    %17 = tpu.matmul %15, %16, %cst_10 {dimension_numbers = #tpu.dot_dimension_numbers<[1], [0], [0], [1], [0, 0, 1, 1], [], []>} : vector<512x128xf32>, vector<128x128xf32>, vector<512x128xf32> -> vector<512x128xf32>
    %c0_11 = arith.constant 0 : index
    %c0_12 = arith.constant 0 : index
    %18 = vector.load %arg6[%c0_11, %c0_12] : memref<1x128xf32, #tpu.memory_space<vmem>>, vector<1x128xf32>
    %19 = vector.shape_cast %18 : vector<1x128xf32> to vector<128xf32>
    %20 = vector.shape_cast %19 : vector<128xf32> to vector<1x128xf32>
    %21 = vector.broadcast %20 : vector<1x128xf32> to vector<512x128xf32>
    %22 = arith.addf %17, %21 : vector<512x128xf32>
    %c0_13 = arith.constant 0 : index
    %c0_14 = arith.constant 0 : index
    %23 = vector.load %arg2[%c0_13, %c0_14] : memref<512x4xf32, #tpu.memory_space<vmem>>, vector<512x4xf32>
    %c0_i32 = arith.constant 0 : i32
    %24 = arith.sitofp %c0_i32 : i32 to f32
    %25 = vector.broadcast %24 : f32 to vector<512x124xf32>
    %26 = tpu.concatenate %23, %25 in 1 : vector<512x4xf32>, vector<512x124xf32> -> vector<512x128xf32>
    %27 = arith.addf %26, %22 : vector<512x128xf32>
    %c0_15 = arith.constant 0 : index
    %c0_16 = arith.constant 0 : index
    %28 = vector.load %arg7[%c0_15, %c0_16] : memref<512x128xf32, #tpu.memory_space<vmem>>, vector<512x128xf32>
    tpu.vector_store %arg7[%c0_15, %c0_16], %27 {strides = array<i32>} : memref<512x128xf32, #tpu.memory_space<vmem>>, vector<512x128xf32>,
    return
  }
  func.func @transform_0(%arg0: i32) -> (i32, i32) {
    %c0_i32 = arith.constant 0 : i32
    %c0_i32_0 = arith.constant 0 : i32
    return %arg0, %c0_i32 : i32, i32
  }
  func.func @transform_1(%arg0: i32) -> (i32, i32) {
    %c0_i32 = arith.constant 0 : i32
    %c0_i32_0 = arith.constant 0 : i32
    return %arg0, %c0_i32 : i32, i32
  }
  func.func @transform_2(%arg0: i32) -> (i32, i32) {
    %c0_i32 = arith.constant 0 : i32
    %c0_i32_0 = arith.constant 0 : i32
    %c0_i32_1 = arith.constant 0 : i32
    return %c0_i32, %c0_i32_0 : i32, i32
  }
  func.func @transform_3(%arg0: i32) -> (i32, i32) {
    %c0_i32 = arith.constant 0 : i32
    %c0_i32_0 = arith.constant 0 : i32
    %c0_i32_1 = arith.constant 0 : i32
    return %c0_i32, %c0_i32_0 : i32, i32
  }
  func.func @transform_4(%arg0: i32) -> (i32, i32) {
    %c0_i32 = arith.constant 0 : i32
    %c0_i32_0 = arith.constant 0 : i32
    %c0_i32_1 = arith.constant 0 : i32
    return %c0_i32, %c0_i32_0 : i32, i32
  }
  func.func @transform_5(%arg0: i32) -> (i32, i32) {
    %c0_i32 = arith.constant 0 : i32
    %c0_i32_0 = arith.constant 0 : i32
    %c0_i32_1 = arith.constant 0 : i32
    return %c0_i32, %c0_i32_0 : i32, i32
  }
  func.func @transform_6(%arg0: i32) -> (i32, i32) {
    %c0_i32 = arith.constant 0 : i32
    %c0_i32_0 = arith.constant 0 : i32
    return %arg0, %c0_i32 : i32, i32
  }
}

</mosaic_0001>

<llo_original>
// kernel: mul.23
$region0: #{mul.23}
  #allocation0 [shape = 's32[1]{0}', space=sflag, size = 0x4, scoped, tag = 'scoped memory for mul.23']
  %s0 = inlined_call_operand.vmem [shape: f32[4], index: 0, kind: input, shape index: {}]
  %s1 = inlined_call_operand.vmem [shape: f32[4], index: 1, kind: input, shape index: {}]
  %s2 = inlined_call_operand.vmem [shape: f32[4], index: 2, kind: output, shape index: {}]
  %v3 = vld [vmem:[%s0] sm:$0x1]
  %v4 = vld [vmem:[%s1] sm:$0x1]
  %5 = xla_tuple %v3, %v4
  %6 = xla_tuple %5
  %v7 = vmul.f32 %v3, %v4
  %8 = xla_tuple %v7
  %9 = vst [vmem:[%s2] sm:$0x1] %v7

// kernel: conv_encoder.2
$region0: #{conv_encoder.2}
  #allocation0 [shape = 'u32[]', space=smem, size = 0x4, offset = 0x4, fixed_abs, tag = 'smem constant byte address 0x4 - core index']
  #allocation1 [shape = 'u32[72,128]{1,0:T(1,128)}', space=vmem, size = 0x9000, scoped, tag = 'internal scratch']
  %s0 = inlined_call_operand.vmem [shape: f32[2,16,16,4], index: 0, kind: input, shape index: {}]
  %s1 = inlined_call_operand.vmem [shape: f32[9,4], index: 1, kind: input, shape index: {}]
  %s2 = inlined_call_operand.vmem [shape: f32[1,4], index: 2, kind: input, shape index: {}]
  %s3 = inlined_call_operand.vmem [shape: f32[2,16,16,4], index: 3, kind: output, shape index: {0}]
  %s4 = inlined_call_operand.vmem [shape: f32[2,1,4], index: 4, kind: output, shape index: {1}]
  %s5 = inlined_call_operand.vmem [shape: f32[2,1,4], index: 5, kind: output, shape index: {2}]
  %6 = xla_tuple %s3, %s4, %s5
  %s7 = sld [smem:[#allocation0]]
  $region61: #{conv_encoder.2} parent=0
    _
  %s9 = ssub.s32 1, %s7
  %s10 = scalar_select 0, %s9, %s7
  loop: start=0, step=1, limit=4
  $region2: #{conv_encoder.2} parent=0 // loop_pre_header
    _
  $region3: #{conv_encoder.2} parent=0 // loop_header
    %s12 = sphi 0, %s16
    %p13 = scmp.ge.s32.totalorder %s12, 4
    %s22 = sphi 0, %s24
    %s25 = sphi 0, %s22
    %s26 = sphi 0, %s25
    %s42 = sphi 0, %s26
    %s46 = sphi 0, %s46
    %s48 = sphi 0, %s46
    %s49 = sphi 0, %s48
    %s63 = sphi 0, %s49
    %s67 = sphi 0, %s67
    %s69 = sphi 0, %s67
    %s70 = sphi 0, %s69
    %s84 = sphi 0, %s70
    %s90 = sphi 0, %s92
    %s93 = sphi 0, %s90
    %s94 = sphi 0, %s93
    %s110 = sphi 0, %s94
    %s116 = sphi 0, %s118
    %s119 = sphi 0, %s116
    %s120 = sphi 0, %s119
    %s136 = sphi 0, %s120
    %s142 = sphi 0, %s144
    %s145 = sphi 0, %s142
    %s146 = sphi 0, %s145
    %s162 = sphi 0, %s146
  $region4: #{conv_encoder.2} parent=0 // loop_header_branch
    %15 = sbr.rel (%p13) target = $region8
  $region5: #{conv_encoder.2} parent=0 // loop_body
    %s17 = ssub.s32 %s12, 1
    %s18 = ssub.s32 %s12, 2
    %s19 = sadd.s32 %s12, 1
    %s20 = ssub.s32 %s12, %s19
    %p21 = scmp.eq.s32.totalorder %s20, 0
    %s23 = sadd.s32 %s22, 1
    %s24 = scalar_select %p21, %s22, %s23
    %p27 = pneg %p21
    %p28 = scmp.eq.s32.totalorder %s12, 1
    %p29 = por %p27, %p28
    %p30 = scmp.ne.s32.totalorder %s22, %s25
    %p31 = scmp.eq.s32.totalorder %s12, 0
    %p32 = por %p30, %p31
    %p33 = scmp.ne.s32.totalorder %s22, %s25
    %p34 = scmp.eq.s32.totalorder %s17, 1
    %p35 = por %p33, %p34
    %p36 = scmp.ne.s32.totalorder %s25, %s26
    %p37 = scmp.eq.s32.totalorder %s17, 0
    %p38 = por %p36, %p37
    %p39 = scmp.ne.s32.totalorder %s25, %s26
    %p40 = scmp.eq.s32.totalorder %s18, 1
    %p41 = por %p39, %p40
    %p43 = scmp.ne.s32.totalorder %s26, %s42
    %p44 = scmp.eq.s32.totalorder %s18, 0
    %p45 = por %p43, %p44
    %s47 = sadd.s32 %s46, 1
    %p50 = scmp.eq.s32.totalorder %s12, 1
    %p51 = scmp.ne.s32.totalorder %s46, %s48
    %p52 = scmp.eq.s32.totalorder %s12, 0
    %p53 = por %p51, %p52
    %p54 = scmp.ne.s32.totalorder %s46, %s48
    %p55 = scmp.eq.s32.totalorder %s17, 1
    %p56 = por %p54, %p55
    %p57 = scmp.ne.s32.totalorder %s48, %s49
    %p58 = scmp.eq.s32.totalorder %s17, 0
    %p59 = por %p57, %p58
    %p60 = scmp.ne.s32.totalorder %s48, %s49
    %p61 = scmp.eq.s32.totalorder %s18, 1
    %p62 = por %p60, %p61
    %p64 = scmp.ne.s32.totalorder %s49, %s63
    %p65 = scmp.eq.s32.totalorder %s18, 0
    %p66 = por %p64, %p65
    %s68 = sadd.s32 %s67, 1
    %p71 = scmp.eq.s32.totalorder %s12, 1
    %p72 = scmp.ne.s32.totalorder %s67, %s69
    %p73 = scmp.eq.s32.totalorder %s12, 0
    %p74 = por %p72, %p73
    %p75 = scmp.ne.s32.totalorder %s67, %s69
    %p76 = scmp.eq.s32.totalorder %s17, 1
    %p77 = por %p75, %p76
    %p78 = scmp.ne.s32.totalorder %s69, %s70
    %p79 = scmp.eq.s32.totalorder %s17, 0
    %p80 = por %p78, %p79
    %p81 = scmp.ne.s32.totalorder %s69, %s70
    %p82 = scmp.eq.s32.totalorder %s18, 1
    %p83 = por %p81, %p82
    %p85 = scmp.ne.s32.totalorder %s70, %s84
    %p86 = scmp.eq.s32.totalorder %s18, 0
    %p87 = por %p85, %p86
    %s88 = ssub.s32 %s12, %s19
    %p89 = scmp.eq.s32.totalorder %s88, 0
    %s91 = sadd.s32 %s90, 1
    %s92 = scalar_select %p89, %s90, %s91
    %p95 = pneg %p89
    %p96 = scmp.eq.s32.totalorder %s12, 1
    %p97 = por %p95, %p96
    %p98 = scmp.ne.s32.totalorder %s90, %s93
    %p99 = scmp.eq.s32.totalorder %s12, 0
    %p100 = por %p98, %p99
    %p101 = scmp.ne.s32.totalorder %s90, %s93
    %p102 = scmp.eq.s32.totalorder %s17, 1
    %p103 = por %p101, %p102
    %p104 = scmp.ne.s32.totalorder %s93, %s94
    %p105 = scmp.eq.s32.totalorder %s17, 0
    %p106 = por %p104, %p105
    %p107 = scmp.ne.s32.totalorder %s93, %s94
    %p108 = scmp.eq.s32.totalorder %s18, 1
    %p109 = por %p107, %p108
    %p111 = scmp.ne.s32.totalorder %s94, %s110
    %p112 = scmp.eq.s32.totalorder %s18, 0
    %p113 = por %p111, %p112
    %s114 = ssub.s32 %s12, %s19
    %p115 = scmp.eq.s32.totalorder %s114, 0
    %s117 = sadd.s32 %s116, 1
    %s118 = scalar_select %p115, %s116, %s117
    %p121 = pneg %p115
    %p122 = scmp.eq.s32.totalorder %s12, 1
    %p123 = por %p121, %p122
    %p124 = scmp.ne.s32.totalorder %s116, %s119
    %p125 = scmp.eq.s32.totalorder %s12, 0
    %p126 = por %p124, %p125
    %p127 = scmp.ne.s32.totalorder %s116, %s119
    %p128 = scmp.eq.s32.totalorder %s17, 1
    %p129 = por %p127, %p128
    %p130 = scmp.ne.s32.totalorder %s119, %s120
    %p131 = scmp.eq.s32.totalorder %s17, 0
    %p132 = por %p130, %p131
    %p133 = scmp.ne.s32.totalorder %s119, %s120
    %p134 = scmp.eq.s32.totalorder %s18, 1
    %p135 = por %p133, %p134
    %p137 = scmp.ne.s32.totalorder %s120, %s136
    %p138 = scmp.eq.s32.totalorder %s18, 0
    %p139 = por %p137, %p138
    %s140 = ssub.s32 %s12, %s19
    %p141 = scmp.eq.s32.totalorder %s140, 0
    %s143 = sadd.s32 %s142, 1
    %s144 = scalar_select %p141, %s142, %s143
    %p147 = pneg %p141
    %p148 = scmp.eq.s32.totalorder %s12, 1
    %p149 = por %p147, %p148
    %p150 = scmp.ne.s32.totalorder %s142, %s145
    %p151 = scmp.eq.s32.totalorder %s12, 0
    %p152 = por %p150, %p151
    %p153 = scmp.ne.s32.totalorder %s142, %s145
    %p154 = scmp.eq.s32.totalorder %s17, 1
    %p155 = por %p153, %p154
    %p156 = scmp.ne.s32.totalorder %s145, %s146
    %p157 = scmp.eq.s32.totalorder %s17, 0
    %p158 = por %p156, %p157
    %p159 = scmp.ne.s32.totalorder %s145, %s146
    %p160 = scmp.eq.s32.totalorder %s18, 1
    %p161 = por %p159, %p160
    %p163 = scmp.ne.s32.totalorder %s146, %s162
    %p164 = scmp.eq.s32.totalorder %s18, 0
    %p165 = por %p163, %p164
    %p166 = scmp.le.s32.totalorder 1, %s12
    %p167 = scmp.lt.s32.totalorder %s12, 3
    %p168 = pnand %p166, %p167
    %p169 = pneg %p168
    // Predicated region
    $region9: #{conv_encoder.2} parent=5 // pred_check
      _
    $region10: #{conv_encoder.2} parent=5 // pred_check_branch
      %171 = sbr.rel (%p168) target = $region12
    $region11: #{conv_encoder.2} parent=5 // pred_region
      %s172 = ssub.s32 %s12, 1
      // Predicated region
      $region13: #{conv_encoder.2} parent=11 // pred_check
        %p173 = pneg %p59
      $region14: #{conv_encoder.2} parent=11 // pred_check_branch
        %175 = sbr.rel (%p173) target = $region16
      $region15: #{conv_encoder.2} parent=11 // pred_region
        _
      $region16: #{conv_encoder.2} parent=11 // pred_fallthru
        _
      // Predicated region
      $region17: #{conv_encoder.2} parent=11 // pred_check
        %p176 = pneg %p80
      $region18: #{conv_encoder.2} parent=11 // pred_check_branch
        %178 = sbr.rel (%p176) target = $region20
      $region19: #{conv_encoder.2} parent=11 // pred_region
        _
      $region20: #{conv_encoder.2} parent=11 // pred_fallthru
        _
    $region12: #{conv_encoder.2} parent=5 // pred_fallthru
      _
    %p179 = scmp.lt.s32.totalorder %s12, 2
    // Predicated region
    $region21: #{conv_encoder.2} parent=5 // pred_check
      %p180 = pneg %p179
    $region22: #{conv_encoder.2} parent=5 // pred_check_branch
      %182 = sbr.rel (%p180) target = $region24
    $region23: #{conv_encoder.2} parent=5 // pred_region
      // Predicated region
      $region25: #{conv_encoder.2} parent=23 // pred_check
        %p183 = pneg %p32
      $region26: #{conv_encoder.2} parent=23 // pred_check_branch
        %185 = sbr.rel (%p183) target = $region28
      $region27: #{conv_encoder.2} parent=23 // pred_region
        %p186 = scmp.lt.s32.totalorder %s12, 1
        %s187 = scalar_select %p186, %s12, 1
        %s188 = smul.addr %s187, 32
        %s189 = smul.addr %s188, 8
        %s190 = scalar_lea.vmem %s0, %s189
      $region28: #{conv_encoder.2} parent=23 // pred_fallthru
        _
    $region24: #{conv_encoder.2} parent=5 // pred_fallthru
      _
    %p191 = scmp.le.s32.totalorder 1, %s12
    %p192 = scmp.lt.s32.totalorder %s12, 3
    %p193 = pnand %p191, %p192
    %p194 = pneg %p193
    // Predicated region
    $region29: #{conv_encoder.2} parent=5 // pred_check
      _
    $region30: #{conv_encoder.2} parent=5 // pred_check_branch
      %196 = sbr.rel (%p193) target = $region32
    $region31: #{conv_encoder.2} parent=5 // pred_region
      %s197 = ssub.s32 %s12, 1
      %p198 = scmp.lt.s32.totalorder %s17, 1
      %s199 = scalar_select %p198, %s17, 1
      %s200 = smul.addr %s199, 32
      %s201 = smul.addr %s200, 8
      %s202 = scalar_lea.vmem %s0, %s201
      %p203 = pneg %p38
      %p204 = pneg %p35
      %p205 = pneg %p59
      %p206 = pneg %p56
      %p207 = pneg %p80
      %p208 = pneg %p77
      %p209 = pneg %p106
      %p210 = pneg %p103
      %p211 = scmp.lt.s32.totalorder %s17, 1
      %s212 = scalar_select %p211, %s17, 1
      %s213 = smul.addr %s212, 32
      %s214 = smul.addr %s213, 8
      %s215 = scalar_lea.vmem %s3, %s214
      %p216 = pneg %p132
      %p217 = pneg %p129
      %p218 = scmp.lt.s32.totalorder %s17, 1
      %s219 = scalar_select %p218, %s17, 1
      %s220 = scalar_lea.vmem %s4, %s219
      %p221 = pneg %p158
      %p222 = pneg %p155
      %p223 = scmp.lt.s32.totalorder %s17, 1
      %s224 = scalar_select %p223, %s17, 1
      %s225 = scalar_lea.vmem %s5, %s224
      %p226 = scmp.lt.s32.totalorder %s17, 1
      %s227 = scalar_select %p226, %s17, 1
      %s228 = smul.addr %s227, 32
      %s229 = smul.addr %s228, 8
      %s230 = scalar_lea.vmem %s0, %s229
      %p231 = scmp.lt.s32.totalorder %s17, 1
      %s232 = scalar_select %p231, %s17, 1
      %s233 = smul.addr %s232, 32
      %s234 = smul.addr %s233, 8
      %s235 = scalar_lea.vmem %s3, %s234
      %p236 = scmp.lt.s32.totalorder %s17, 1
      %s237 = scalar_select %p236, %s17, 1
      %s238 = scalar_lea.vmem %s4, %s237
      %p239 = scmp.lt.s32.totalorder %s17, 1
      %s240 = scalar_select %p239, %s17, 1
      %s241 = scalar_lea.vmem %s5, %s240
      %v242 = vld [vmem:[%s230] sm:$0xff]
      %v243 = vld [vmem:[%s230 + $0x8] sm:$0xff]
      %v244 = vld [vmem:[%s230 + $0x10] sm:$0xff]
      %v245 = vld [vmem:[%s230 + $0x18] sm:$0xff]
      %v246 = vld [vmem:[%s230 + $0x20] sm:$0xff]
      %v247 = vld [vmem:[%s230 + $0x28] sm:$0xff]
      %v248 = vld [vmem:[%s230 + $0x30] sm:$0xff]
      %v249 = vld [vmem:[%s230 + $0x38] sm:$0xff]
      %v250 = vld [vmem:[%s230 + $0x40] sm:$0xff]
      %v251 = vld [vmem:[%s230 + $0x48] sm:$0xff]
      %v252 = vld [vmem:[%s230 + $0x50] sm:$0xff]
      %v253 = vld [vmem:[%s230 + $0x58] sm:$0xff]
      %v254 = vld [vmem:[%s230 + $0x60] sm:$0xff]
      %v255 = vld [vmem:[%s230 + $0x68] sm:$0xff]
      %v256 = vld [vmem:[%s230 + $0x70] sm:$0xff]
      %v257 = vld [vmem:[%s230 + $0x78] sm:$0xff]
      %v258 = vld [vmem:[%s230 + $0x80] sm:$0xff]
      %v259 = vld [vmem:[%s230 + $0x88] sm:$0xff]
      %v260 = vld [vmem:[%s230 + $0x90] sm:$0xff]
      %v261 = vld [vmem:[%s230 + $0x98] sm:$0xff]
      %v262 = vld [vmem:[%s230 + $0xa0] sm:$0xff]
      %v263 = vld [vmem:[%s230 + $0xa8] sm:$0xff]
      %v264 = vld [vmem:[%s230 + $0xb0] sm:$0xff]
      %v265 = vld [vmem:[%s230 + $0xb8] sm:$0xff]
      %v266 = vld [vmem:[%s230 + $0xc0] sm:$0xff]
      %v267 = vld [vmem:[%s230 + $0xc8] sm:$0xff]
      %v268 = vld [vmem:[%s230 + $0xd0] sm:$0xff]
      %v269 = vld [vmem:[%s230 + $0xd8] sm:$0xff]
      %v270 = vld [vmem:[%s230 + $0xe0] sm:$0xff]
      %v271 = vld [vmem:[%s230 + $0xe8] sm:$0xff]
      %v272 = vld [vmem:[%s230 + $0xf0] sm:$0xff]
      %v273 = vld [vmem:[%s230 + $0xf8] sm:$0xff]
      %vm306 = vcmask 1040384
      %v307 = vrot.slane %v242, 7
      %v308 = vrot.slane %v243, 7
      %v309 = vsel %vm306, %v307, %v308
      %v310 = vrot.slane %v244, 7
      %v311 = vrot.slane %v245, 7
      %v312 = vsel %vm306, %v310, %v311
      %v313 = vrot.slane %v246, 7
      %v314 = vrot.slane %v247, 7
      %v315 = vsel %vm306, %v313, %v314
      %v316 = vrot.slane %v248, 7
      %v317 = vrot.slane %v249, 7
      %v318 = vsel %vm306, %v316, %v317
      %v319 = vrot.slane %v250, 7
      %v320 = vrot.slane %v251, 7
      %v321 = vsel %vm306, %v319, %v320
      %v322 = vrot.slane %v252, 7
      %v323 = vrot.slane %v253, 7
      %v324 = vsel %vm306, %v322, %v323
      %v325 = vrot.slane %v254, 7
      %v326 = vrot.slane %v255, 7
      %v327 = vsel %vm306, %v325, %v326
      %v328 = vrot.slane %v256, 7
      %v329 = vrot.slane %v257, 7
      %v330 = vsel %vm306, %v328, %v329
      %v331 = vrot.slane %v258, 7
      %v332 = vrot.slane %v259, 7
      %v333 = vsel %vm306, %v331, %v332
      %v334 = vrot.slane %v260, 7
      %v335 = vrot.slane %v261, 7
      %v336 = vsel %vm306, %v334, %v335
      %v337 = vrot.slane %v262, 7
      %v338 = vrot.slane %v263, 7
      %v339 = vsel %vm306, %v337, %v338
      %v340 = vrot.slane %v264, 7
      %v341 = vrot.slane %v265, 7
      %v342 = vsel %vm306, %v340, %v341
      %v343 = vrot.slane %v266, 7
      %v344 = vrot.slane %v267, 7
      %v345 = vsel %vm306, %v343, %v344
      %v346 = vrot.slane %v268, 7
      %v347 = vrot.slane %v269, 7
      %v348 = vsel %vm306, %v346, %v347
      %v349 = vrot.slane %v270, 7
      %v350 = vrot.slane %v271, 7
      %v351 = vsel %vm306, %v349, %v350
      %v352 = vrot.slane %v272, 7
      %v353 = vrot.slane %v273, 7
      %v354 = vsel %vm306, %v352, %v353
      %v387 = vsel %vm306, 0.0, %v307
      %v388 = vsel %vm306, 0.0, %v310
      %v389 = vsel %vm306, 0.0, %v313
      %v390 = vsel %vm306, 0.0, %v316
      %v391 = vsel %vm306, 0.0, %v319
      %v392 = vsel %vm306, 0.0, %v322
      %v393 = vsel %vm306, 0.0, %v325
      %v394 = vsel %vm306, 0.0, %v328
      %v395 = vsel %vm306, 0.0, %v331
      %v396 = vsel %vm306, 0.0, %v334
      %v397 = vsel %vm306, 0.0, %v337
      %v398 = vsel %vm306, 0.0, %v340
      %v399 = vsel %vm306, 0.0, %v343
      %v400 = vsel %vm306, 0.0, %v346
      %v401 = vsel %vm306, 0.0, %v349
      %v402 = vsel %vm306, 0.0, %v352
      %vm403 = vcmask 1046528
      %v404 = vrot.slane %v242, 1
      %v405 = vrot.slane %v243, 1
      %v406 = vsel %vm403, %v404, %v405
      %v407 = vrot.slane %v244, 1
      %v408 = vrot.slane %v245, 1
      %v409 = vsel %vm403, %v407, %v408
      %v410 = vrot.slane %v246, 1
      %v411 = vrot.slane %v247, 1
      %v412 = vsel %vm403, %v410, %v411
      %v413 = vrot.slane %v248, 1
      %v414 = vrot.slane %v249, 1
      %v415 = vsel %vm403, %v413, %v414
      %v416 = vrot.slane %v250, 1
      %v417 = vrot.slane %v251, 1
      %v418 = vsel %vm403, %v416, %v417
      %v419 = vrot.slane %v252, 1
      %v420 = vrot.slane %v253, 1
      %v421 = vsel %vm403, %v419, %v420
      %v422 = vrot.slane %v254, 1
      %v423 = vrot.slane %v255, 1
      %v424 = vsel %vm403, %v422, %v423
      %v425 = vrot.slane %v256, 1
      %v426 = vrot.slane %v257, 1
      %v427 = vsel %vm403, %v425, %v426
      %v428 = vrot.slane %v258, 1
      %v429 = vrot.slane %v259, 1
      %v430 = vsel %vm403, %v428, %v429
      %v431 = vrot.slane %v260, 1
      %v432 = vrot.slane %v261, 1
      %v433 = vsel %vm403, %v431, %v432
      %v434 = vrot.slane %v262, 1
      %v435 = vrot.slane %v263, 1
      %v436 = vsel %vm403, %v434, %v435
      %v437 = vrot.slane %v264, 1
      %v438 = vrot.slane %v265, 1
      %v439 = vsel %vm403, %v437, %v438
      %v440 = vrot.slane %v266, 1
      %v441 = vrot.slane %v267, 1
      %v442 = vsel %vm403, %v440, %v441
      %v443 = vrot.slane %v268, 1
      %v444 = vrot.slane %v269, 1
      %v445 = vsel %vm403, %v443, %v444
      %v446 = vrot.slane %v270, 1
      %v447 = vrot.slane %v271, 1
      %v448 = vsel %vm403, %v446, %v447
      %v449 = vrot.slane %v272, 1
      %v450 = vrot.slane %v273, 1
      %v451 = vsel %vm403, %v449, %v450
      %v484 = vsel %vm403, %v405, 0.0
      %v485 = vsel %vm403, %v408, 0.0
      %v486 = vsel %vm403, %v411, 0.0
      %v487 = vsel %vm403, %v414, 0.0
      %v488 = vsel %vm403, %v417, 0.0
      %v489 = vsel %vm403, %v420, 0.0
      %v490 = vsel %vm403, %v423, 0.0
      %v491 = vsel %vm403, %v426, 0.0
      %v492 = vsel %vm403, %v429, 0.0
      %v493 = vsel %vm403, %v432, 0.0
      %v494 = vsel %vm403, %v435, 0.0
      %v495 = vsel %vm403, %v438, 0.0
      %v496 = vsel %vm403, %v441, 0.0
      %v497 = vsel %vm403, %v444, 0.0
      %v498 = vsel %vm403, %v447, 0.0
      %v499 = vsel %vm403, %v450, 0.0
      %v500 = vld [vmem:[%s1] sm:$0xff]
      %v501 = vld [vmem:[%s1 + $0x8] sm:$0x1]
      %v502 = vperm.slane %v500, 0
      %v503 = vmul.f32 %v387, %v502
      %v504 = vmul.f32 %v309, %v502
      %v505 = vmul.f32 %v388, %v502
      %v506 = vmul.f32 %v312, %v502
      %v507 = vmul.f32 %v389, %v502
      %v508 = vmul.f32 %v315, %v502
      %v509 = vmul.f32 %v390, %v502
      %v510 = vmul.f32 %v318, %v502
      %v511 = vmul.f32 %v391, %v502
      %v512 = vmul.f32 %v321, %v502
      %v513 = vmul.f32 %v392, %v502
      %v514 = vmul.f32 %v324, %v502
      %v515 = vmul.f32 %v393, %v502
      %v516 = vmul.f32 %v327, %v502
      %v517 = vmul.f32 %v394, %v502
      %v518 = vmul.f32 %v330, %v502
      %v519 = vmul.f32 %v395, %v502
      %v520 = vmul.f32 %v333, %v502
      %v521 = vmul.f32 %v396, %v502
      %v522 = vmul.f32 %v336, %v502
      %v523 = vmul.f32 %v397, %v502
      %v524 = vmul.f32 %v339, %v502
      %v525 = vmul.f32 %v398, %v502
      %v526 = vmul.f32 %v342, %v502
      %v527 = vmul.f32 %v399, %v502
      %v528 = vmul.f32 %v345, %v502
      %v529 = vmul.f32 %v400, %v502
      %v530 = vmul.f32 %v348, %v502
      %v531 = vmul.f32 %v401, %v502
      %v532 = vmul.f32 %v351, %v502
      %v533 = vperm.slane %v500, 1
      %v534 = vmul.f32 %v242, %v533
      %v535 = vmul.f32 %v243, %v533
      %v536 = vmul.f32 %v244, %v533
      %v537 = vmul.f32 %v245, %v533
      %v538 = vmul.f32 %v246, %v533
      %v539 = vmul.f32 %v247, %v533
      %v540 = vmul.f32 %v248, %v533
      %v541 = vmul.f32 %v249, %v533
      %v542 = vmul.f32 %v250, %v533
      %v543 = vmul.f32 %v251, %v533
      %v544 = vmul.f32 %v252, %v533
      %v545 = vmul.f32 %v253, %v533
      %v546 = vmul.f32 %v254, %v533
      %v547 = vmul.f32 %v255, %v533
      %v548 = vmul.f32 %v256, %v533
      %v549 = vmul.f32 %v257, %v533
      %v550 = vmul.f32 %v258, %v533
      %v551 = vmul.f32 %v259, %v533
      %v552 = vmul.f32 %v260, %v533
      %v553 = vmul.f32 %v261, %v533
      %v554 = vmul.f32 %v262, %v533
      %v555 = vmul.f32 %v263, %v533
      %v556 = vmul.f32 %v264, %v533
      %v557 = vmul.f32 %v265, %v533
      %v558 = vmul.f32 %v266, %v533
      %v559 = vmul.f32 %v267, %v533
      %v560 = vmul.f32 %v268, %v533
      %v561 = vmul.f32 %v269, %v533
      %v562 = vmul.f32 %v270, %v533
      %v563 = vmul.f32 %v271, %v533
      %v564 = vadd.f32 %v503, %v534
      %v565 = vadd.f32 %v504, %v535
      %v566 = vadd.f32 %v505, %v536
      %v567 = vadd.f32 %v506, %v537
      %v568 = vadd.f32 %v507, %v538
      %v569 = vadd.f32 %v508, %v539
      %v570 = vadd.f32 %v509, %v540
      %v571 = vadd.f32 %v510, %v541
      %v572 = vadd.f32 %v511, %v542
      %v573 = vadd.f32 %v512, %v543
      %v574 = vadd.f32 %v513, %v544
      %v575 = vadd.f32 %v514, %v545
      %v576 = vadd.f32 %v515, %v546
      %v577 = vadd.f32 %v516, %v547
      %v578 = vadd.f32 %v517, %v548
      %v579 = vadd.f32 %v518, %v549
      %v580 = vadd.f32 %v519, %v550
      %v581 = vadd.f32 %v520, %v551
      %v582 = vadd.f32 %v521, %v552
      %v583 = vadd.f32 %v522, %v553
      %v584 = vadd.f32 %v523, %v554
      %v585 = vadd.f32 %v524, %v555
      %v586 = vadd.f32 %v525, %v556
      %v587 = vadd.f32 %v526, %v557
      %v588 = vadd.f32 %v527, %v558
      %v589 = vadd.f32 %v528, %v559
      %v590 = vadd.f32 %v529, %v560
      %v591 = vadd.f32 %v530, %v561
      %v592 = vadd.f32 %v531, %v562
      %v593 = vadd.f32 %v532, %v563
      %v594 = vperm.slane %v500, 2
      %v595 = vmul.f32 %v406, %v594
      %v596 = vmul.f32 %v484, %v594
      %v597 = vmul.f32 %v409, %v594
      %v598 = vmul.f32 %v485, %v594
      %v599 = vmul.f32 %v412, %v594
      %v600 = vmul.f32 %v486, %v594
      %v601 = vmul.f32 %v415, %v594
      %v602 = vmul.f32 %v487, %v594
      %v603 = vmul.f32 %v418, %v594
      %v604 = vmul.f32 %v488, %v594
      %v605 = vmul.f32 %v421, %v594
      %v606 = vmul.f32 %v489, %v594
      %v607 = vmul.f32 %v424, %v594
      %v608 = vmul.f32 %v490, %v594
      %v609 = vmul.f32 %v427, %v594
      %v610 = vmul.f32 %v491, %v594
      %v611 = vmul.f32 %v430, %v594
      %v612 = vmul.f32 %v492, %v594
      %v613 = vmul.f32 %v433, %v594
      %v614 = vmul.f32 %v493, %v594
      %v615 = vmul.f32 %v436, %v594
      %v616 = vmul.f32 %v494, %v594
      %v617 = vmul.f32 %v439, %v594
      %v618 = vmul.f32 %v495, %v594
      %v619 = vmul.f32 %v442, %v594
      %v620 = vmul.f32 %v496, %v594
      %v621 = vmul.f32 %v445, %v594
      %v622 = vmul.f32 %v497, %v594
      %v623 = vmul.f32 %v448, %v594
      %v624 = vmul.f32 %v498, %v594
      %v625 = vadd.f32 %v564, %v595
      %v626 = vadd.f32 %v565, %v596
      %v627 = vadd.f32 %v566, %v597
      %v628 = vadd.f32 %v567, %v598
      %v629 = vadd.f32 %v568, %v599
      %v630 = vadd.f32 %v569, %v600
      %v631 = vadd.f32 %v570, %v601
      %v632 = vadd.f32 %v571, %v602
      %v633 = vadd.f32 %v572, %v603
      %v634 = vadd.f32 %v573, %v604
      %v635 = vadd.f32 %v574, %v605
      %v636 = vadd.f32 %v575, %v606
      %v637 = vadd.f32 %v576, %v607
      %v638 = vadd.f32 %v577, %v608
      %v639 = vadd.f32 %v578, %v609
      %v640 = vadd.f32 %v579, %v610
      %v641 = vadd.f32 %v580, %v611
      %v642 = vadd.f32 %v581, %v612
      %v643 = vadd.f32 %v582, %v613
      %v644 = vadd.f32 %v583, %v614
      %v645 = vadd.f32 %v584, %v615
      %v646 = vadd.f32 %v585, %v616
      %v647 = vadd.f32 %v586, %v617
      %v648 = vadd.f32 %v587, %v618
      %v649 = vadd.f32 %v588, %v619
      %v650 = vadd.f32 %v589, %v620
      %v651 = vadd.f32 %v590, %v621
      %v652 = vadd.f32 %v591, %v622
      %v653 = vadd.f32 %v592, %v623
      %v654 = vadd.f32 %v593, %v624
      %v655 = vperm.slane %v500, 3
      %v656 = vmul.f32 %v387, %v655
      %v657 = vmul.f32 %v309, %v655
      %v658 = vmul.f32 %v388, %v655
      %v659 = vmul.f32 %v312, %v655
      %v660 = vmul.f32 %v389, %v655
      %v661 = vmul.f32 %v315, %v655
      %v662 = vmul.f32 %v390, %v655
      %v663 = vmul.f32 %v318, %v655
      %v664 = vmul.f32 %v391, %v655
      %v665 = vmul.f32 %v321, %v655
      %v666 = vmul.f32 %v392, %v655
      %v667 = vmul.f32 %v324, %v655
      %v668 = vmul.f32 %v393, %v655
      %v669 = vmul.f32 %v327, %v655
      %v670 = vmul.f32 %v394, %v655
      %v671 = vmul.f32 %v330, %v655
      %v672 = vmul.f32 %v395, %v655
      %v673 = vmul.f32 %v333, %v655
      %v674 = vmul.f32 %v396, %v655
      %v675 = vmul.f32 %v336, %v655
      %v676 = vmul.f32 %v397, %v655
      %v677 = vmul.f32 %v339, %v655
      %v678 = vmul.f32 %v398, %v655
      %v679 = vmul.f32 %v342, %v655
      %v680 = vmul.f32 %v399, %v655
      %v681 = vmul.f32 %v345, %v655
      %v682 = vmul.f32 %v400, %v655
      %v683 = vmul.f32 %v348, %v655
      %v684 = vmul.f32 %v401, %v655
      %v685 = vmul.f32 %v351, %v655
      %v686 = vmul.f32 %v402, %v655
      %v687 = vmul.f32 %v354, %v655
      %v688 = vperm.slane %v500, 4
      %v689 = vmul.f32 %v242, %v688
      %v690 = vmul.f32 %v243, %v688
      %v691 = vmul.f32 %v244, %v688
      %v692 = vmul.f32 %v245, %v688
      %v693 = vmul.f32 %v246, %v688
      %v694 = vmul.f32 %v247, %v688
      %v695 = vmul.f32 %v248, %v688
      %v696 = vmul.f32 %v249, %v688
      %v697 = vmul.f32 %v250, %v688
      %v698 = vmul.f32 %v251, %v688
      %v699 = vmul.f32 %v252, %v688
      %v700 = vmul.f32 %v253, %v688
      %v701 = vmul.f32 %v254, %v688
      %v702 = vmul.f32 %v255, %v688
      %v703 = vmul.f32 %v256, %v688
      %v704 = vmul.f32 %v257, %v688
      %v705 = vmul.f32 %v258, %v688
      %v706 = vmul.f32 %v259, %v688
      %v707 = vmul.f32 %v260, %v688
      %v708 = vmul.f32 %v261, %v688
      %v709 = vmul.f32 %v262, %v688
      %v710 = vmul.f32 %v263, %v688
      %v711 = vmul.f32 %v264, %v688
      %v712 = vmul.f32 %v265, %v688
      %v713 = vmul.f32 %v266, %v688
      %v714 = vmul.f32 %v267, %v688
      %v715 = vmul.f32 %v268, %v688
      %v716 = vmul.f32 %v269, %v688
      %v717 = vmul.f32 %v270, %v688
      %v718 = vmul.f32 %v271, %v688
      %v719 = vmul.f32 %v272, %v688
      %v720 = vmul.f32 %v273, %v688
      %v721 = vadd.f32 %v656, %v689
      %v722 = vadd.f32 %v657, %v690
      %v723 = vadd.f32 %v658, %v691
      %v724 = vadd.f32 %v659, %v692
      %v725 = vadd.f32 %v660, %v693
      %v726 = vadd.f32 %v661, %v694
      %v727 = vadd.f32 %v662, %v695
      %v728 = vadd.f32 %v663, %v696
      %v729 = vadd.f32 %v664, %v697
      %v730 = vadd.f32 %v665, %v698
      %v731 = vadd.f32 %v666, %v699
      %v732 = vadd.f32 %v667, %v700
      %v733 = vadd.f32 %v668, %v701
      %v734 = vadd.f32 %v669, %v702
      %v735 = vadd.f32 %v670, %v703
      %v736 = vadd.f32 %v671, %v704
      %v737 = vadd.f32 %v672, %v705
      %v738 = vadd.f32 %v673, %v706
      %v739 = vadd.f32 %v674, %v707
      %v740 = vadd.f32 %v675, %v708
      %v741 = vadd.f32 %v676, %v709
      %v742 = vadd.f32 %v677, %v710
      %v743 = vadd.f32 %v678, %v711
      %v744 = vadd.f32 %v679, %v712
      %v745 = vadd.f32 %v680, %v713
      %v746 = vadd.f32 %v681, %v714
      %v747 = vadd.f32 %v682, %v715
      %v748 = vadd.f32 %v683, %v716
      %v749 = vadd.f32 %v684, %v717
      %v750 = vadd.f32 %v685, %v718
      %v751 = vadd.f32 %v686, %v719
      %v752 = vadd.f32 %v687, %v720
      %v753 = vperm.slane %v500, 5
      %v754 = vmul.f32 %v406, %v753
      %v755 = vmul.f32 %v484, %v753
      %v756 = vmul.f32 %v409, %v753
      %v757 = vmul.f32 %v485, %v753
      %v758 = vmul.f32 %v412, %v753
      %v759 = vmul.f32 %v486, %v753
      %v760 = vmul.f32 %v415, %v753
      %v761 = vmul.f32 %v487, %v753
      %v762 = vmul.f32 %v418, %v753
      %v763 = vmul.f32 %v488, %v753
      %v764 = vmul.f32 %v421, %v753
      %v765 = vmul.f32 %v489, %v753
      %v766 = vmul.f32 %v424, %v753
      %v767 = vmul.f32 %v490, %v753
      %v768 = vmul.f32 %v427, %v753
      %v769 = vmul.f32 %v491, %v753
      %v770 = vmul.f32 %v430, %v753
      %v771 = vmul.f32 %v492, %v753
      %v772 = vmul.f32 %v433, %v753
      %v773 = vmul.f32 %v493, %v753
      %v774 = vmul.f32 %v436, %v753
      %v775 = vmul.f32 %v494, %v753
      %v776 = vmul.f32 %v439, %v753
      %v777 = vmul.f32 %v495, %v753
      %v778 = vmul.f32 %v442, %v753
      %v779 = vmul.f32 %v496, %v753
      %v780 = vmul.f32 %v445, %v753
      %v781 = vmul.f32 %v497, %v753
      %v782 = vmul.f32 %v448, %v753
      %v783 = vmul.f32 %v498, %v753
      %v784 = vmul.f32 %v451, %v753
      %v785 = vmul.f32 %v499, %v753
      %v786 = vadd.f32 %v721, %v754
      %v787 = vadd.f32 %v722, %v755
      %v788 = vadd.f32 %v723, %v756
      %v789 = vadd.f32 %v724, %v757
      %v790 = vadd.f32 %v725, %v758
      %v791 = vadd.f32 %v726, %v759
      %v792 = vadd.f32 %v727, %v760
      %v793 = vadd.f32 %v728, %v761
      %v794 = vadd.f32 %v729, %v762
      %v795 = vadd.f32 %v730, %v763
      %v796 = vadd.f32 %v731, %v764
      %v797 = vadd.f32 %v732, %v765
      %v798 = vadd.f32 %v733, %v766
      %v799 = vadd.f32 %v734, %v767
      %v800 = vadd.f32 %v735, %v768
      %v801 = vadd.f32 %v736, %v769
      %v802 = vadd.f32 %v737, %v770
      %v803 = vadd.f32 %v738, %v771
      %v804 = vadd.f32 %v739, %v772
      %v805 = vadd.f32 %v740, %v773
      %v806 = vadd.f32 %v741, %v774
      %v807 = vadd.f32 %v742, %v775
      %v808 = vadd.f32 %v743, %v776
      %v809 = vadd.f32 %v744, %v777
      %v810 = vadd.f32 %v745, %v778
      %v811 = vadd.f32 %v746, %v779
      %v812 = vadd.f32 %v747, %v780
      %v813 = vadd.f32 %v748, %v781
      %v814 = vadd.f32 %v749, %v782
      %v815 = vadd.f32 %v750, %v783
      %v816 = vadd.f32 %v751, %v784
      %v817 = vadd.f32 %v752, %v785
      %v818 = vperm.slane %v500, 6
      %v819 = vmul.f32 %v388, %v818
      %v820 = vmul.f32 %v312, %v818
      %v821 = vmul.f32 %v389, %v818
      %v822 = vmul.f32 %v315, %v818
      %v823 = vmul.f32 %v390, %v818
      %v824 = vmul.f32 %v318, %v818
      %v825 = vmul.f32 %v391, %v818
      %v826 = vmul.f32 %v321, %v818
      %v827 = vmul.f32 %v392, %v818
      %v828 = vmul.f32 %v324, %v818
      %v829 = vmul.f32 %v393, %v818
      %v830 = vmul.f32 %v327, %v818
      %v831 = vmul.f32 %v394, %v818
      %v832 = vmul.f32 %v330, %v818
      %v833 = vmul.f32 %v395, %v818
      %v834 = vmul.f32 %v333, %v818
      %v835 = vmul.f32 %v396, %v818
      %v836 = vmul.f32 %v336, %v818
      %v837 = vmul.f32 %v397, %v818
      %v838 = vmul.f32 %v339, %v818
      %v839 = vmul.f32 %v398, %v818
      %v840 = vmul.f32 %v342, %v818
      %v841 = vmul.f32 %v399, %v818
      %v842 = vmul.f32 %v345, %v818
      %v843 = vmul.f32 %v400, %v818
      %v844 = vmul.f32 %v348, %v818
      %v845 = vmul.f32 %v401, %v818
      %v846 = vmul.f32 %v351, %v818
      %v847 = vmul.f32 %v402, %v818
      %v848 = vmul.f32 %v354, %v818
      %v849 = vperm.slane %v500, 7
      %v850 = vmul.f32 %v244, %v849
      %v851 = vmul.f32 %v245, %v849
      %v852 = vmul.f32 %v246, %v849
      %v853 = vmul.f32 %v247, %v849
      %v854 = vmul.f32 %v248, %v849
      %v855 = vmul.f32 %v249, %v849
      %v856 = vmul.f32 %v250, %v849
      %v857 = vmul.f32 %v251, %v849
      %v858 = vmul.f32 %v252, %v849
      %v859 = vmul.f32 %v253, %v849
      %v860 = vmul.f32 %v254, %v849
      %v861 = vmul.f32 %v255, %v849
      %v862 = vmul.f32 %v256, %v849
      %v863 = vmul.f32 %v257, %v849
      %v864 = vmul.f32 %v258, %v849
      %v865 = vmul.f32 %v259, %v849
      %v866 = vmul.f32 %v260, %v849
      %v867 = vmul.f32 %v261, %v849
      %v868 = vmul.f32 %v262, %v849
      %v869 = vmul.f32 %v263, %v849
      %v870 = vmul.f32 %v264, %v849
      %v871 = vmul.f32 %v265, %v849
      %v872 = vmul.f32 %v266, %v849
      %v873 = vmul.f32 %v267, %v849
      %v874 = vmul.f32 %v268, %v849
      %v875 = vmul.f32 %v269, %v849
      %v876 = vmul.f32 %v270, %v849
      %v877 = vmul.f32 %v271, %v849
      %v878 = vmul.f32 %v272, %v849
      %v879 = vmul.f32 %v273, %v849
      %v880 = vadd.f32 %v819, %v850
      %v881 = vadd.f32 %v820, %v851
      %v882 = vadd.f32 %v821, %v852
      %v883 = vadd.f32 %v822, %v853
      %v884 = vadd.f32 %v823, %v854
      %v885 = vadd.f32 %v824, %v855
      %v886 = vadd.f32 %v825, %v856
      %v887 = vadd.f32 %v826, %v857
      %v888 = vadd.f32 %v827, %v858
      %v889 = vadd.f32 %v828, %v859
      %v890 = vadd.f32 %v829, %v860
      %v891 = vadd.f32 %v830, %v861
      %v892 = vadd.f32 %v831, %v862
      %v893 = vadd.f32 %v832, %v863
      %v894 = vadd.f32 %v833, %v864
      %v895 = vadd.f32 %v834, %v865
      %v896 = vadd.f32 %v835, %v866
      %v897 = vadd.f32 %v836, %v867
      %v898 = vadd.f32 %v837, %v868
      %v899 = vadd.f32 %v838, %v869
      %v900 = vadd.f32 %v839, %v870
      %v901 = vadd.f32 %v840, %v871
      %v902 = vadd.f32 %v841, %v872
      %v903 = vadd.f32 %v842, %v873
      %v904 = vadd.f32 %v843, %v874
      %v905 = vadd.f32 %v844, %v875
      %v906 = vadd.f32 %v845, %v876
      %v907 = vadd.f32 %v846, %v877
      %v908 = vadd.f32 %v847, %v878
      %v909 = vadd.f32 %v848, %v879
      %v910 = vperm.slane %v501, 0
      %v911 = vmul.f32 %v409, %v910
      %v912 = vmul.f32 %v485, %v910
      %v913 = vmul.f32 %v412, %v910
      %v914 = vmul.f32 %v486, %v910
      %v915 = vmul.f32 %v415, %v910
      %v916 = vmul.f32 %v487, %v910
      %v917 = vmul.f32 %v418, %v910
      %v918 = vmul.f32 %v488, %v910
      %v919 = vmul.f32 %v421, %v910
      %v920 = vmul.f32 %v489, %v910
      %v921 = vmul.f32 %v424, %v910
      %v922 = vmul.f32 %v490, %v910
      %v923 = vmul.f32 %v427, %v910
      %v924 = vmul.f32 %v491, %v910
      %v925 = vmul.f32 %v430, %v910
      %v926 = vmul.f32 %v492, %v910
      %v927 = vmul.f32 %v433, %v910
      %v928 = vmul.f32 %v493, %v910
      %v929 = vmul.f32 %v436, %v910
      %v930 = vmul.f32 %v494, %v910
      %v931 = vmul.f32 %v439, %v910
      %v932 = vmul.f32 %v495, %v910
      %v933 = vmul.f32 %v442, %v910
      %v934 = vmul.f32 %v496, %v910
      %v935 = vmul.f32 %v445, %v910
      %v936 = vmul.f32 %v497, %v910
      %v937 = vmul.f32 %v448, %v910
      %v938 = vmul.f32 %v498, %v910
      %v939 = vmul.f32 %v451, %v910
      %v940 = vmul.f32 %v499, %v910
      %v941 = vadd.f32 %v880, %v911
      %v942 = vadd.f32 %v881, %v912
      %v943 = vadd.f32 %v882, %v913
      %v944 = vadd.f32 %v883, %v914
      %v945 = vadd.f32 %v884, %v915
      %v946 = vadd.f32 %v885, %v916
      %v947 = vadd.f32 %v886, %v917
      %v948 = vadd.f32 %v887, %v918
      %v949 = vadd.f32 %v888, %v919
      %v950 = vadd.f32 %v889, %v920
      %v951 = vadd.f32 %v890, %v921
      %v952 = vadd.f32 %v891, %v922
      %v953 = vadd.f32 %v892, %v923
      %v954 = vadd.f32 %v893, %v924
      %v955 = vadd.f32 %v894, %v925
      %v956 = vadd.f32 %v895, %v926
      %v957 = vadd.f32 %v896, %v927
      %v958 = vadd.f32 %v897, %v928
      %v959 = vadd.f32 %v898, %v929
      %v960 = vadd.f32 %v899, %v930
      %v961 = vadd.f32 %v900, %v931
      %v962 = vadd.f32 %v901, %v932
      %v963 = vadd.f32 %v902, %v933
      %v964 = vadd.f32 %v903, %v934
      %v965 = vadd.f32 %v904, %v935
      %v966 = vadd.f32 %v905, %v936
      %v967 = vadd.f32 %v906, %v937
      %v968 = vadd.f32 %v907, %v938
      %v969 = vadd.f32 %v908, %v939
      %v970 = vadd.f32 %v909, %v940
      %v971 = vadd.f32 %v786, 0.0
      %v972 = vadd.f32 %v787, 0.0
      %v973 = vadd.f32 %v788, %v625
      %v974 = vadd.f32 %v789, %v626
      %v975 = vadd.f32 %v790, %v627
      %v976 = vadd.f32 %v791, %v628
      %v977 = vadd.f32 %v792, %v629
      %v978 = vadd.f32 %v793, %v630
      %v979 = vadd.f32 %v794, %v631
      %v980 = vadd.f32 %v795, %v632
      %v981 = vadd.f32 %v796, %v633
      %v982 = vadd.f32 %v797, %v634
      %v983 = vadd.f32 %v798, %v635
      %v984 = vadd.f32 %v799, %v636
      %v985 = vadd.f32 %v800, %v637
      %v986 = vadd.f32 %v801, %v638
      %v987 = vadd.f32 %v802, %v639
      %v988 = vadd.f32 %v803, %v640
      %v989 = vadd.f32 %v804, %v641
      %v990 = vadd.f32 %v805, %v642
      %v991 = vadd.f32 %v806, %v643
      %v992 = vadd.f32 %v807, %v644
      %v993 = vadd.f32 %v808, %v645
      %v994 = vadd.f32 %v809, %v646
      %v995 = vadd.f32 %v810, %v647
      %v996 = vadd.f32 %v811, %v648
      %v997 = vadd.f32 %v812, %v649
      %v998 = vadd.f32 %v813, %v650
      %v999 = vadd.f32 %v814, %v651
      %v1000 = vadd.f32 %v815, %v652
      %v1001 = vadd.f32 %v816, %v653
      %v1002 = vadd.f32 %v817, %v654
      %v1003 = vadd.f32 %v971, %v941
      %v1004 = vadd.f32 %v972, %v942
      %v1005 = vadd.f32 %v973, %v943
      %v1006 = vadd.f32 %v974, %v944
      %v1007 = vadd.f32 %v975, %v945
      %v1008 = vadd.f32 %v976, %v946
      %v1009 = vadd.f32 %v977, %v947
      %v1010 = vadd.f32 %v978, %v948
      %v1011 = vadd.f32 %v979, %v949
      %v1012 = vadd.f32 %v980, %v950
      %v1013 = vadd.f32 %v981, %v951
      %v1014 = vadd.f32 %v982, %v952
      %v1015 = vadd.f32 %v983, %v953
      %v1016 = vadd.f32 %v984, %v954
      %v1017 = vadd.f32 %v985, %v955
      %v1018 = vadd.f32 %v986, %v956
      %v1019 = vadd.f32 %v987, %v957
      %v1020 = vadd.f32 %v988, %v958
      %v1021 = vadd.f32 %v989, %v959
      %v1022 = vadd.f32 %v990, %v960
      %v1023 = vadd.f32 %v991, %v961
      %v1024 = vadd.f32 %v992, %v962
      %v1025 = vadd.f32 %v993, %v963
      %v1026 = vadd.f32 %v994, %v964
      %v1027 = vadd.f32 %v995, %v965
      %v1028 = vadd.f32 %v996, %v966
      %v1029 = vadd.f32 %v997, %v967
      %v1030 = vadd.f32 %v998, %v968
      %v1031 = vadd.f32 %v999, %v969
      %v1032 = vadd.f32 %v1000, %v970
      %v1033 = vadd.f32 %v1001, 0.0
      %v1034 = vadd.f32 %v1002, 0.0
      %v1035 = vld [vmem:[%s2] sm:$0x1]
      %v1037 = vperm.slane %v1035, 0
      %v1039 = vadd.f32 %v1003, %v1037
      %v1040 = vadd.f32 %v1004, %v1037
      %v1041 = vadd.f32 %v1005, %v1037
      %v1042 = vadd.f32 %v1006, %v1037
      %v1043 = vadd.f32 %v1007, %v1037
      %v1044 = vadd.f32 %v1008, %v1037
      %v1045 = vadd.f32 %v1009, %v1037
      %v1046 = vadd.f32 %v1010, %v1037
      %v1047 = vadd.f32 %v1011, %v1037
      %v1048 = vadd.f32 %v1012, %v1037
      %v1049 = vadd.f32 %v1013, %v1037
      %v1050 = vadd.f32 %v1014, %v1037
      %v1051 = vadd.f32 %v1015, %v1037
      %v1052 = vadd.f32 %v1016, %v1037
      %v1053 = vadd.f32 %v1017, %v1037
      %v1054 = vadd.f32 %v1018, %v1037
      %v1055 = vadd.f32 %v1019, %v1037
      %v1056 = vadd.f32 %v1020, %v1037
      %v1057 = vadd.f32 %v1021, %v1037
      %v1058 = vadd.f32 %v1022, %v1037
      %v1059 = vadd.f32 %v1023, %v1037
      %v1060 = vadd.f32 %v1024, %v1037
      %v1061 = vadd.f32 %v1025, %v1037
      %v1062 = vadd.f32 %v1026, %v1037
      %v1063 = vadd.f32 %v1027, %v1037
      %v1064 = vadd.f32 %v1028, %v1037
      %v1065 = vadd.f32 %v1029, %v1037
      %v1066 = vadd.f32 %v1030, %v1037
      %v1067 = vadd.f32 %v1031, %v1037
      %v1068 = vadd.f32 %v1032, %v1037
      %v1069 = vadd.f32 %v1033, %v1037
      %v1070 = vadd.f32 %v1034, %v1037
      %vm1071 = vcmask 31744
      %1072 = vst.msk [vmem:[%s235] sm:$0xff] %vm1071, %v1039
      %1073 = vst.msk [vmem:[%s235 + $0x8] sm:$0xff] %vm1071, %v1040
      %1074 = vst.msk [vmem:[%s235 + $0x10] sm:$0xff] %vm1071, %v1041
      %1075 = vst.msk [vmem:[%s235 + $0x18] sm:$0xff] %vm1071, %v1042
      %1076 = vst.msk [vmem:[%s235 + $0x20] sm:$0xff] %vm1071, %v1043
      %1077 = vst.msk [vmem:[%s235 + $0x28] sm:$0xff] %vm1071, %v1044
      %1078 = vst.msk [vmem:[%s235 + $0x30] sm:$0xff] %vm1071, %v1045
      %1079 = vst.msk [vmem:[%s235 + $0x38] sm:$0xff] %vm1071, %v1046
      %1080 = vst.msk [vmem:[%s235 + $0x40] sm:$0xff] %vm1071, %v1047
      %1081 = vst.msk [vmem:[%s235 + $0x48] sm:$0xff] %vm1071, %v1048
      %1082 = vst.msk [vmem:[%s235 + $0x50] sm:$0xff] %vm1071, %v1049
      %1083 = vst.msk [vmem:[%s235 + $0x58] sm:$0xff] %vm1071, %v1050
      %1084 = vst.msk [vmem:[%s235 + $0x60] sm:$0xff] %vm1071, %v1051
      %1085 = vst.msk [vmem:[%s235 + $0x68] sm:$0xff] %vm1071, %v1052
      %1086 = vst.msk [vmem:[%s235 + $0x70] sm:$0xff] %vm1071, %v1053
      %1087 = vst.msk [vmem:[%s235 + $0x78] sm:$0xff] %vm1071, %v1054
      %1088 = vst.msk [vmem:[%s235 + $0x80] sm:$0xff] %vm1071, %v1055
      %1089 = vst.msk [vmem:[%s235 + $0x88] sm:$0xff] %vm1071, %v1056
      %1090 = vst.msk [vmem:[%s235 + $0x90] sm:$0xff] %vm1071, %v1057
      %1091 = vst.msk [vmem:[%s235 + $0x98] sm:$0xff] %vm1071, %v1058
      %1092 = vst.msk [vmem:[%s235 + $0xa0] sm:$0xff] %vm1071, %v1059
      %1093 = vst.msk [vmem:[%s235 + $0xa8] sm:$0xff] %vm1071, %v1060
      %1094 = vst.msk [vmem:[%s235 + $0xb0] sm:$0xff] %vm1071, %v1061
      %1095 = vst.msk [vmem:[%s235 + $0xb8] sm:$0xff] %vm1071, %v1062
      %1096 = vst.msk [vmem:[%s235 + $0xc0] sm:$0xff] %vm1071, %v1063
      %1097 = vst.msk [vmem:[%s235 + $0xc8] sm:$0xff] %vm1071, %v1064
      %1098 = vst.msk [vmem:[%s235 + $0xd0] sm:$0xff] %vm1071, %v1065
      %1099 = vst.msk [vmem:[%s235 + $0xd8] sm:$0xff] %vm1071, %v1066
      %1100 = vst.msk [vmem:[%s235 + $0xe0] sm:$0xff] %vm1071, %v1067
      %1101 = vst.msk [vmem:[%s235 + $0xe8] sm:$0xff] %vm1071, %v1068
      %1102 = vst.msk [vmem:[%s235 + $0xf0] sm:$0xff] %vm1071, %v1069
      %1103 = vst.msk [vmem:[%s235 + $0xf8] sm:$0xff] %vm1071, %v1070
      %v1104 = vsel %vm1071, %v1039, 0.0
      %v1105 = vsel %vm1071, %v1041, 0.0
      %v1106 = vadd.f32 %v1104, %v1105
      %v1107 = vsel %vm1071, %v1043, 0.0
      %v1108 = vadd.f32 %v1106, %v1107
      %v1109 = vsel %vm1071, %v1045, 0.0
      %v1110 = vadd.f32 %v1108, %v1109
      %v1111 = vsel %vm1071, %v1047, 0.0
      %v1112 = vadd.f32 %v1110, %v1111
      %v1113 = vsel %vm1071, %v1049, 0.0
      %v1114 = vadd.f32 %v1112, %v1113
      %v1115 = vsel %vm1071, %v1051, 0.0
      %v1116 = vadd.f32 %v1114, %v1115
      %v1117 = vsel %vm1071, %v1053, 0.0
      %v1118 = vadd.f32 %v1116, %v1117
      %v1119 = vsel %vm1071, %v1055, 0.0
      %v1120 = vadd.f32 %v1118, %v1119
      %v1121 = vsel %vm1071, %v1057, 0.0
      %v1122 = vadd.f32 %v1120, %v1121
      %v1123 = vsel %vm1071, %v1059, 0.0
      %v1124 = vadd.f32 %v1122, %v1123
      %v1125 = vsel %vm1071, %v1061, 0.0
      %v1126 = vadd.f32 %v1124, %v1125
      %v1127 = vsel %vm1071, %v1063, 0.0
      %v1128 = vadd.f32 %v1126, %v1127
      %v1129 = vsel %vm1071, %v1065, 0.0
      %v1130 = vadd.f32 %v1128, %v1129
      %v1131 = vsel %vm1071, %v1067, 0.0
      %v1132 = vadd.f32 %v1130, %v1131
      %v1133 = vsel %vm1071, %v1069, 0.0
      %v1134 = vadd.f32 %v1132, %v1133
      %v1135 = vsel %vm1071, %v1040, 0.0
      %v1136 = vsel %vm1071, %v1042, 0.0
      %v1137 = vadd.f32 %v1135, %v1136
      %v1138 = vsel %vm1071, %v1044, 0.0
      %v1139 = vadd.f32 %v1137, %v1138
      %v1140 = vsel %vm1071, %v1046, 0.0
      %v1141 = vadd.f32 %v1139, %v1140
      %v1142 = vsel %vm1071, %v1048, 0.0
      %v1143 = vadd.f32 %v1141, %v1142
      %v1144 = vsel %vm1071, %v1050, 0.0
      %v1145 = vadd.f32 %v1143, %v1144
      %v1146 = vsel %vm1071, %v1052, 0.0
      %v1147 = vadd.f32 %v1145, %v1146
      %v1148 = vsel %vm1071, %v1054, 0.0
      %v1149 = vadd.f32 %v1147, %v1148
      %v1150 = vsel %vm1071, %v1056, 0.0
      %v1151 = vadd.f32 %v1149, %v1150
      %v1152 = vsel %vm1071, %v1058, 0.0
      %v1153 = vadd.f32 %v1151, %v1152
      %v1154 = vsel %vm1071, %v1060, 0.0
      %v1155 = vadd.f32 %v1153, %v1154
      %v1156 = vsel %vm1071, %v1062, 0.0
      %v1157 = vadd.f32 %v1155, %v1156
      %v1158 = vsel %vm1071, %v1064, 0.0
      %v1159 = vadd.f32 %v1157, %v1158
      %v1160 = vsel %vm1071, %v1066, 0.0
      %v1161 = vadd.f32 %v1159, %v1160
      %v1162 = vsel %vm1071, %v1068, 0.0
      %v1163 = vadd.f32 %v1161, %v1162
      %v1164 = vsel %vm1071, %v1070, 0.0
      %v1165 = vadd.f32 %v1163, %v1164
      %v1166 = vsel %vm1071, %v1134, 0.0
      %v1167 = vsel %vm1071, %v1165, 0.0
      %v1168 = vadd.f32 %v1166, %v1167
      %v1169 = vrot.slane %v1168, 4
      %v1170 = vadd.f32 %v1168, %v1169
      %v1171 = vrot.slane %v1170, 2
      %v1172 = vadd.f32 %v1170, %v1171
      %v1173 = vrot.slane %v1172, 1
      %v1174 = vadd.f32 %v1172, %v1173
      %vm1175 = vcmask 24576
      %1176 = vst.msk [vmem:[%s238] sm:$0x1] %vm1175, %v1174
      %v1177 = vmul.f32 %v1039, %v1039
      %v1178 = vmul.f32 %v1040, %v1040
      %v1179 = vmul.f32 %v1041, %v1041
      %v1180 = vmul.f32 %v1042, %v1042
      %v1181 = vmul.f32 %v1043, %v1043
      %v1182 = vmul.f32 %v1044, %v1044
      %v1183 = vmul.f32 %v1045, %v1045
      %v1184 = vmul.f32 %v1046, %v1046
      %v1185 = vmul.f32 %v1047, %v1047
      %v1186 = vmul.f32 %v1048, %v1048
      %v1187 = vmul.f32 %v1049, %v1049
      %v1188 = vmul.f32 %v1050, %v1050
      %v1189 = vmul.f32 %v1051, %v1051
      %v1190 = vmul.f32 %v1052, %v1052
      %v1191 = vmul.f32 %v1053, %v1053
      %v1192 = vmul.f32 %v1054, %v1054
      %v1193 = vmul.f32 %v1055, %v1055
      %v1194 = vmul.f32 %v1056, %v1056
      %v1195 = vmul.f32 %v1057, %v1057
      %v1196 = vmul.f32 %v1058, %v1058
      %v1197 = vmul.f32 %v1059, %v1059
      %v1198 = vmul.f32 %v1060, %v1060
      %v1199 = vmul.f32 %v1061, %v1061
      %v1200 = vmul.f32 %v1062, %v1062
      %v1201 = vmul.f32 %v1063, %v1063
      %v1202 = vmul.f32 %v1064, %v1064
      %v1203 = vmul.f32 %v1065, %v1065
      %v1204 = vmul.f32 %v1066, %v1066
      %v1205 = vmul.f32 %v1067, %v1067
      %v1206 = vmul.f32 %v1068, %v1068
      %v1207 = vmul.f32 %v1069, %v1069
      %v1208 = vmul.f32 %v1070, %v1070
      %v1209 = vsel %vm1071, %v1177, 0.0
      %v1210 = vsel %vm1071, %v1179, 0.0
      %v1211 = vadd.f32 %v1209, %v1210
      %v1212 = vsel %vm1071, %v1181, 0.0
      %v1213 = vadd.f32 %v1211, %v1212
      %v1214 = vsel %vm1071, %v1183, 0.0
      %v1215 = vadd.f32 %v1213, %v1214
      %v1216 = vsel %vm1071, %v1185, 0.0
      %v1217 = vadd.f32 %v1215, %v1216
      %v1218 = vsel %vm1071, %v1187, 0.0
      %v1219 = vadd.f32 %v1217, %v1218
      %v1220 = vsel %vm1071, %v1189, 0.0
      %v1221 = vadd.f32 %v1219, %v1220
      %v1222 = vsel %vm1071, %v1191, 0.0
      %v1223 = vadd.f32 %v1221, %v1222
      %v1224 = vsel %vm1071, %v1193, 0.0
      %v1225 = vadd.f32 %v1223, %v1224
      %v1226 = vsel %vm1071, %v1195, 0.0
      %v1227 = vadd.f32 %v1225, %v1226
      %v1228 = vsel %vm1071, %v1197, 0.0
      %v1229 = vadd.f32 %v1227, %v1228
      %v1230 = vsel %vm1071, %v1199, 0.0
      %v1231 = vadd.f32 %v1229, %v1230
      %v1232 = vsel %vm1071, %v1201, 0.0
      %v1233 = vadd.f32 %v1231, %v1232
      %v1234 = vsel %vm1071, %v1203, 0.0
      %v1235 = vadd.f32 %v1233, %v1234
      %v1236 = vsel %vm1071, %v1205, 0.0
      %v1237 = vadd.f32 %v1235, %v1236
      %v1238 = vsel %vm1071, %v1207, 0.0
      %v1239 = vadd.f32 %v1237, %v1238
      %v1240 = vsel %vm1071, %v1178, 0.0
      %v1241 = vsel %vm1071, %v1180, 0.0
      %v1242 = vadd.f32 %v1240, %v1241
      %v1243 = vsel %vm1071, %v1182, 0.0
      %v1244 = vadd.f32 %v1242, %v1243
      %v1245 = vsel %vm1071, %v1184, 0.0
      %v1246 = vadd.f32 %v1244, %v1245
      %v1247 = vsel %vm1071, %v1186, 0.0
      %v1248 = vadd.f32 %v1246, %v1247
      %v1249 = vsel %vm1071, %v1188, 0.0
      %v1250 = vadd.f32 %v1248, %v1249
      %v1251 = vsel %vm1071, %v1190, 0.0
      %v1252 = vadd.f32 %v1250, %v1251
      %v1253 = vsel %vm1071, %v1192, 0.0
      %v1254 = vadd.f32 %v1252, %v1253
      %v1255 = vsel %vm1071, %v1194, 0.0
      %v1256 = vadd.f32 %v1254, %v1255
      %v1257 = vsel %vm1071, %v1196, 0.0
      %v1258 = vadd.f32 %v1256, %v1257
      %v1259 = vsel %vm1071, %v1198, 0.0
      %v1260 = vadd.f32 %v1258, %v1259
      %v1261 = vsel %vm1071, %v1200, 0.0
      %v1262 = vadd.f32 %v1260, %v1261
      %v1263 = vsel %vm1071, %v1202, 0.0
      %v1264 = vadd.f32 %v1262, %v1263
      %v1265 = vsel %vm1071, %v1204, 0.0
      %v1266 = vadd.f32 %v1264, %v1265
      %v1267 = vsel %vm1071, %v1206, 0.0
      %v1268 = vadd.f32 %v1266, %v1267
      %v1269 = vsel %vm1071, %v1208, 0.0
      %v1270 = vadd.f32 %v1268, %v1269
      %v1271 = vsel %vm1071, %v1239, 0.0
      %v1272 = vsel %vm1071, %v1270, 0.0
      %v1273 = vadd.f32 %v1271, %v1272
      %v1274 = vrot.slane %v1273, 4
      %v1275 = vadd.f32 %v1273, %v1274
      %v1276 = vrot.slane %v1275, 2
      %v1277 = vadd.f32 %v1275, %v1276
      %v1278 = vrot.slane %v1277, 1
      %v1279 = vadd.f32 %v1277, %v1278
      %1280 = vst.msk [vmem:[%s241] sm:$0x1] %vm1175, %v1279
      %p1281 = scmp.lt.s32.totalorder %s17, 1
      %s1282 = scalar_select %p1281, %s17, 1
      %s1283 = smul.addr %s1282, 32
      %s1284 = smul.addr %s1283, 8
      %s1285 = scalar_lea.vmem %s3, %s1284
      %p1286 = scmp.lt.s32.totalorder %s17, 1
      %s1287 = scalar_select %p1286, %s17, 1
      %s1288 = scalar_lea.vmem %s4, %s1287
      %p1289 = scmp.lt.s32.totalorder %s17, 1
      %s1290 = scalar_select %p1289, %s17, 1
      %s1291 = scalar_lea.vmem %s5, %s1290
      // Predicated region
      $region33: #{conv_encoder.2} parent=31 // pred_check
        %p1292 = pneg %p103
      $region34: #{conv_encoder.2} parent=31 // pred_check_branch
        %1294 = sbr.rel (%p1292) target = $region36
      $region35: #{conv_encoder.2} parent=31 // pred_region
        _
      $region36: #{conv_encoder.2} parent=31 // pred_fallthru
        _
      // Predicated region
      $region37: #{conv_encoder.2} parent=31 // pred_check
        %p1295 = pneg %p129
      $region38: #{conv_encoder.2} parent=31 // pred_check_branch
        %1297 = sbr.rel (%p1295) target = $region40
      $region39: #{conv_encoder.2} parent=31 // pred_region
        _
      $region40: #{conv_encoder.2} parent=31 // pred_fallthru
        _
      // Predicated region
      $region41: #{conv_encoder.2} parent=31 // pred_check
        %p1298 = pneg %p155
      $region42: #{conv_encoder.2} parent=31 // pred_check_branch
        %1300 = sbr.rel (%p1298) target = $region44
      $region43: #{conv_encoder.2} parent=31 // pred_region
        _
      $region44: #{conv_encoder.2} parent=31 // pred_fallthru
        _
    $region32: #{conv_encoder.2} parent=5 // pred_fallthru
      _
    %p1301 = scmp.le.s32.totalorder 2, %s12
    // Predicated region
    $region45: #{conv_encoder.2} parent=5 // pred_check
      %p1302 = pneg %p1301
    $region46: #{conv_encoder.2} parent=5 // pred_check_branch
      %1304 = sbr.rel (%p1302) target = $region48
    $region47: #{conv_encoder.2} parent=5 // pred_region
      %s1305 = ssub.s32 %s12, 2
      // Predicated region
      $region49: #{conv_encoder.2} parent=47 // pred_check
        %p1306 = pneg %p109
      $region50: #{conv_encoder.2} parent=47 // pred_check_branch
        %1308 = sbr.rel (%p1306) target = $region52
      $region51: #{conv_encoder.2} parent=47 // pred_region
        %p1309 = scmp.lt.s32.totalorder %s18, 1
        %s1310 = scalar_select %p1309, %s18, 1
        %s1311 = smul.addr %s1310, 32
        %s1312 = smul.addr %s1311, 8
        %s1313 = scalar_lea.vmem %s3, %s1312
      $region52: #{conv_encoder.2} parent=47 // pred_fallthru
        _
      // Predicated region
      $region53: #{conv_encoder.2} parent=47 // pred_check
        %p1314 = pneg %p135
      $region54: #{conv_encoder.2} parent=47 // pred_check_branch
        %1316 = sbr.rel (%p1314) target = $region56
      $region55: #{conv_encoder.2} parent=47 // pred_region
        %p1317 = scmp.lt.s32.totalorder %s18, 1
        %s1318 = scalar_select %p1317, %s18, 1
        %s1319 = scalar_lea.vmem %s4, %s1318
      $region56: #{conv_encoder.2} parent=47 // pred_fallthru
        _
      // Predicated region
      $region57: #{conv_encoder.2} parent=47 // pred_check
        %p1320 = pneg %p161
      $region58: #{conv_encoder.2} parent=47 // pred_check_branch
        %1322 = sbr.rel (%p1320) target = $region60
      $region59: #{conv_encoder.2} parent=47 // pred_region
        %p1323 = scmp.lt.s32.totalorder %s18, 1
        %s1324 = scalar_select %p1323, %s18, 1
        %s1325 = scalar_lea.vmem %s5, %s1324
      $region60: #{conv_encoder.2} parent=47 // pred_fallthru
        _
    $region48: #{conv_encoder.2} parent=5 // pred_fallthru
      _
  $region6: #{conv_encoder.2} parent=0 // loop_footer
    %s16 = sadd.s32 1, %s12
  $region7: #{conv_encoder.2} parent=0 // loop_footer_branch
    %11 = sbr.rel target = $region3
  $region8: #{conv_encoder.2} parent=0 // loop_exit
    _

// kernel: conv_encoder.3
$region0: #{conv_encoder.3}
  #allocation0 [shape = 'u32[]', space=smem, size = 0x4, offset = 0x4, fixed_abs, tag = 'smem constant byte address 0x4 - core index']
  #allocation1 [shape = 'u32[72,128]{1,0:T(1,128)}', space=vmem, size = 0x9000, scoped, tag = 'internal scratch']
  %s0 = inlined_call_operand.vmem [shape: f32[512,4], index: 0, kind: input, shape index: {}]
  %s1 = inlined_call_operand.vmem [shape: f32[512,4], index: 1, kind: input, shape index: {}]
  %s2 = inlined_call_operand.vmem [shape: f32[4,128], index: 2, kind: input, shape index: {}]
  %s3 = inlined_call_operand.vmem [shape: f32[1,128], index: 3, kind: input, shape index: {}]
  %s4 = inlined_call_operand.vmem [shape: f32[128,128], index: 4, kind: input, shape index: {}]
  %s5 = inlined_call_operand.vmem [shape: f32[1,128], index: 5, kind: input, shape index: {}]
  %s6 = inlined_call_operand.vmem [shape: f32[512,128], index: 6, kind: output, shape index: {}]
  %s7 = sld [smem:[#allocation0]]
  $region34: #{conv_encoder.3} parent=0
    _
  %s9 = ssub.s32 1, %s7
  %s10 = scalar_select 0, %s9, %s7
  // Predicated region
  $region2: #{conv_encoder.3} parent=0 // pred_check
    _
  $region3: #{conv_encoder.3} parent=0 // pred_check_branch
    %12 = sbr.rel (0) target = $region5
  $region4: #{conv_encoder.3} parent=0 // pred_region
    _
  $region5: #{conv_encoder.3} parent=0 // pred_fallthru
    _
  // Predicated region
  $region6: #{conv_encoder.3} parent=0 // pred_check
    _
  $region7: #{conv_encoder.3} parent=0 // pred_check_branch
    %14 = sbr.rel (0) target = $region9
  $region8: #{conv_encoder.3} parent=0 // pred_region
    _
  $region9: #{conv_encoder.3} parent=0 // pred_fallthru
    _
  // Predicated region
  $region10: #{conv_encoder.3} parent=0 // pred_check
    _
  $region11: #{conv_encoder.3} parent=0 // pred_check_branch
    %16 = sbr.rel (0) target = $region13
  $region12: #{conv_encoder.3} parent=0 // pred_region
    _
  $region13: #{conv_encoder.3} parent=0 // pred_fallthru
    _
  // Predicated region
  $region14: #{conv_encoder.3} parent=0 // pred_check
    _
  $region15: #{conv_encoder.3} parent=0 // pred_check_branch
    %18 = sbr.rel (0) target = $region17
  $region16: #{conv_encoder.3} parent=0 // pred_region
    _
  $region17: #{conv_encoder.3} parent=0 // pred_fallthru
    _
  // Predicated region
  $region18: #{conv_encoder.3} parent=0 // pred_check
    _
  $region19: #{conv_encoder.3} parent=0 // pred_check_branch
    %20 = sbr.rel (0) target = $region21
  $region20: #{conv_encoder.3} parent=0 // pred_region
    _
  $region21: #{conv_encoder.3} parent=0 // pred_fallthru
    _
  // Predicated region
  $region22: #{conv_encoder.3} parent=0 // pred_check
    _
  $region23: #{conv_encoder.3} parent=0 // pred_check_branch
    %22 = sbr.rel (0) target = $region25
  $region24: #{conv_encoder.3} parent=0 // pred_region
    _
  $region25: #{conv_encoder.3} parent=0 // pred_fallthru
    _
  %v23 = vld [vmem:[%s0] sm:$0xff]
  %v24 = vld [vmem:[%s0 + $0x8] sm:$0xff]
  %v25 = vld [vmem:[%s0 + $0x10] sm:$0xff]
  %v26 = vld [vmem:[%s0 + $0x18] sm:$0xff]
  %v27 = vld [vmem:[%s0 + $0x20] sm:$0xff]
  %v28 = vld [vmem:[%s0 + $0x28] sm:$0xff]
  %v29 = vld [vmem:[%s0 + $0x30] sm:$0xff]
  %v30 = vld [vmem:[%s0 + $0x38] sm:$0xff]
  %v31 = vld [vmem:[%s0 + $0x40] sm:$0xff]
  %v32 = vld [vmem:[%s0 + $0x48] sm:$0xff]
  %v33 = vld [vmem:[%s0 + $0x50] sm:$0xff]
  %v34 = vld [vmem:[%s0 + $0x58] sm:$0xff]
  %v35 = vld [vmem:[%s0 + $0x60] sm:$0xff]
  %v36 = vld [vmem:[%s0 + $0x68] sm:$0xff]
  %v37 = vld [vmem:[%s0 + $0x70] sm:$0xff]
  %v38 = vld [vmem:[%s0 + $0x78] sm:$0xff]
  %v39 = vld [vmem:[%s0 + $0x80] sm:$0xff]
  %v40 = vld [vmem:[%s0 + $0x88] sm:$0xff]
  %v41 = vld [vmem:[%s0 + $0x90] sm:$0xff]
  %v42 = vld [vmem:[%s0 + $0x98] sm:$0xff]
  %v43 = vld [vmem:[%s0 + $0xa0] sm:$0xff]
  %v44 = vld [vmem:[%s0 + $0xa8] sm:$0xff]
  %v45 = vld [vmem:[%s0 + $0xb0] sm:$0xff]
  %v46 = vld [vmem:[%s0 + $0xb8] sm:$0xff]
  %v47 = vld [vmem:[%s0 + $0xc0] sm:$0xff]
  %v48 = vld [vmem:[%s0 + $0xc8] sm:$0xff]
  %v49 = vld [vmem:[%s0 + $0xd0] sm:$0xff]
  %v50 = vld [vmem:[%s0 + $0xd8] sm:$0xff]
  %v51 = vld [vmem:[%s0 + $0xe0] sm:$0xff]
  %v52 = vld [vmem:[%s0 + $0xe8] sm:$0xff]
  %v53 = vld [vmem:[%s0 + $0xf0] sm:$0xff]
  %v54 = vld [vmem:[%s0 + $0xf8] sm:$0xff]
  %v55 = vld [vmem:[%s0 + $0x100] sm:$0xff]
  %v56 = vld [vmem:[%s0 + $0x108] sm:$0xff]
  %v57 = vld [vmem:[%s0 + $0x110] sm:$0xff]
  %v58 = vld [vmem:[%s0 + $0x118] sm:$0xff]
  %v59 = vld [vmem:[%s0 + $0x120] sm:$0xff]
  %v60 = vld [vmem:[%s0 + $0x128] sm:$0xff]
  %v61 = vld [vmem:[%s0 + $0x130] sm:$0xff]
  %v62 = vld [vmem:[%s0 + $0x138] sm:$0xff]
  %v63 = vld [vmem:[%s0 + $0x140] sm:$0xff]
  %v64 = vld [vmem:[%s0 + $0x148] sm:$0xff]
  %v65 = vld [vmem:[%s0 + $0x150] sm:$0xff]
  %v66 = vld [vmem:[%s0 + $0x158] sm:$0xff]
  %v67 = vld [vmem:[%s0 + $0x160] sm:$0xff]
  %v68 = vld [vmem:[%s0 + $0x168] sm:$0xff]
  %v69 = vld [vmem:[%s0 + $0x170] sm:$0xff]
  %v70 = vld [vmem:[%s0 + $0x178] sm:$0xff]
  %v71 = vld [vmem:[%s0 + $0x180] sm:$0xff]
  %v72 = vld [vmem:[%s0 + $0x188] sm:$0xff]
  %v73 = vld [vmem:[%s0 + $0x190] sm:$0xff]
  %v74 = vld [vmem:[%s0 + $0x198] sm:$0xff]
  %v75 = vld [vmem:[%s0 + $0x1a0] sm:$0xff]
  %v76 = vld [vmem:[%s0 + $0x1a8] sm:$0xff]
  %v77 = vld [vmem:[%s0 + $0x1b0] sm:$0xff]
  %v78 = vld [vmem:[%s0 + $0x1b8] sm:$0xff]
  %v79 = vld [vmem:[%s0 + $0x1c0] sm:$0xff]
  %v80 = vld [vmem:[%s0 + $0x1c8] sm:$0xff]
  %v81 = vld [vmem:[%s0 + $0x1d0] sm:$0xff]
  %v82 = vld [vmem:[%s0 + $0x1d8] sm:$0xff]
  %v83 = vld [vmem:[%s0 + $0x1e0] sm:$0xff]
  %v84 = vld [vmem:[%s0 + $0x1e8] sm:$0xff]
  %v85 = vld [vmem:[%s0 + $0x1f0] sm:$0xff]
  %v86 = vld [vmem:[%s0 + $0x1f8] sm:$0xff]
  %v87 = vld [vmem:[%s2] sm:$0xf]
  %v88 = vld [vmem:[%s3] sm:$0x1]
  %v90 = vperm.slane %v88, 0
  %vm92 = vcmask 31744
  %v94 = vsel %vm92, %v23, 0
  %v97 = vsel %vm92, %v24, 0
  %v100 = vsel %vm92, %v25, 0
  %v103 = vsel %vm92, %v26, 0
  %v106 = vsel %vm92, %v27, 0
  %v109 = vsel %vm92, %v28, 0
  %v112 = vsel %vm92, %v29, 0
  %v115 = vsel %vm92, %v30, 0
  %v118 = vsel %vm92, %v31, 0
  %v121 = vsel %vm92, %v32, 0
  %v124 = vsel %vm92, %v33, 0
  %v127 = vsel %vm92, %v34, 0
  %v130 = vsel %vm92, %v35, 0
  %v133 = vsel %vm92, %v36, 0
  %v136 = vsel %vm92, %v37, 0
  %v139 = vsel %vm92, %v38, 0
  %v142 = vsel %vm92, %v39, 0
  %v145 = vsel %vm92, %v40, 0
  %v148 = vsel %vm92, %v41, 0
  %v151 = vsel %vm92, %v42, 0
  %v154 = vsel %vm92, %v43, 0
  %v157 = vsel %vm92, %v44, 0
  %v160 = vsel %vm92, %v45, 0
  %v163 = vsel %vm92, %v46, 0
  %v166 = vsel %vm92, %v47, 0
  %v169 = vsel %vm92, %v48, 0
  %v172 = vsel %vm92, %v49, 0
  %v175 = vsel %vm92, %v50, 0
  %v178 = vsel %vm92, %v51, 0
  %v181 = vsel %vm92, %v52, 0
  %v184 = vsel %vm92, %v53, 0
  %v187 = vsel %vm92, %v54, 0
  %v190 = vsel %vm92, %v55, 0
  %v193 = vsel %vm92, %v56, 0
  %v196 = vsel %vm92, %v57, 0
  %v199 = vsel %vm92, %v58, 0
  %v202 = vsel %vm92, %v59, 0
  %v205 = vsel %vm92, %v60, 0
  %v208 = vsel %vm92, %v61, 0
  %v211 = vsel %vm92, %v62, 0
  %v214 = vsel %vm92, %v63, 0
  %v217 = vsel %vm92, %v64, 0
  %v220 = vsel %vm92, %v65, 0
  %v223 = vsel %vm92, %v66, 0
  %v226 = vsel %vm92, %v67, 0
  %v229 = vsel %vm92, %v68, 0
  %v232 = vsel %vm92, %v69, 0
  %v235 = vsel %vm92, %v70, 0
  %v238 = vsel %vm92, %v71, 0
  %v241 = vsel %vm92, %v72, 0
  %v244 = vsel %vm92, %v73, 0
  %v247 = vsel %vm92, %v74, 0
  %v250 = vsel %vm92, %v75, 0
  %v253 = vsel %vm92, %v76, 0
  %v256 = vsel %vm92, %v77, 0
  %v259 = vsel %vm92, %v78, 0
  %v262 = vsel %vm92, %v79, 0
  %v265 = vsel %vm92, %v80, 0
  %v268 = vsel %vm92, %v81, 0
  %v271 = vsel %vm92, %v82, 0
  %v274 = vsel %vm92, %v83, 0
  %v277 = vsel %vm92, %v84, 0
  %v280 = vsel %vm92, %v85, 0
  %v283 = vsel %vm92, %v86, 0
  %vm285 = vcmask 1043456
  %v287 = vsel %vm285, %v87, 0
  %289 = vmatpush.msra.mxu0 0.0
  %290 = vmatpush.msra.mxu0 0.0
  %291 = vmatpush.msra.mxu0 0.0
  %292 = vmatpush.msra.mxu0 0.0
  %293 = vmatpush.msra.mxu0 0.0
  %294 = vmatpush.msra.mxu0 0.0
  %295 = vmatpush.msra.mxu0 0.0
  %296 = vmatpush.msra.mxu0 0.0
  %297 = vmatpush.msra.mxu0 0.0
  %298 = vmatpush.msra.mxu0 0.0
  %299 = vmatpush.msra.mxu0 0.0
  %300 = vmatpush.msra.mxu0 0.0
  %301 = vmatpush.msra.mxu0 0.0
  %302 = vmatpush.msra.mxu0 0.0
  %303 = vmatpush.msra.mxu0 0.0
  %304 = vmatpush.msra.mxu0 %v287
  %305 = vmatmul.f32.gmra.mxu0 %v94
  %v306 = vpop.f32.mrf.mxu0
  %v307 = vadd.f32 %v90, %v306
  %308 = vmatmul.f32.gmra.mxu0 %v97
  %v309 = vpop.f32.mrf.mxu0
  %v310 = vadd.f32 %v90, %v309
  %311 = vmatmul.f32.gmra.mxu0 %v100
  %v312 = vpop.f32.mrf.mxu0
  %v313 = vadd.f32 %v90, %v312
  %314 = vmatmul.f32.gmra.mxu0 %v103
  %v315 = vpop.f32.mrf.mxu0
  %v316 = vadd.f32 %v90, %v315
  %317 = vmatmul.f32.gmra.mxu0 %v106
  %v318 = vpop.f32.mrf.mxu0
  %v319 = vadd.f32 %v90, %v318
  %320 = vmatmul.f32.gmra.mxu0 %v109
  %v321 = vpop.f32.mrf.mxu0
  %v322 = vadd.f32 %v90, %v321
  %323 = vmatmul.f32.gmra.mxu0 %v112
  %v324 = vpop.f32.mrf.mxu0
  %v325 = vadd.f32 %v90, %v324
  %326 = vmatmul.f32.gmra.mxu0 %v115
  %v327 = vpop.f32.mrf.mxu0
  %v328 = vadd.f32 %v90, %v327
  %329 = vmatmul.f32.gmra.mxu0 %v118
  %v330 = vpop.f32.mrf.mxu0
  %v331 = vadd.f32 %v90, %v330
  %332 = vmatmul.f32.gmra.mxu0 %v121
  %v333 = vpop.f32.mrf.mxu0
  %v334 = vadd.f32 %v90, %v333
  %335 = vmatmul.f32.gmra.mxu0 %v124
  %v336 = vpop.f32.mrf.mxu0
  %v337 = vadd.f32 %v90, %v336
  %338 = vmatmul.f32.gmra.mxu0 %v127
  %v339 = vpop.f32.mrf.mxu0
  %v340 = vadd.f32 %v90, %v339
  %341 = vmatmul.f32.gmra.mxu0 %v130
  %v342 = vpop.f32.mrf.mxu0
  %v343 = vadd.f32 %v90, %v342
  %344 = vmatmul.f32.gmra.mxu0 %v133
  %v345 = vpop.f32.mrf.mxu0
  %v346 = vadd.f32 %v90, %v345
  %347 = vmatmul.f32.gmra.mxu0 %v136
  %v348 = vpop.f32.mrf.mxu0
  %v349 = vadd.f32 %v90, %v348
  %350 = vmatmul.f32.gmra.mxu0 %v139
  %v351 = vpop.f32.mrf.mxu0
  %v352 = vadd.f32 %v90, %v351
  %353 = vmatmul.f32.gmra.mxu0 %v142
  %v354 = vpop.f32.mrf.mxu0
  %v355 = vadd.f32 %v90, %v354
  %356 = vmatmul.f32.gmra.mxu0 %v145
  %v357 = vpop.f32.mrf.mxu0
  %v358 = vadd.f32 %v90, %v357
  %359 = vmatmul.f32.gmra.mxu0 %v148
  %v360 = vpop.f32.mrf.mxu0
  %v361 = vadd.f32 %v90, %v360
  %362 = vmatmul.f32.gmra.mxu0 %v151
  %v363 = vpop.f32.mrf.mxu0
  %v364 = vadd.f32 %v90, %v363
  %365 = vmatmul.f32.gmra.mxu0 %v154
  %v366 = vpop.f32.mrf.mxu0
  %v367 = vadd.f32 %v90, %v366
  %368 = vmatmul.f32.gmra.mxu0 %v157
  %v369 = vpop.f32.mrf.mxu0
  %v370 = vadd.f32 %v90, %v369
  %371 = vmatmul.f32.gmra.mxu0 %v160
  %v372 = vpop.f32.mrf.mxu0
  %v373 = vadd.f32 %v90, %v372
  %374 = vmatmul.f32.gmra.mxu0 %v163
  %v375 = vpop.f32.mrf.mxu0
  %v376 = vadd.f32 %v90, %v375
  %377 = vmatmul.f32.gmra.mxu0 %v166
  %v378 = vpop.f32.mrf.mxu0
  %v379 = vadd.f32 %v90, %v378
  %380 = vmatmul.f32.gmra.mxu0 %v169
  %v381 = vpop.f32.mrf.mxu0
  %v382 = vadd.f32 %v90, %v381
  %383 = vmatmul.f32.gmra.mxu0 %v172
  %v384 = vpop.f32.mrf.mxu0
  %v385 = vadd.f32 %v90, %v384
  %386 = vmatmul.f32.gmra.mxu0 %v175
  %v387 = vpop.f32.mrf.mxu0
  %v388 = vadd.f32 %v90, %v387
  %389 = vmatmul.f32.gmra.mxu0 %v178
  %v390 = vpop.f32.mrf.mxu0
  %v391 = vadd.f32 %v90, %v390
  %392 = vmatmul.f32.gmra.mxu0 %v181
  %v393 = vpop.f32.mrf.mxu0
  %v394 = vadd.f32 %v90, %v393
  %395 = vmatmul.f32.gmra.mxu0 %v184
  %v396 = vpop.f32.mrf.mxu0
  %v397 = vadd.f32 %v90, %v396
  %398 = vmatmul.f32.gmra.mxu0 %v187
  %v399 = vpop.f32.mrf.mxu0
  %v400 = vadd.f32 %v90, %v399
  %401 = vmatmul.f32.gmra.mxu0 %v190
  %v402 = vpop.f32.mrf.mxu0
  %v403 = vadd.f32 %v90, %v402
  %404 = vmatmul.f32.gmra.mxu0 %v193
  %v405 = vpop.f32.mrf.mxu0
  %v406 = vadd.f32 %v90, %v405
  %407 = vmatmul.f32.gmra.mxu0 %v196
  %v408 = vpop.f32.mrf.mxu0
  %v409 = vadd.f32 %v90, %v408
  %410 = vmatmul.f32.gmra.mxu0 %v199
  %v411 = vpop.f32.mrf.mxu0
  %v412 = vadd.f32 %v90, %v411
  %413 = vmatmul.f32.gmra.mxu0 %v202
  %v414 = vpop.f32.mrf.mxu0
  %v415 = vadd.f32 %v90, %v414
  %416 = vmatmul.f32.gmra.mxu0 %v205
  %v417 = vpop.f32.mrf.mxu0
  %v418 = vadd.f32 %v90, %v417
  %419 = vmatmul.f32.gmra.mxu0 %v208
  %v420 = vpop.f32.mrf.mxu0
  %v421 = vadd.f32 %v90, %v420
  %422 = vmatmul.f32.gmra.mxu0 %v211
  %v423 = vpop.f32.mrf.mxu0
  %v424 = vadd.f32 %v90, %v423
  %425 = vmatmul.f32.gmra.mxu0 %v214
  %v426 = vpop.f32.mrf.mxu0
  %v427 = vadd.f32 %v90, %v426
  %428 = vmatmul.f32.gmra.mxu0 %v217
  %v429 = vpop.f32.mrf.mxu0
  %v430 = vadd.f32 %v90, %v429
  %431 = vmatmul.f32.gmra.mxu0 %v220
  %v432 = vpop.f32.mrf.mxu0
  %v433 = vadd.f32 %v90, %v432
  %434 = vmatmul.f32.gmra.mxu0 %v223
  %v435 = vpop.f32.mrf.mxu0
  %v436 = vadd.f32 %v90, %v435
  %437 = vmatmul.f32.gmra.mxu0 %v226
  %v438 = vpop.f32.mrf.mxu0
  %v439 = vadd.f32 %v90, %v438
  %440 = vmatmul.f32.gmra.mxu0 %v229
  %v441 = vpop.f32.mrf.mxu0
  %v442 = vadd.f32 %v90, %v441
  %443 = vmatmul.f32.gmra.mxu0 %v232
  %v444 = vpop.f32.mrf.mxu0
  %v445 = vadd.f32 %v90, %v444
  %446 = vmatmul.f32.gmra.mxu0 %v235
  %v447 = vpop.f32.mrf.mxu0
  %v448 = vadd.f32 %v90, %v447
  %449 = vmatmul.f32.gmra.mxu0 %v238
  %v450 = vpop.f32.mrf.mxu0
  %v451 = vadd.f32 %v90, %v450
  %452 = vmatmul.f32.gmra.mxu0 %v241
  %v453 = vpop.f32.mrf.mxu0
  %v454 = vadd.f32 %v90, %v453
  %455 = vmatmul.f32.gmra.mxu0 %v244
  %v456 = vpop.f32.mrf.mxu0
  %v457 = vadd.f32 %v90, %v456
  %458 = vmatmul.f32.gmra.mxu0 %v247
  %v459 = vpop.f32.mrf.mxu0
  %v460 = vadd.f32 %v90, %v459
  %461 = vmatmul.f32.gmra.mxu0 %v250
  %v462 = vpop.f32.mrf.mxu0
  %v463 = vadd.f32 %v90, %v462
  %464 = vmatmul.f32.gmra.mxu0 %v253
  %v465 = vpop.f32.mrf.mxu0
  %v466 = vadd.f32 %v90, %v465
  %467 = vmatmul.f32.gmra.mxu0 %v256
  %v468 = vpop.f32.mrf.mxu0
  %v469 = vadd.f32 %v90, %v468
  %470 = vmatmul.f32.gmra.mxu0 %v259
  %v471 = vpop.f32.mrf.mxu0
  %v472 = vadd.f32 %v90, %v471
  %473 = vmatmul.f32.gmra.mxu0 %v262
  %v474 = vpop.f32.mrf.mxu0
  %v475 = vadd.f32 %v90, %v474
  %476 = vmatmul.f32.gmra.mxu0 %v265
  %v477 = vpop.f32.mrf.mxu0
  %v478 = vadd.f32 %v90, %v477
  %479 = vmatmul.f32.gmra.mxu0 %v268
  %v480 = vpop.f32.mrf.mxu0
  %v481 = vadd.f32 %v90, %v480
  %482 = vmatmul.f32.gmra.mxu0 %v271
  %v483 = vpop.f32.mrf.mxu0
  %v484 = vadd.f32 %v90, %v483
  %485 = vmatmul.f32.gmra.mxu0 %v274
  %v486 = vpop.f32.mrf.mxu0
  %v487 = vadd.f32 %v90, %v486
  %488 = vmatmul.f32.gmra.mxu0 %v277
  %v489 = vpop.f32.mrf.mxu0
  %v490 = vadd.f32 %v90, %v489
  %491 = vmatmul.f32.gmra.mxu0 %v280
  %v492 = vpop.f32.mrf.mxu0
  %v493 = vadd.f32 %v90, %v492
  %494 = vmatmul.f32.gmra.mxu0 %v283
  %v495 = vpop.f32.mrf.mxu0
  %v496 = vadd.f32 %v90, %v495
  %497 = vdwg.mxu0
  %v498 = vmul.f32 %v307, 0.5
  %v499 = vmul.f32 %v310, 0.5
  %v500 = vmul.f32 %v313, 0.5
  %v501 = vmul.f32 %v316, 0.5
  %v502 = vmul.f32 %v319, 0.5
  %v503 = vmul.f32 %v322, 0.5
  %v504 = vmul.f32 %v325, 0.5
  %v505 = vmul.f32 %v328, 0.5
  %v506 = vmul.f32 %v331, 0.5
  %v507 = vmul.f32 %v334, 0.5
  %v508 = vmul.f32 %v337, 0.5
  %v509 = vmul.f32 %v340, 0.5
  %v510 = vmul.f32 %v343, 0.5
  %v511 = vmul.f32 %v346, 0.5
  %v512 = vmul.f32 %v349, 0.5
  %v513 = vmul.f32 %v352, 0.5
  %v514 = vmul.f32 %v355, 0.5
  %v515 = vmul.f32 %v358, 0.5
  %v516 = vmul.f32 %v361, 0.5
  %v517 = vmul.f32 %v364, 0.5
  %v518 = vmul.f32 %v367, 0.5
  %v519 = vmul.f32 %v370, 0.5
  %v520 = vmul.f32 %v373, 0.5
  %v521 = vmul.f32 %v376, 0.5
  %v522 = vmul.f32 %v379, 0.5
  %v523 = vmul.f32 %v382, 0.5
  %v524 = vmul.f32 %v385, 0.5
  %v525 = vmul.f32 %v388, 0.5
  %v526 = vmul.f32 %v391, 0.5
  %v527 = vmul.f32 %v394, 0.5
  %v528 = vmul.f32 %v397, 0.5
  %v529 = vmul.f32 %v400, 0.5
  %v530 = vmul.f32 %v403, 0.5
  %v531 = vmul.f32 %v406, 0.5
  %v532 = vmul.f32 %v409, 0.5
  %v533 = vmul.f32 %v412, 0.5
  %v534 = vmul.f32 %v415, 0.5
  %v535 = vmul.f32 %v418, 0.5
  %v536 = vmul.f32 %v421, 0.5
  %v537 = vmul.f32 %v424, 0.5
  %v538 = vmul.f32 %v427, 0.5
  %v539 = vmul.f32 %v430, 0.5
  %v540 = vmul.f32 %v433, 0.5
  %v541 = vmul.f32 %v436, 0.5
  %v542 = vmul.f32 %v439, 0.5
  %v543 = vmul.f32 %v442, 0.5
  %v544 = vmul.f32 %v445, 0.5
  %v545 = vmul.f32 %v448, 0.5
  %v546 = vmul.f32 %v451, 0.5
  %v547 = vmul.f32 %v454, 0.5
  %v548 = vmul.f32 %v457, 0.5
  %v549 = vmul.f32 %v460, 0.5
  %v550 = vmul.f32 %v463, 0.5
  %v551 = vmul.f32 %v466, 0.5
  %v552 = vmul.f32 %v469, 0.5
  %v553 = vmul.f32 %v472, 0.5
  %v554 = vmul.f32 %v475, 0.5
  %v555 = vmul.f32 %v478, 0.5
  %v556 = vmul.f32 %v481, 0.5
  %v557 = vmul.f32 %v484, 0.5
  %v558 = vmul.f32 %v487, 0.5
  %v559 = vmul.f32 %v490, 0.5
  %v560 = vmul.f32 %v493, 0.5
  %v561 = vmul.f32 %v496, 0.5
  %v562 = vmul.f32 %v307, 0.70710677
  %v563 = vmul.f32 %v310, 0.70710677
  %v564 = vmul.f32 %v313, 0.70710677
  %v565 = vmul.f32 %v316, 0.70710677
  %v566 = vmul.f32 %v319, 0.70710677
  %v567 = vmul.f32 %v322, 0.70710677
  %v568 = vmul.f32 %v325, 0.70710677
  %v569 = vmul.f32 %v328, 0.70710677
  %v570 = vmul.f32 %v331, 0.70710677
  %v571 = vmul.f32 %v334, 0.70710677
  %v572 = vmul.f32 %v337, 0.70710677
  %v573 = vmul.f32 %v340, 0.70710677
  %v574 = vmul.f32 %v343, 0.70710677
  %v575 = vmul.f32 %v346, 0.70710677
  %v576 = vmul.f32 %v349, 0.70710677
  %v577 = vmul.f32 %v352, 0.70710677
  %v578 = vmul.f32 %v355, 0.70710677
  %v579 = vmul.f32 %v358, 0.70710677
  %v580 = vmul.f32 %v361, 0.70710677
  %v581 = vmul.f32 %v364, 0.70710677
  %v582 = vmul.f32 %v367, 0.70710677
  %v583 = vmul.f32 %v370, 0.70710677
  %v584 = vmul.f32 %v373, 0.70710677
  %v585 = vmul.f32 %v376, 0.70710677
  %v586 = vmul.f32 %v379, 0.70710677
  %v587 = vmul.f32 %v382, 0.70710677
  %v588 = vmul.f32 %v385, 0.70710677
  %v589 = vmul.f32 %v388, 0.70710677
  %v590 = vmul.f32 %v391, 0.70710677
  %v591 = vmul.f32 %v394, 0.70710677
  %v592 = vmul.f32 %v397, 0.70710677
  %v593 = vmul.f32 %v400, 0.70710677
  %v594 = vmul.f32 %v403, 0.70710677
  %v595 = vmul.f32 %v406, 0.70710677
  %v596 = vmul.f32 %v409, 0.70710677
  %v597 = vmul.f32 %v412, 0.70710677
  %v598 = vmul.f32 %v415, 0.70710677
  %v599 = vmul.f32 %v418, 0.70710677
  %v600 = vmul.f32 %v421, 0.70710677
  %v601 = vmul.f32 %v424, 0.70710677
  %v602 = vmul.f32 %v427, 0.70710677
  %v603 = vmul.f32 %v430, 0.70710677
  %v604 = vmul.f32 %v433, 0.70710677
  %v605 = vmul.f32 %v436, 0.70710677
  %v606 = vmul.f32 %v439, 0.70710677
  %v607 = vmul.f32 %v442, 0.70710677
  %v608 = vmul.f32 %v445, 0.70710677
  %v609 = vmul.f32 %v448, 0.70710677
  %v610 = vmul.f32 %v451, 0.70710677
  %v611 = vmul.f32 %v454, 0.70710677
  %v612 = vmul.f32 %v457, 0.70710677
  %v613 = vmul.f32 %v460, 0.70710677
  %v614 = vmul.f32 %v463, 0.70710677
  %v615 = vmul.f32 %v466, 0.70710677
  %v616 = vmul.f32 %v469, 0.70710677
  %v617 = vmul.f32 %v472, 0.70710677
  %v618 = vmul.f32 %v475, 0.70710677
  %v619 = vmul.f32 %v478, 0.70710677
  %v620 = vmul.f32 %v481, 0.70710677
  %v621 = vmul.f32 %v484, 0.70710677
  %v622 = vmul.f32 %v487, 0.70710677
  %v623 = vmul.f32 %v490, 0.70710677
  %v624 = vmul.f32 %v493, 0.70710677
  %v625 = vmul.f32 %v496, 0.70710677
  %v626 = vmul.f32 %v562, %v562
  %v627 = vmin.f32 16.0, %v626
  %v628 = vmul.f32 %v627, 2.1237322e-06
  %v629 = vadd.f32 %v628, 0.00028619796
  %v630 = vmul.f32 %v627, %v629
  %v631 = vadd.f32 %v630, 0.0036580483
  %v632 = vmul.f32 %v627, %v631
  %v633 = vadd.f32 %v632, 0.05243302
  %v634 = vmul.f32 %v627, %v633
  %v635 = vadd.f32 %v634, 0.18741608
  %v636 = vmul.f32 %v627, %v635
  %v637 = vadd.f32 %v636, 1.1283791
  %v638 = vmul.f32 %v562, %v637
  %v639 = vmul.f32 %v627, 3.8918573e-05
  %v640 = vadd.f32 %v639, 0.001143296
  %v641 = vmul.f32 %v627, %v640
  %v642 = vadd.f32 %v641, 0.014752088
  %v643 = vmul.f32 %v627, %v642
  %v644 = vadd.f32 %v643, 0.112945676
  %v645 = vmul.f32 %v627, %v644
  %v646 = vadd.f32 %v645, 0.4994258
  %v647 = vmul.f32 %v627, %v646
  %v648 = vadd.f32 %v647, 1.0
  %v649 = vrcp.pop %v648
  %v650 = vmul.f32 %v648, %v649
  %v651 = vsub.f32 1.0, %v650
  %v652 = vmul.f32 %v649, %v651
  %v653 = vadd.f32 %v649, %v652
  %vm654 = vweird.f32 %v648
  %vm655 = vweird.f32 %v649
  %vm656 = vmor %vm654, %vm655
  %v657 = vsel %vm656, %v649, %v653
  %v658 = vand.u32 2147483647, %v648
  %vm659 = vcmp.eq.f32.partialorder %v658, 8.507059e+37
  %v660 = vand.u32 %v648, 2147483648
  %v661 = vor.u32 1.1754944e-38, %v660
  %v662 = vsel %vm659, %v661, %v657
  %v663 = vmul.f32 %v638, %v662
  %v664 = vmin.f32 %v663, 1.0
  %v665 = vmax.f32 %v664, -1.0
  %v666 = vmul.f32 %v563, %v563
  %v667 = vmin.f32 16.0, %v666
  %v668 = vmul.f32 %v667, 2.1237322e-06
  %v669 = vadd.f32 %v668, 0.00028619796
  %v670 = vmul.f32 %v667, %v669
  %v671 = vadd.f32 %v670, 0.0036580483
  %v672 = vmul.f32 %v667, %v671
  %v673 = vadd.f32 %v672, 0.05243302
  %v674 = vmul.f32 %v667, %v673
  %v675 = vadd.f32 %v674, 0.18741608
  %v676 = vmul.f32 %v667, %v675
  %v677 = vadd.f32 %v676, 1.1283791
  %v678 = vmul.f32 %v563, %v677
  %v679 = vmul.f32 %v667, 3.8918573e-05
  %v680 = vadd.f32 %v679, 0.001143296
  %v681 = vmul.f32 %v667, %v680
  %v682 = vadd.f32 %v681, 0.014752088
  %v683 = vmul.f32 %v667, %v682
  %v684 = vadd.f32 %v683, 0.112945676
  %v685 = vmul.f32 %v667, %v684
  %v686 = vadd.f32 %v685, 0.4994258
  %v687 = vmul.f32 %v667, %v686
  %v688 = vadd.f32 %v687, 1.0
  %v689 = vrcp.pop %v688
  %v690 = vmul.f32 %v688, %v689
  %v691 = vsub.f32 1.0, %v690
  %v692 = vmul.f32 %v689, %v691
  %v693 = vadd.f32 %v689, %v692
  %vm694 = vweird.f32 %v688
  %vm695 = vweird.f32 %v689
  %vm696 = vmor %vm694, %vm695
  %v697 = vsel %vm696, %v689, %v693
  %v698 = vand.u32 2147483647, %v688
  %vm699 = vcmp.eq.f32.partialorder %v698, 8.507059e+37
  %v700 = vand.u32 %v688, 2147483648
  %v701 = vor.u32 1.1754944e-38, %v700
  %v702 = vsel %vm699, %v701, %v697
  %v703 = vmul.f32 %v678, %v702
  %v704 = vmin.f32 %v703, 1.0
  %v705 = vmax.f32 %v704, -1.0
  %v706 = vmul.f32 %v564, %v564
  %v707 = vmin.f32 16.0, %v706
  %v708 = vmul.f32 %v707, 2.1237322e-06
  %v709 = vadd.f32 %v708, 0.00028619796
  %v710 = vmul.f32 %v707, %v709
  %v711 = vadd.f32 %v710, 0.0036580483
  %v712 = vmul.f32 %v707, %v711
  %v713 = vadd.f32 %v712, 0.05243302
  %v714 = vmul.f32 %v707, %v713
  %v715 = vadd.f32 %v714, 0.18741608
  %v716 = vmul.f32 %v707, %v715
  %v717 = vadd.f32 %v716, 1.1283791
  %v718 = vmul.f32 %v564, %v717
  %v719 = vmul.f32 %v707, 3.8918573e-05
  %v720 = vadd.f32 %v719, 0.001143296
  %v721 = vmul.f32 %v707, %v720
  %v722 = vadd.f32 %v721, 0.014752088
  %v723 = vmul.f32 %v707, %v722
  %v724 = vadd.f32 %v723, 0.112945676
  %v725 = vmul.f32 %v707, %v724
  %v726 = vadd.f32 %v725, 0.4994258
  %v727 = vmul.f32 %v707, %v726
  %v728 = vadd.f32 %v727, 1.0
  %v729 = vrcp.pop %v728
  %v730 = vmul.f32 %v728, %v729
  %v731 = vsub.f32 1.0, %v730
  %v732 = vmul.f32 %v729, %v731
  %v733 = vadd.f32 %v729, %v732
  %vm734 = vweird.f32 %v728
  %vm735 = vweird.f32 %v729
  %vm736 = vmor %vm734, %vm735
  %v737 = vsel %vm736, %v729, %v733
  %v738 = vand.u32 2147483647, %v728
  %vm739 = vcmp.eq.f32.partialorder %v738, 8.507059e+37
  %v740 = vand.u32 %v728, 2147483648
  %v741 = vor.u32 1.1754944e-38, %v740
  %v742 = vsel %vm739, %v741, %v737
  %v743 = vmul.f32 %v718, %v742
  %v744 = vmin.f32 %v743, 1.0
  %v745 = vmax.f32 %v744, -1.0
  %v746 = vmul.f32 %v565, %v565
  %v747 = vmin.f32 16.0, %v746
  %v748 = vmul.f32 %v747, 2.1237322e-06
  %v749 = vadd.f32 %v748, 0.00028619796
  %v750 = vmul.f32 %v747, %v749
  %v751 = vadd.f32 %v750, 0.0036580483
  %v752 = vmul.f32 %v747, %v751
  %v753 = vadd.f32 %v752, 0.05243302
  %v754 = vmul.f32 %v747, %v753
  %v755 = vadd.f32 %v754, 0.18741608
  %v756 = vmul.f32 %v747, %v755
  %v757 = vadd.f32 %v756, 1.1283791
  %v758 = vmul.f32 %v565, %v757
  %v759 = vmul.f32 %v747, 3.8918573e-05
  %v760 = vadd.f32 %v759, 0.001143296
  %v761 = vmul.f32 %v747, %v760
  %v762 = vadd.f32 %v761, 0.014752088
  %v763 = vmul.f32 %v747, %v762
  %v764 = vadd.f32 %v763, 0.112945676
  %v765 = vmul.f32 %v747, %v764
  %v766 = vadd.f32 %v765, 0.4994258
  %v767 = vmul.f32 %v747, %v766
  %v768 = vadd.f32 %v767, 1.0
  %v769 = vrcp.pop %v768
  %v770 = vmul.f32 %v768, %v769
  %v771 = vsub.f32 1.0, %v770
  %v772 = vmul.f32 %v769, %v771
  %v773 = vadd.f32 %v769, %v772
  %vm774 = vweird.f32 %v768
  %vm775 = vweird.f32 %v769
  %vm776 = vmor %vm774, %vm775
  %v777 = vsel %vm776, %v769, %v773
  %v778 = vand.u32 2147483647, %v768
  %vm779 = vcmp.eq.f32.partialorder %v778, 8.507059e+37
  %v780 = vand.u32 %v768, 2147483648
  %v781 = vor.u32 1.1754944e-38, %v780
  %v782 = vsel %vm779, %v781, %v777
  %v783 = vmul.f32 %v758, %v782
  %v784 = vmin.f32 %v783, 1.0
  %v785 = vmax.f32 %v784, -1.0
  %v786 = vmul.f32 %v566, %v566
  %v787 = vmin.f32 16.0, %v786
  %v788 = vmul.f32 %v787, 2.1237322e-06
  %v789 = vadd.f32 %v788, 0.00028619796
  %v790 = vmul.f32 %v787, %v789
  %v791 = vadd.f32 %v790, 0.0036580483
  %v792 = vmul.f32 %v787, %v791
  %v793 = vadd.f32 %v792, 0.05243302
  %v794 = vmul.f32 %v787, %v793
  %v795 = vadd.f32 %v794, 0.18741608
  %v796 = vmul.f32 %v787, %v795
  %v797 = vadd.f32 %v796, 1.1283791
  %v798 = vmul.f32 %v566, %v797
  %v799 = vmul.f32 %v787, 3.8918573e-05
  %v800 = vadd.f32 %v799, 0.001143296
  %v801 = vmul.f32 %v787, %v800
  %v802 = vadd.f32 %v801, 0.014752088
  %v803 = vmul.f32 %v787, %v802
  %v804 = vadd.f32 %v803, 0.112945676
  %v805 = vmul.f32 %v787, %v804
  %v806 = vadd.f32 %v805, 0.4994258
  %v807 = vmul.f32 %v787, %v806
  %v808 = vadd.f32 %v807, 1.0
  %v809 = vrcp.pop %v808
  %v810 = vmul.f32 %v808, %v809
  %v811 = vsub.f32 1.0, %v810
  %v812 = vmul.f32 %v809, %v811
  %v813 = vadd.f32 %v809, %v812
  %vm814 = vweird.f32 %v808
  %vm815 = vweird.f32 %v809
  %vm816 = vmor %vm814, %vm815
  %v817 = vsel %vm816, %v809, %v813
  %v818 = vand.u32 2147483647, %v808
  %vm819 = vcmp.eq.f32.partialorder %v818, 8.507059e+37
  %v820 = vand.u32 %v808, 2147483648
  %v821 = vor.u32 1.1754944e-38, %v820
  %v822 = vsel %vm819, %v821, %v817
  %v823 = vmul.f32 %v798, %v822
  %v824 = vmin.f32 %v823, 1.0
  %v825 = vmax.f32 %v824, -1.0
  %v826 = vmul.f32 %v567, %v567
  %v827 = vmin.f32 16.0, %v826
  %v828 = vmul.f32 %v827, 2.1237322e-06
  %v829 = vadd.f32 %v828, 0.00028619796
  %v830 = vmul.f32 %v827, %v829
  %v831 = vadd.f32 %v830, 0.0036580483
  %v832 = vmul.f32 %v827, %v831
  %v833 = vadd.f32 %v832, 0.05243302
  %v834 = vmul.f32 %v827, %v833
  %v835 = vadd.f32 %v834, 0.18741608
  %v836 = vmul.f32 %v827, %v835
  %v837 = vadd.f32 %v836, 1.1283791
  %v838 = vmul.f32 %v567, %v837
  %v839 = vmul.f32 %v827, 3.8918573e-05
  %v840 = vadd.f32 %v839, 0.001143296
  %v841 = vmul.f32 %v827, %v840
  %v842 = vadd.f32 %v841, 0.014752088
  %v843 = vmul.f32 %v827, %v842
  %v844 = vadd.f32 %v843, 0.112945676
  %v845 = vmul.f32 %v827, %v844
  %v846 = vadd.f32 %v845, 0.4994258
  %v847 = vmul.f32 %v827, %v846
  %v848 = vadd.f32 %v847, 1.0
  %v849 = vrcp.pop %v848
  %v850 = vmul.f32 %v848, %v849
  %v851 = vsub.f32 1.0, %v850
  %v852 = vmul.f32 %v849, %v851
  %v853 = vadd.f32 %v849, %v852
  %vm854 = vweird.f32 %v848
  %vm855 = vweird.f32 %v849
  %vm856 = vmor %vm854, %vm855
  %v857 = vsel %vm856, %v849, %v853
  %v858 = vand.u32 2147483647, %v848
  %vm859 = vcmp.eq.f32.partialorder %v858, 8.507059e+37
  %v860 = vand.u32 %v848, 2147483648
  %v861 = vor.u32 1.1754944e-38, %v860
  %v862 = vsel %vm859, %v861, %v857
  %v863 = vmul.f32 %v838, %v862
  %v864 = vmin.f32 %v863, 1.0
  %v865 = vmax.f32 %v864, -1.0
  %v866 = vmul.f32 %v568, %v568
  %v867 = vmin.f32 16.0, %v866
  %v868 = vmul.f32 %v867, 2.1237322e-06
  %v869 = vadd.f32 %v868, 0.00028619796
  %v870 = vmul.f32 %v867, %v869
  %v871 = vadd.f32 %v870, 0.0036580483
  %v872 = vmul.f32 %v867, %v871
  %v873 = vadd.f32 %v872, 0.05243302
  %v874 = vmul.f32 %v867, %v873
  %v875 = vadd.f32 %v874, 0.18741608
  %v876 = vmul.f32 %v867, %v875
  %v877 = vadd.f32 %v876, 1.1283791
  %v878 = vmul.f32 %v568, %v877
  %v879 = vmul.f32 %v867, 3.8918573e-05
  %v880 = vadd.f32 %v879, 0.001143296
  %v881 = vmul.f32 %v867, %v880
  %v882 = vadd.f32 %v881, 0.014752088
  %v883 = vmul.f32 %v867, %v882
  %v884 = vadd.f32 %v883, 0.112945676
  %v885 = vmul.f32 %v867, %v884
  %v886 = vadd.f32 %v885, 0.4994258
  %v887 = vmul.f32 %v867, %v886
  %v888 = vadd.f32 %v887, 1.0
  %v889 = vrcp.pop %v888
  %v890 = vmul.f32 %v888, %v889
  %v891 = vsub.f32 1.0, %v890
  %v892 = vmul.f32 %v889, %v891
  %v893 = vadd.f32 %v889, %v892
  %vm894 = vweird.f32 %v888
  %vm895 = vweird.f32 %v889
  %vm896 = vmor %vm894, %vm895
  %v897 = vsel %vm896, %v889, %v893
  %v898 = vand.u32 2147483647, %v888
  %vm899 = vcmp.eq.f32.partialorder %v898, 8.507059e+37
  %v900 = vand.u32 %v888, 2147483648
  %v901 = vor.u32 1.1754944e-38, %v900
  %v902 = vsel %vm899, %v901, %v897
  %v903 = vmul.f32 %v878, %v902
  %v904 = vmin.f32 %v903, 1.0
  %v905 = vmax.f32 %v904, -1.0
  %v906 = vmul.f32 %v569, %v569
  %v907 = vmin.f32 16.0, %v906
  %v908 = vmul.f32 %v907, 2.1237322e-06
  %v909 = vadd.f32 %v908, 0.00028619796
  %v910 = vmul.f32 %v907, %v909
  %v911 = vadd.f32 %v910, 0.0036580483
  %v912 = vmul.f32 %v907, %v911
  %v913 = vadd.f32 %v912, 0.05243302
  %v914 = vmul.f32 %v907, %v913
  %v915 = vadd.f32 %v914, 0.18741608
  %v916 = vmul.f32 %v907, %v915
  %v917 = vadd.f32 %v916, 1.1283791
  %v918 = vmul.f32 %v569, %v917
  %v919 = vmul.f32 %v907, 3.8918573e-05
  %v920 = vadd.f32 %v919, 0.001143296
  %v921 = vmul.f32 %v907, %v920
  %v922 = vadd.f32 %v921, 0.014752088
  %v923 = vmul.f32 %v907, %v922
  %v924 = vadd.f32 %v923, 0.112945676
  %v925 = vmul.f32 %v907, %v924
  %v926 = vadd.f32 %v925, 0.4994258
  %v927 = vmul.f32 %v907, %v926
  %v928 = vadd.f32 %v927, 1.0
  %v929 = vrcp.pop %v928
  %v930 = vmul.f32 %v928, %v929
  %v931 = vsub.f32 1.0, %v930
  %v932 = vmul.f32 %v929, %v931
  %v933 = vadd.f32 %v929, %v932
  %vm934 = vweird.f32 %v928
  %vm935 = vweird.f32 %v929
  %vm936 = vmor %vm934, %vm935
  %v937 = vsel %vm936, %v929, %v933
  %v938 = vand.u32 2147483647, %v928
  %vm939 = vcmp.eq.f32.partialorder %v938, 8.507059e+37
  %v940 = vand.u32 %v928, 2147483648
  %v941 = vor.u32 1.1754944e-38, %v940
  %v942 = vsel %vm939, %v941, %v937
  %v943 = vmul.f32 %v918, %v942
  %v944 = vmin.f32 %v943, 1.0
  %v945 = vmax.f32 %v944, -1.0
  %v946 = vmul.f32 %v570, %v570
  %v947 = vmin.f32 16.0, %v946
  %v948 = vmul.f32 %v947, 2.1237322e-06
  %v949 = vadd.f32 %v948, 0.00028619796
  %v950 = vmul.f32 %v947, %v949
  %v951 = vadd.f32 %v950, 0.0036580483
  %v952 = vmul.f32 %v947, %v951
  %v953 = vadd.f32 %v952, 0.05243302
  %v954 = vmul.f32 %v947, %v953
  %v955 = vadd.f32 %v954, 0.18741608
  %v956 = vmul.f32 %v947, %v955
  %v957 = vadd.f32 %v956, 1.1283791
  %v958 = vmul.f32 %v570, %v957
  %v959 = vmul.f32 %v947, 3.8918573e-05
  %v960 = vadd.f32 %v959, 0.001143296
  %v961 = vmul.f32 %v947, %v960
  %v962 = vadd.f32 %v961, 0.014752088
  %v963 = vmul.f32 %v947, %v962
  %v964 = vadd.f32 %v963, 0.112945676
  %v965 = vmul.f32 %v947, %v964
  %v966 = vadd.f32 %v965, 0.4994258
  %v967 = vmul.f32 %v947, %v966
  %v968 = vadd.f32 %v967, 1.0
  %v969 = vrcp.pop %v968
  %v970 = vmul.f32 %v968, %v969
  %v971 = vsub.f32 1.0, %v970
  %v972 = vmul.f32 %v969, %v971
  %v973 = vadd.f32 %v969, %v972
  %vm974 = vweird.f32 %v968
  %vm975 = vweird.f32 %v969
  %vm976 = vmor %vm974, %vm975
  %v977 = vsel %vm976, %v969, %v973
  %v978 = vand.u32 2147483647, %v968
  %vm979 = vcmp.eq.f32.partialorder %v978, 8.507059e+37
  %v980 = vand.u32 %v968, 2147483648
  %v981 = vor.u32 1.1754944e-38, %v980
  %v982 = vsel %vm979, %v981, %v977
  %v983 = vmul.f32 %v958, %v982
  %v984 = vmin.f32 %v983, 1.0
  %v985 = vmax.f32 %v984, -1.0
  %v986 = vmul.f32 %v571, %v571
  %v987 = vmin.f32 16.0, %v986
  %v988 = vmul.f32 %v987, 2.1237322e-06
  %v989 = vadd.f32 %v988, 0.00028619796
  %v990 = vmul.f32 %v987, %v989
  %v991 = vadd.f32 %v990, 0.0036580483
  %v992 = vmul.f32 %v987, %v991
  %v993 = vadd.f32 %v992, 0.05243302
  %v994 = vmul.f32 %v987, %v993
  %v995 = vadd.f32 %v994, 0.18741608
  %v996 = vmul.f32 %v987, %v995
  %v997 = vadd.f32 %v996, 1.1283791
  %v998 = vmul.f32 %v571, %v997
  %v999 = vmul.f32 %v987, 3.8918573e-05
  %v1000 = vadd.f32 %v999, 0.001143296
  %v1001 = vmul.f32 %v987, %v1000
  %v1002 = vadd.f32 %v1001, 0.014752088
  %v1003 = vmul.f32 %v987, %v1002
  %v1004 = vadd.f32 %v1003, 0.112945676
  %v1005 = vmul.f32 %v987, %v1004
  %v1006 = vadd.f32 %v1005, 0.4994258
  %v1007 = vmul.f32 %v987, %v1006
  %v1008 = vadd.f32 %v1007, 1.0
  %v1009 = vrcp.pop %v1008
  %v1010 = vmul.f32 %v1008, %v1009
  %v1011 = vsub.f32 1.0, %v1010
  %v1012 = vmul.f32 %v1009, %v1011
  %v1013 = vadd.f32 %v1009, %v1012
  %vm1014 = vweird.f32 %v1008
  %vm1015 = vweird.f32 %v1009
  %vm1016 = vmor %vm1014, %vm1015
  %v1017 = vsel %vm1016, %v1009, %v1013
  %v1018 = vand.u32 2147483647, %v1008
  %vm1019 = vcmp.eq.f32.partialorder %v1018, 8.507059e+37
  %v1020 = vand.u32 %v1008, 2147483648
  %v1021 = vor.u32 1.1754944e-38, %v1020
  %v1022 = vsel %vm1019, %v1021, %v1017
  %v1023 = vmul.f32 %v998, %v1022
  %v1024 = vmin.f32 %v1023, 1.0
  %v1025 = vmax.f32 %v1024, -1.0
  %v1026 = vmul.f32 %v572, %v572
  %v1027 = vmin.f32 16.0, %v1026
  %v1028 = vmul.f32 %v1027, 2.1237322e-06
  %v1029 = vadd.f32 %v1028, 0.00028619796
  %v1030 = vmul.f32 %v1027, %v1029
  %v1031 = vadd.f32 %v1030, 0.0036580483
  %v1032 = vmul.f32 %v1027, %v1031
  %v1033 = vadd.f32 %v1032, 0.05243302
  %v1034 = vmul.f32 %v1027, %v1033
  %v1035 = vadd.f32 %v1034, 0.18741608
  %v1036 = vmul.f32 %v1027, %v1035
  %v1037 = vadd.f32 %v1036, 1.1283791
  %v1038 = vmul.f32 %v572, %v1037
  %v1039 = vmul.f32 %v1027, 3.8918573e-05
  %v1040 = vadd.f32 %v1039, 0.001143296
  %v1041 = vmul.f32 %v1027, %v1040
  %v1042 = vadd.f32 %v1041, 0.014752088
  %v1043 = vmul.f32 %v1027, %v1042
  %v1044 = vadd.f32 %v1043, 0.112945676
  %v1045 = vmul.f32 %v1027, %v1044
  %v1046 = vadd.f32 %v1045, 0.4994258
  %v1047 = vmul.f32 %v1027, %v1046
  %v1048 = vadd.f32 %v1047, 1.0
  %v1049 = vrcp.pop %v1048
  %v1050 = vmul.f32 %v1048, %v1049
  %v1051 = vsub.f32 1.0, %v1050
  %v1052 = vmul.f32 %v1049, %v1051
  %v1053 = vadd.f32 %v1049, %v1052
  %vm1054 = vweird.f32 %v1048
  %vm1055 = vweird.f32 %v1049
  %vm1056 = vmor %vm1054, %vm1055
  %v1057 = vsel %vm1056, %v1049, %v1053
  %v1058 = vand.u32 2147483647, %v1048
  %vm1059 = vcmp.eq.f32.partialorder %v1058, 8.507059e+37
  %v1060 = vand.u32 %v1048, 2147483648
  %v1061 = vor.u32 1.1754944e-38, %v1060
  %v1062 = vsel %vm1059, %v1061, %v1057
  %v1063 = vmul.f32 %v1038, %v1062
  %v1064 = vmin.f32 %v1063, 1.0
  %v1065 = vmax.f32 %v1064, -1.0
  %v1066 = vmul.f32 %v573, %v573
  %v1067 = vmin.f32 16.0, %v1066
  %v1068 = vmul.f32 %v1067, 2.1237322e-06
  %v1069 = vadd.f32 %v1068, 0.00028619796
  %v1070 = vmul.f32 %v1067, %v1069
  %v1071 = vadd.f32 %v1070, 0.0036580483
  %v1072 = vmul.f32 %v1067, %v1071
  %v1073 = vadd.f32 %v1072, 0.05243302
  %v1074 = vmul.f32 %v1067, %v1073
  %v1075 = vadd.f32 %v1074, 0.18741608
  %v1076 = vmul.f32 %v1067, %v1075
  %v1077 = vadd.f32 %v1076, 1.1283791
  %v1078 = vmul.f32 %v573, %v1077
  %v1079 = vmul.f32 %v1067, 3.8918573e-05
  %v1080 = vadd.f32 %v1079, 0.001143296
  %v1081 = vmul.f32 %v1067, %v1080
  %v1082 = vadd.f32 %v1081, 0.014752088
  %v1083 = vmul.f32 %v1067, %v1082
  %v1084 = vadd.f32 %v1083, 0.112945676
  %v1085 = vmul.f32 %v1067, %v1084
  %v1086 = vadd.f32 %v1085, 0.4994258
  %v1087 = vmul.f32 %v1067, %v1086
  %v1088 = vadd.f32 %v1087, 1.0
  %v1089 = vrcp.pop %v1088
  %v1090 = vmul.f32 %v1088, %v1089
  %v1091 = vsub.f32 1.0, %v1090
  %v1092 = vmul.f32 %v1089, %v1091
  %v1093 = vadd.f32 %v1089, %v1092
  %vm1094 = vweird.f32 %v1088
  %vm1095 = vweird.f32 %v1089
  %vm1096 = vmor %vm1094, %vm1095
  %v1097 = vsel %vm1096, %v1089, %v1093
  %v1098 = vand.u32 2147483647, %v1088
  %vm1099 = vcmp.eq.f32.partialorder %v1098, 8.507059e+37
  %v1100 = vand.u32 %v1088, 2147483648
  %v1101 = vor.u32 1.1754944e-38, %v1100
  %v1102 = vsel %vm1099, %v1101, %v1097
  %v1103 = vmul.f32 %v1078, %v1102
  %v1104 = vmin.f32 %v1103, 1.0
  %v1105 = vmax.f32 %v1104, -1.0
  %v1106 = vmul.f32 %v574, %v574
  %v1107 = vmin.f32 16.0, %v1106
  %v1108 = vmul.f32 %v1107, 2.1237322e-06
  %v1109 = vadd.f32 %v1108, 0.00028619796
  %v1110 = vmul.f32 %v1107, %v1109
  %v1111 = vadd.f32 %v1110, 0.0036580483
  %v1112 = vmul.f32 %v1107, %v1111
  %v1113 = vadd.f32 %v1112, 0.05243302
  %v1114 = vmul.f32 %v1107, %v1113
  %v1115 = vadd.f32 %v1114, 0.18741608
  %v1116 = vmul.f32 %v1107, %v1115
  %v1117 = vadd.f32 %v1116, 1.1283791
  %v1118 = vmul.f32 %v574, %v1117
  %v1119 = vmul.f32 %v1107, 3.8918573e-05
  %v1120 = vadd.f32 %v1119, 0.001143296
  %v1121 = vmul.f32 %v1107, %v1120
  %v1122 = vadd.f32 %v1121, 0.014752088
  %v1123 = vmul.f32 %v1107, %v1122
  %v1124 = vadd.f32 %v1123, 0.112945676
  %v1125 = vmul.f32 %v1107, %v1124
  %v1126 = vadd.f32 %v1125, 0.4994258
  %v1127 = vmul.f32 %v1107, %v1126
  %v1128 = vadd.f32 %v1127, 1.0
  %v1129 = vrcp.pop %v1128
  %v1130 = vmul.f32 %v1128, %v1129
  %v1131 = vsub.f32 1.0, %v1130
  %v1132 = vmul.f32 %v1129, %v1131
  %v1133 = vadd.f32 %v1129, %v1132
  %vm1134 = vweird.f32 %v1128
  %vm1135 = vweird.f32 %v1129
  %vm1136 = vmor %vm1134, %vm1135
  %v1137 = vsel %vm1136, %v1129, %v1133
  %v1138 = vand.u32 2147483647, %v1128
  %vm1139 = vcmp.eq.f32.partialorder %v1138, 8.507059e+37
  %v1140 = vand.u32 %v1128, 2147483648
  %v1141 = vor.u32 1.1754944e-38, %v1140
  %v1142 = vsel %vm1139, %v1141, %v1137
  %v1143 = vmul.f32 %v1118, %v1142
  %v1144 = vmin.f32 %v1143, 1.0
  %v1145 = vmax.f32 %v1144, -1.0
  %v1146 = vmul.f32 %v575, %v575
  %v1147 = vmin.f32 16.0, %v1146
  %v1148 = vmul.f32 %v1147, 2.1237322e-06
  %v1149 = vadd.f32 %v1148, 0.00028619796
  %v1150 = vmul.f32 %v1147, %v1149
  %v1151 = vadd.f32 %v1150, 0.0036580483
  %v1152 = vmul.f32 %v1147, %v1151
  %v1153 = vadd.f32 %v1152, 0.05243302
  %v1154 = vmul.f32 %v1147, %v1153
  %v1155 = vadd.f32 %v1154, 0.18741608
  %v1156 = vmul.f32 %v1147, %v1155
  %v1157 = vadd.f32 %v1156, 1.1283791
  %v1158 = vmul.f32 %v575, %v1157
  %v1159 = vmul.f32 %v1147, 3.8918573e-05
  %v1160 = vadd.f32 %v1159, 0.001143296
  %v1161 = vmul.f32 %v1147, %v1160
  %v1162 = vadd.f32 %v1161, 0.014752088
  %v1163 = vmul.f32 %v1147, %v1162
  %v1164 = vadd.f32 %v1163, 0.112945676
  %v1165 = vmul.f32 %v1147, %v1164
  %v1166 = vadd.f32 %v1165, 0.4994258
  %v1167 = vmul.f32 %v1147, %v1166
  %v1168 = vadd.f32 %v1167, 1.0
  %v1169 = vrcp.pop %v1168
  %v1170 = vmul.f32 %v1168, %v1169
  %v1171 = vsub.f32 1.0, %v1170
  %v1172 = vmul.f32 %v1169, %v1171
  %v1173 = vadd.f32 %v1169, %v1172
  %vm1174 = vweird.f32 %v1168
  %vm1175 = vweird.f32 %v1169
  %vm1176 = vmor %vm1174, %vm1175
  %v1177 = vsel %vm1176, %v1169, %v1173
  %v1178 = vand.u32 2147483647, %v1168
  %vm1179 = vcmp.eq.f32.partialorder %v1178, 8.507059e+37
  %v1180 = vand.u32 %v1168, 2147483648
  %v1181 = vor.u32 1.1754944e-38, %v1180
  %v1182 = vsel %vm1179, %v1181, %v1177
  %v1183 = vmul.f32 %v1158, %v1182
  %v1184 = vmin.f32 %v1183, 1.0
  %v1185 = vmax.f32 %v1184, -1.0
  %v1186 = vmul.f32 %v576, %v576
  %v1187 = vmin.f32 16.0, %v1186
  %v1188 = vmul.f32 %v1187, 2.1237322e-06
  %v1189 = vadd.f32 %v1188, 0.00028619796
  %v1190 = vmul.f32 %v1187, %v1189
  %v1191 = vadd.f32 %v1190, 0.0036580483
  %v1192 = vmul.f32 %v1187, %v1191
  %v1193 = vadd.f32 %v1192, 0.05243302
  %v1194 = vmul.f32 %v1187, %v1193
  %v1195 = vadd.f32 %v1194, 0.18741608
  %v1196 = vmul.f32 %v1187, %v1195
  %v1197 = vadd.f32 %v1196, 1.1283791
  %v1198 = vmul.f32 %v576, %v1197
  %v1199 = vmul.f32 %v1187, 3.8918573e-05
  %v1200 = vadd.f32 %v1199, 0.001143296
  %v1201 = vmul.f32 %v1187, %v1200
  %v1202 = vadd.f32 %v1201, 0.014752088
  %v1203 = vmul.f32 %v1187, %v1202
  %v1204 = vadd.f32 %v1203, 0.112945676
  %v1205 = vmul.f32 %v1187, %v1204
  %v1206 = vadd.f32 %v1205, 0.4994258
  %v1207 = vmul.f32 %v1187, %v1206
  %v1208 = vadd.f32 %v1207, 1.0
  %v1209 = vrcp.pop %v1208
  %v1210 = vmul.f32 %v1208, %v1209
  %v1211 = vsub.f32 1.0, %v1210
  %v1212 = vmul.f32 %v1209, %v1211
  %v1213 = vadd.f32 %v1209, %v1212
  %vm1214 = vweird.f32 %v1208
  %vm1215 = vweird.f32 %v1209
  %vm1216 = vmor %vm1214, %vm1215
  %v1217 = vsel %vm1216, %v1209, %v1213
  %v1218 = vand.u32 2147483647, %v1208
  %vm1219 = vcmp.eq.f32.partialorder %v1218, 8.507059e+37
  %v1220 = vand.u32 %v1208, 2147483648
  %v1221 = vor.u32 1.1754944e-38, %v1220
  %v1222 = vsel %vm1219, %v1221, %v1217
  %v1223 = vmul.f32 %v1198, %v1222
  %v1224 = vmin.f32 %v1223, 1.0
  %v1225 = vmax.f32 %v1224, -1.0
  %v1226 = vmul.f32 %v577, %v577
  %v1227 = vmin.f32 16.0, %v1226
  %v1228 = vmul.f32 %v1227, 2.1237322e-06
  %v1229 = vadd.f32 %v1228, 0.00028619796
  %v1230 = vmul.f32 %v1227, %v1229
  %v1231 = vadd.f32 %v1230, 0.0036580483
  %v1232 = vmul.f32 %v1227, %v1231
  %v1233 = vadd.f32 %v1232, 0.05243302
  %v1234 = vmul.f32 %v1227, %v1233
  %v1235 = vadd.f32 %v1234, 0.18741608
  %v1236 = vmul.f32 %v1227, %v1235
  %v1237 = vadd.f32 %v1236, 1.1283791
  %v1238 = vmul.f32 %v577, %v1237
  %v1239 = vmul.f32 %v1227, 3.8918573e-05
  %v1240 = vadd.f32 %v1239, 0.001143296
  %v1241 = vmul.f32 %v1227, %v1240
  %v1242 = vadd.f32 %v1241, 0.014752088
  %v1243 = vmul.f32 %v1227, %v1242
  %v1244 = vadd.f32 %v1243, 0.112945676
  %v1245 = vmul.f32 %v1227, %v1244
  %v1246 = vadd.f32 %v1245, 0.4994258
  %v1247 = vmul.f32 %v1227, %v1246
  %v1248 = vadd.f32 %v1247, 1.0
  %v1249 = vrcp.pop %v1248
  %v1250 = vmul.f32 %v1248, %v1249
  %v1251 = vsub.f32 1.0, %v1250
  %v1252 = vmul.f32 %v1249, %v1251
  %v1253 = vadd.f32 %v1249, %v1252
  %vm1254 = vweird.f32 %v1248
  %vm1255 = vweird.f32 %v1249
  %vm1256 = vmor %vm1254, %vm1255
  %v1257 = vsel %vm1256, %v1249, %v1253
  %v1258 = vand.u32 2147483647, %v1248
  %vm1259 = vcmp.eq.f32.partialorder %v1258, 8.507059e+37
  %v1260 = vand.u32 %v1248, 2147483648
  %v1261 = vor.u32 1.1754944e-38, %v1260
  %v1262 = vsel %vm1259, %v1261, %v1257
  %v1263 = vmul.f32 %v1238, %v1262
  %v1264 = vmin.f32 %v1263, 1.0
  %v1265 = vmax.f32 %v1264, -1.0
  %v1266 = vmul.f32 %v578, %v578
  %v1267 = vmin.f32 16.0, %v1266
  %v1268 = vmul.f32 %v1267, 2.1237322e-06
  %v1269 = vadd.f32 %v1268, 0.00028619796
  %v1270 = vmul.f32 %v1267, %v1269
  %v1271 = vadd.f32 %v1270, 0.0036580483
  %v1272 = vmul.f32 %v1267, %v1271
  %v1273 = vadd.f32 %v1272, 0.05243302
  %v1274 = vmul.f32 %v1267, %v1273
  %v1275 = vadd.f32 %v1274, 0.18741608
  %v1276 = vmul.f32 %v1267, %v1275
  %v1277 = vadd.f32 %v1276, 1.1283791
  %v1278 = vmul.f32 %v578, %v1277
  %v1279 = vmul.f32 %v1267, 3.8918573e-05
  %v1280 = vadd.f32 %v1279, 0.001143296
  %v1281 = vmul.f32 %v1267, %v1280
  %v1282 = vadd.f32 %v1281, 0.014752088
  %v1283 = vmul.f32 %v1267, %v1282
  %v1284 = vadd.f32 %v1283, 0.112945676
  %v1285 = vmul.f32 %v1267, %v1284
  %v1286 = vadd.f32 %v1285, 0.4994258
  %v1287 = vmul.f32 %v1267, %v1286
  %v1288 = vadd.f32 %v1287, 1.0
  %v1289 = vrcp.pop %v1288
  %v1290 = vmul.f32 %v1288, %v1289
  %v1291 = vsub.f32 1.0, %v1290
  %v1292 = vmul.f32 %v1289, %v1291
  %v1293 = vadd.f32 %v1289, %v1292
  %vm1294 = vweird.f32 %v1288
  %vm1295 = vweird.f32 %v1289
  %vm1296 = vmor %vm1294, %vm1295
  %v1297 = vsel %vm1296, %v1289, %v1293
  %v1298 = vand.u32 2147483647, %v1288
  %vm1299 = vcmp.eq.f32.partialorder %v1298, 8.507059e+37
  %v1300 = vand.u32 %v1288, 2147483648
  %v1301 = vor.u32 1.1754944e-38, %v1300
  %v1302 = vsel %vm1299, %v1301, %v1297
  %v1303 = vmul.f32 %v1278, %v1302
  %v1304 = vmin.f32 %v1303, 1.0
  %v1305 = vmax.f32 %v1304, -1.0
  %v1306 = vmul.f32 %v579, %v579
  %v1307 = vmin.f32 16.0, %v1306
  %v1308 = vmul.f32 %v1307, 2.1237322e-06
  %v1309 = vadd.f32 %v1308, 0.00028619796
  %v1310 = vmul.f32 %v1307, %v1309
  %v1311 = vadd.f32 %v1310, 0.0036580483
  %v1312 = vmul.f32 %v1307, %v1311
  %v1313 = vadd.f32 %v1312, 0.05243302
  %v1314 = vmul.f32 %v1307, %v1313
  %v1315 = vadd.f32 %v1314, 0.18741608
  %v1316 = vmul.f32 %v1307, %v1315
  %v1317 = vadd.f32 %v1316, 1.1283791
  %v1318 = vmul.f32 %v579, %v1317
  %v1319 = vmul.f32 %v1307, 3.8918573e-05
  %v1320 = vadd.f32 %v1319, 0.001143296
  %v1321 = vmul.f32 %v1307, %v1320
  %v1322 = vadd.f32 %v1321, 0.014752088
  %v1323 = vmul.f32 %v1307, %v1322
  %v1324 = vadd.f32 %v1323, 0.112945676
  %v1325 = vmul.f32 %v1307, %v1324
  %v1326 = vadd.f32 %v1325, 0.4994258
  %v1327 = vmul.f32 %v1307, %v1326
  %v1328 = vadd.f32 %v1327, 1.0
  %v1329 = vrcp.pop %v1328
  %v1330 = vmul.f32 %v1328, %v1329
  %v1331 = vsub.f32 1.0, %v1330
  %v1332 = vmul.f32 %v1329, %v1331
  %v1333 = vadd.f32 %v1329, %v1332
  %vm1334 = vweird.f32 %v1328
  %vm1335 = vweird.f32 %v1329
  %vm1336 = vmor %vm1334, %vm1335
  %v1337 = vsel %vm1336, %v1329, %v1333
  %v1338 = vand.u32 2147483647, %v1328
  %vm1339 = vcmp.eq.f32.partialorder %v1338, 8.507059e+37
  %v1340 = vand.u32 %v1328, 2147483648
  %v1341 = vor.u32 1.1754944e-38, %v1340
  %v1342 = vsel %vm1339, %v1341, %v1337
  %v1343 = vmul.f32 %v1318, %v1342
  %v1344 = vmin.f32 %v1343, 1.0
  %v1345 = vmax.f32 %v1344, -1.0
  %v1346 = vmul.f32 %v580, %v580
  %v1347 = vmin.f32 16.0, %v1346
  %v1348 = vmul.f32 %v1347, 2.1237322e-06
  %v1349 = vadd.f32 %v1348, 0.00028619796
  %v1350 = vmul.f32 %v1347, %v1349
  %v1351 = vadd.f32 %v1350, 0.0036580483
  %v1352 = vmul.f32 %v1347, %v1351
  %v1353 = vadd.f32 %v1352, 0.05243302
  %v1354 = vmul.f32 %v1347, %v1353
  %v1355 = vadd.f32 %v1354, 0.18741608
  %v1356 = vmul.f32 %v1347, %v1355
  %v1357 = vadd.f32 %v1356, 1.1283791
  %v1358 = vmul.f32 %v580, %v1357
  %v1359 = vmul.f32 %v1347, 3.8918573e-05
  %v1360 = vadd.f32 %v1359, 0.001143296
  %v1361 = vmul.f32 %v1347, %v1360
  %v1362 = vadd.f32 %v1361, 0.014752088
  %v1363 = vmul.f32 %v1347, %v1362
  %v1364 = vadd.f32 %v1363, 0.112945676
  %v1365 = vmul.f32 %v1347, %v1364
  %v1366 = vadd.f32 %v1365, 0.4994258
  %v1367 = vmul.f32 %v1347, %v1366
  %v1368 = vadd.f32 %v1367, 1.0
  %v1369 = vrcp.pop %v1368
  %v1370 = vmul.f32 %v1368, %v1369
  %v1371 = vsub.f32 1.0, %v1370
  %v1372 = vmul.f32 %v1369, %v1371
  %v1373 = vadd.f32 %v1369, %v1372
  %vm1374 = vweird.f32 %v1368
  %vm1375 = vweird.f32 %v1369
  %vm1376 = vmor %vm1374, %vm1375
  %v1377 = vsel %vm1376, %v1369, %v1373
  %v1378 = vand.u32 2147483647, %v1368
  %vm1379 = vcmp.eq.f32.partialorder %v1378, 8.507059e+37
  %v1380 = vand.u32 %v1368, 2147483648
  %v1381 = vor.u32 1.1754944e-38, %v1380
  %v1382 = vsel %vm1379, %v1381, %v1377
  %v1383 = vmul.f32 %v1358, %v1382
  %v1384 = vmin.f32 %v1383, 1.0
  %v1385 = vmax.f32 %v1384, -1.0
  %v1386 = vmul.f32 %v581, %v581
  %v1387 = vmin.f32 16.0, %v1386
  %v1388 = vmul.f32 %v1387, 2.1237322e-06
  %v1389 = vadd.f32 %v1388, 0.00028619796
  %v1390 = vmul.f32 %v1387, %v1389
  %v1391 = vadd.f32 %v1390, 0.0036580483
  %v1392 = vmul.f32 %v1387, %v1391
  %v1393 = vadd.f32 %v1392, 0.05243302
  %v1394 = vmul.f32 %v1387, %v1393
  %v1395 = vadd.f32 %v1394, 0.18741608
  %v1396 = vmul.f32 %v1387, %v1395
  %v1397 = vadd.f32 %v1396, 1.1283791
  %v1398 = vmul.f32 %v581, %v1397
  %v1399 = vmul.f32 %v1387, 3.8918573e-05
  %v1400 = vadd.f32 %v1399, 0.001143296
  %v1401 = vmul.f32 %v1387, %v1400
  %v1402 = vadd.f32 %v1401, 0.014752088
  %v1403 = vmul.f32 %v1387, %v1402
  %v1404 = vadd.f32 %v1403, 0.112945676
  %v1405 = vmul.f32 %v1387, %v1404
  %v1406 = vadd.f32 %v1405, 0.4994258
  %v1407 = vmul.f32 %v1387, %v1406
  %v1408 = vadd.f32 %v1407, 1.0
  %v1409 = vrcp.pop %v1408
  %v1410 = vmul.f32 %v1408, %v1409
  %v1411 = vsub.f32 1.0, %v1410
  %v1412 = vmul.f32 %v1409, %v1411
  %v1413 = vadd.f32 %v1409, %v1412
  %vm1414 = vweird.f32 %v1408
  %vm1415 = vweird.f32 %v1409
  %vm1416 = vmor %vm1414, %vm1415
  %v1417 = vsel %vm1416, %v1409, %v1413
  %v1418 = vand.u32 2147483647, %v1408
  %vm1419 = vcmp.eq.f32.partialorder %v1418, 8.507059e+37
  %v1420 = vand.u32 %v1408, 2147483648
  %v1421 = vor.u32 1.1754944e-38, %v1420
  %v1422 = vsel %vm1419, %v1421, %v1417
  %v1423 = vmul.f32 %v1398, %v1422
  %v1424 = vmin.f32 %v1423, 1.0
  %v1425 = vmax.f32 %v1424, -1.0
  %v1426 = vmul.f32 %v582, %v582
  %v1427 = vmin.f32 16.0, %v1426
  %v1428 = vmul.f32 %v1427, 2.1237322e-06
  %v1429 = vadd.f32 %v1428, 0.00028619796
  %v1430 = vmul.f32 %v1427, %v1429
  %v1431 = vadd.f32 %v1430, 0.0036580483
  %v1432 = vmul.f32 %v1427, %v1431
  %v1433 = vadd.f32 %v1432, 0.05243302
  %v1434 = vmul.f32 %v1427, %v1433
  %v1435 = vadd.f32 %v1434, 0.18741608
  %v1436 = vmul.f32 %v1427, %v1435
  %v1437 = vadd.f32 %v1436, 1.1283791
  %v1438 = vmul.f32 %v582, %v1437
  %v1439 = vmul.f32 %v1427, 3.8918573e-05
  %v1440 = vadd.f32 %v1439, 0.001143296
  %v1441 = vmul.f32 %v1427, %v1440
  %v1442 = vadd.f32 %v1441, 0.014752088
  %v1443 = vmul.f32 %v1427, %v1442
  %v1444 = vadd.f32 %v1443, 0.112945676
  %v1445 = vmul.f32 %v1427, %v1444
  %v1446 = vadd.f32 %v1445, 0.4994258
  %v1447 = vmul.f32 %v1427, %v1446
  %v1448 = vadd.f32 %v1447, 1.0
  %v1449 = vrcp.pop %v1448
  %v1450 = vmul.f32 %v1448, %v1449
  %v1451 = vsub.f32 1.0, %v1450
  %v1452 = vmul.f32 %v1449, %v1451
  %v1453 = vadd.f32 %v1449, %v1452
  %vm1454 = vweird.f32 %v1448
  %vm1455 = vweird.f32 %v1449
  %vm1456 = vmor %vm1454, %vm1455
  %v1457 = vsel %vm1456, %v1449, %v1453
  %v1458 = vand.u32 2147483647, %v1448
  %vm1459 = vcmp.eq.f32.partialorder %v1458, 8.507059e+37
  %v1460 = vand.u32 %v1448, 2147483648
  %v1461 = vor.u32 1.1754944e-38, %v1460
  %v1462 = vsel %vm1459, %v1461, %v1457
  %v1463 = vmul.f32 %v1438, %v1462
  %v1464 = vmin.f32 %v1463, 1.0
  %v1465 = vmax.f32 %v1464, -1.0
  %v1466 = vmul.f32 %v583, %v583
  %v1467 = vmin.f32 16.0, %v1466
  %v1468 = vmul.f32 %v1467, 2.1237322e-06
  %v1469 = vadd.f32 %v1468, 0.00028619796
  %v1470 = vmul.f32 %v1467, %v1469
  %v1471 = vadd.f32 %v1470, 0.0036580483
  %v1472 = vmul.f32 %v1467, %v1471
  %v1473 = vadd.f32 %v1472, 0.05243302
  %v1474 = vmul.f32 %v1467, %v1473
  %v1475 = vadd.f32 %v1474, 0.18741608
  %v1476 = vmul.f32 %v1467, %v1475
  %v1477 = vadd.f32 %v1476, 1.1283791
  %v1478 = vmul.f32 %v583, %v1477
  %v1479 = vmul.f32 %v1467, 3.8918573e-05
  %v1480 = vadd.f32 %v1479, 0.001143296
  %v1481 = vmul.f32 %v1467, %v1480
  %v1482 = vadd.f32 %v1481, 0.014752088
  %v1483 = vmul.f32 %v1467, %v1482
  %v1484 = vadd.f32 %v1483, 0.112945676
  %v1485 = vmul.f32 %v1467, %v1484
  %v1486 = vadd.f32 %v1485, 0.4994258
  %v1487 = vmul.f32 %v1467, %v1486
  %v1488 = vadd.f32 %v1487, 1.0
  %v1489 = vrcp.pop %v1488
  %v1490 = vmul.f32 %v1488, %v1489
  %v1491 = vsub.f32 1.0, %v1490
  %v1492 = vmul.f32 %v1489, %v1491
  %v1493 = vadd.f32 %v1489, %v1492
  %vm1494 = vweird.f32 %v1488
  %vm1495 = vweird.f32 %v1489
  %vm1496 = vmor %vm1494, %vm1495
  %v1497 = vsel %vm1496, %v1489, %v1493
  %v1498 = vand.u32 2147483647, %v1488
  %vm1499 = vcmp.eq.f32.partialorder %v1498, 8.507059e+37
  %v1500 = vand.u32 %v1488, 2147483648
  %v1501 = vor.u32 1.1754944e-38, %v1500
  %v1502 = vsel %vm1499, %v1501, %v1497
  %v1503 = vmul.f32 %v1478, %v1502
  %v1504 = vmin.f32 %v1503, 1.0
  %v1505 = vmax.f32 %v1504, -1.0
  %v1506 = vmul.f32 %v584, %v584
  %v1507 = vmin.f32 16.0, %v1506
  %v1508 = vmul.f32 %v1507, 2.1237322e-06
  %v1509 = vadd.f32 %v1508, 0.00028619796
  %v1510 = vmul.f32 %v1507, %v1509
  %v1511 = vadd.f32 %v1510, 0.0036580483
  %v1512 = vmul.f32 %v1507, %v1511
  %v1513 = vadd.f32 %v1512, 0.05243302
  %v1514 = vmul.f32 %v1507, %v1513
  %v1515 = vadd.f32 %v1514, 0.18741608
  %v1516 = vmul.f32 %v1507, %v1515
  %v1517 = vadd.f32 %v1516, 1.1283791
  %v1518 = vmul.f32 %v584, %v1517
  %v1519 = vmul.f32 %v1507, 3.8918573e-05
  %v1520 = vadd.f32 %v1519, 0.001143296
  %v1521 = vmul.f32 %v1507, %v1520
  %v1522 = vadd.f32 %v1521, 0.014752088
  %v1523 = vmul.f32 %v1507, %v1522
  %v1524 = vadd.f32 %v1523, 0.112945676
  %v1525 = vmul.f32 %v1507, %v1524
  %v1526 = vadd.f32 %v1525, 0.4994258
  %v1527 = vmul.f32 %v1507, %v1526
  %v1528 = vadd.f32 %v1527, 1.0
  %v1529 = vrcp.pop %v1528
  %v1530 = vmul.f32 %v1528, %v1529
  %v1531 = vsub.f32 1.0, %v1530
  %v1532 = vmul.f32 %v1529, %v1531
  %v1533 = vadd.f32 %v1529, %v1532
  %vm1534 = vweird.f32 %v1528
  %vm1535 = vweird.f32 %v1529
  %vm1536 = vmor %vm1534, %vm1535
  %v1537 = vsel %vm1536, %v1529, %v1533
  %v1538 = vand.u32 2147483647, %v1528
  %vm1539 = vcmp.eq.f32.partialorder %v1538, 8.507059e+37
  %v1540 = vand.u32 %v1528, 2147483648
  %v1541 = vor.u32 1.1754944e-38, %v1540
  %v1542 = vsel %vm1539, %v1541, %v1537
  %v1543 = vmul.f32 %v1518, %v1542
  %v1544 = vmin.f32 %v1543, 1.0
  %v1545 = vmax.f32 %v1544, -1.0
  %v1546 = vmul.f32 %v585, %v585
  %v1547 = vmin.f32 16.0, %v1546
  %v1548 = vmul.f32 %v1547, 2.1237322e-06
  %v1549 = vadd.f32 %v1548, 0.00028619796
  %v1550 = vmul.f32 %v1547, %v1549
  %v1551 = vadd.f32 %v1550, 0.0036580483
  %v1552 = vmul.f32 %v1547, %v1551
  %v1553 = vadd.f32 %v1552, 0.05243302
  %v1554 = vmul.f32 %v1547, %v1553
  %v1555 = vadd.f32 %v1554, 0.18741608
  %v1556 = vmul.f32 %v1547, %v1555
  %v1557 = vadd.f32 %v1556, 1.1283791
  %v1558 = vmul.f32 %v585, %v1557
  %v1559 = vmul.f32 %v1547, 3.8918573e-05
  %v1560 = vadd.f32 %v1559, 0.001143296
  %v1561 = vmul.f32 %v1547, %v1560
  %v1562 = vadd.f32 %v1561, 0.014752088
  %v1563 = vmul.f32 %v1547, %v1562
  %v1564 = vadd.f32 %v1563, 0.112945676
  %v1565 = vmul.f32 %v1547, %v1564
  %v1566 = vadd.f32 %v1565, 0.4994258
  %v1567 = vmul.f32 %v1547, %v1566
  %v1568 = vadd.f32 %v1567, 1.0
  %v1569 = vrcp.pop %v1568
  %v1570 = vmul.f32 %v1568, %v1569
  %v1571 = vsub.f32 1.0, %v1570
  %v1572 = vmul.f32 %v1569, %v1571
  %v1573 = vadd.f32 %v1569, %v1572
  %vm1574 = vweird.f32 %v1568
  %vm1575 = vweird.f32 %v1569
  %vm1576 = vmor %vm1574, %vm1575
  %v1577 = vsel %vm1576, %v1569, %v1573
  %v1578 = vand.u32 2147483647, %v1568
  %vm1579 = vcmp.eq.f32.partialorder %v1578, 8.507059e+37
  %v1580 = vand.u32 %v1568, 2147483648
  %v1581 = vor.u32 1.1754944e-38, %v1580
  %v1582 = vsel %vm1579, %v1581, %v1577
  %v1583 = vmul.f32 %v1558, %v1582
  %v1584 = vmin.f32 %v1583, 1.0
  %v1585 = vmax.f32 %v1584, -1.0
  %v1586 = vmul.f32 %v586, %v586
  %v1587 = vmin.f32 16.0, %v1586
  %v1588 = vmul.f32 %v1587, 2.1237322e-06
  %v1589 = vadd.f32 %v1588, 0.00028619796
  %v1590 = vmul.f32 %v1587, %v1589
  %v1591 = vadd.f32 %v1590, 0.0036580483
  %v1592 = vmul.f32 %v1587, %v1591
  %v1593 = vadd.f32 %v1592, 0.05243302
  %v1594 = vmul.f32 %v1587, %v1593
  %v1595 = vadd.f32 %v1594, 0.18741608
  %v1596 = vmul.f32 %v1587, %v1595
  %v1597 = vadd.f32 %v1596, 1.1283791
  %v1598 = vmul.f32 %v586, %v1597
  %v1599 = vmul.f32 %v1587, 3.8918573e-05
  %v1600 = vadd.f32 %v1599, 0.001143296
  %v1601 = vmul.f32 %v1587, %v1600
  %v1602 = vadd.f32 %v1601, 0.014752088
  %v1603 = vmul.f32 %v1587, %v1602
  %v1604 = vadd.f32 %v1603, 0.112945676
  %v1605 = vmul.f32 %v1587, %v1604
  %v1606 = vadd.f32 %v1605, 0.4994258
  %v1607 = vmul.f32 %v1587, %v1606
  %v1608 = vadd.f32 %v1607, 1.0
  %v1609 = vrcp.pop %v1608
  %v1610 = vmul.f32 %v1608, %v1609
  %v1611 = vsub.f32 1.0, %v1610
  %v1612 = vmul.f32 %v1609, %v1611
  %v1613 = vadd.f32 %v1609, %v1612
  %vm1614 = vweird.f32 %v1608
  %vm1615 = vweird.f32 %v1609
  %vm1616 = vmor %vm1614, %vm1615
  %v1617 = vsel %vm1616, %v1609, %v1613
  %v1618 = vand.u32 2147483647, %v1608
  %vm1619 = vcmp.eq.f32.partialorder %v1618, 8.507059e+37
  %v1620 = vand.u32 %v1608, 2147483648
  %v1621 = vor.u32 1.1754944e-38, %v1620
  %v1622 = vsel %vm1619, %v1621, %v1617
  %v1623 = vmul.f32 %v1598, %v1622
  %v1624 = vmin.f32 %v1623, 1.0
  %v1625 = vmax.f32 %v1624, -1.0
  %v1626 = vmul.f32 %v587, %v587
  %v1627 = vmin.f32 16.0, %v1626
  %v1628 = vmul.f32 %v1627, 2.1237322e-06
  %v1629 = vadd.f32 %v1628, 0.00028619796
  %v1630 = vmul.f32 %v1627, %v1629
  %v1631 = vadd.f32 %v1630, 0.0036580483
  %v1632 = vmul.f32 %v1627, %v1631
  %v1633 = vadd.f32 %v1632, 0.05243302
  %v1634 = vmul.f32 %v1627, %v1633
  %v1635 = vadd.f32 %v1634, 0.18741608
  %v1636 = vmul.f32 %v1627, %v1635
  %v1637 = vadd.f32 %v1636, 1.1283791
  %v1638 = vmul.f32 %v587, %v1637
  %v1639 = vmul.f32 %v1627, 3.8918573e-05
  %v1640 = vadd.f32 %v1639, 0.001143296
  %v1641 = vmul.f32 %v1627, %v1640
  %v1642 = vadd.f32 %v1641, 0.014752088
  %v1643 = vmul.f32 %v1627, %v1642
  %v1644 = vadd.f32 %v1643, 0.112945676
  %v1645 = vmul.f32 %v1627, %v1644
  %v1646 = vadd.f32 %v1645, 0.4994258
  %v1647 = vmul.f32 %v1627, %v1646
  %v1648 = vadd.f32 %v1647, 1.0
  %v1649 = vrcp.pop %v1648
  %v1650 = vmul.f32 %v1648, %v1649
  %v1651 = vsub.f32 1.0, %v1650
  %v1652 = vmul.f32 %v1649, %v1651
  %v1653 = vadd.f32 %v1649, %v1652
  %vm1654 = vweird.f32 %v1648
  %vm1655 = vweird.f32 %v1649
  %vm1656 = vmor %vm1654, %vm1655
  %v1657 = vsel %vm1656, %v1649, %v1653
  %v1658 = vand.u32 2147483647, %v1648
  %vm1659 = vcmp.eq.f32.partialorder %v1658, 8.507059e+37
  %v1660 = vand.u32 %v1648, 2147483648
  %v1661 = vor.u32 1.1754944e-38, %v1660
  %v1662 = vsel %vm1659, %v1661, %v1657
  %v1663 = vmul.f32 %v1638, %v1662
  %v1664 = vmin.f32 %v1663, 1.0
  %v1665 = vmax.f32 %v1664, -1.0
  %v1666 = vmul.f32 %v588, %v588
  %v1667 = vmin.f32 16.0, %v1666
  %v1668 = vmul.f32 %v1667, 2.1237322e-06
  %v1669 = vadd.f32 %v1668, 0.00028619796
  %v1670 = vmul.f32 %v1667, %v1669
  %v1671 = vadd.f32 %v1670, 0.0036580483
  %v1672 = vmul.f32 %v1667, %v1671
  %v1673 = vadd.f32 %v1672, 0.05243302
  %v1674 = vmul.f32 %v1667, %v1673
  %v1675 = vadd.f32 %v1674, 0.18741608
  %v1676 = vmul.f32 %v1667, %v1675
  %v1677 = vadd.f32 %v1676, 1.1283791
  %v1678 = vmul.f32 %v588, %v1677
  %v1679 = vmul.f32 %v1667, 3.8918573e-05
  %v1680 = vadd.f32 %v1679, 0.001143296
  %v1681 = vmul.f32 %v1667, %v1680
  %v1682 = vadd.f32 %v1681, 0.014752088
  %v1683 = vmul.f32 %v1667, %v1682
  %v1684 = vadd.f32 %v1683, 0.112945676
  %v1685 = vmul.f32 %v1667, %v1684
  %v1686 = vadd.f32 %v1685, 0.4994258
  %v1687 = vmul.f32 %v1667, %v1686
  %v1688 = vadd.f32 %v1687, 1.0
  %v1689 = vrcp.pop %v1688
  %v1690 = vmul.f32 %v1688, %v1689
  %v1691 = vsub.f32 1.0, %v1690
  %v1692 = vmul.f32 %v1689, %v1691
  %v1693 = vadd.f32 %v1689, %v1692
  %vm1694 = vweird.f32 %v1688
  %vm1695 = vweird.f32 %v1689
  %vm1696 = vmor %vm1694, %vm1695
  %v1697 = vsel %vm1696, %v1689, %v1693
  %v1698 = vand.u32 2147483647, %v1688
  %vm1699 = vcmp.eq.f32.partialorder %v1698, 8.507059e+37
  %v1700 = vand.u32 %v1688, 2147483648
  %v1701 = vor.u32 1.1754944e-38, %v1700
  %v1702 = vsel %vm1699, %v1701, %v1697
  %v1703 = vmul.f32 %v1678, %v1702
  %v1704 = vmin.f32 %v1703, 1.0
  %v1705 = vmax.f32 %v1704, -1.0
  %v1706 = vmul.f32 %v589, %v589
  %v1707 = vmin.f32 16.0, %v1706
  %v1708 = vmul.f32 %v1707, 2.1237322e-06
  %v1709 = vadd.f32 %v1708, 0.00028619796
  %v1710 = vmul.f32 %v1707, %v1709
  %v1711 = vadd.f32 %v1710, 0.0036580483
  %v1712 = vmul.f32 %v1707, %v1711
  %v1713 = vadd.f32 %v1712, 0.05243302
  %v1714 = vmul.f32 %v1707, %v1713
  %v1715 = vadd.f32 %v1714, 0.18741608
  %v1716 = vmul.f32 %v1707, %v1715
  %v1717 = vadd.f32 %v1716, 1.1283791
  %v1718 = vmul.f32 %v589, %v1717
  %v1719 = vmul.f32 %v1707, 3.8918573e-05
  %v1720 = vadd.f32 %v1719, 0.001143296
  %v1721 = vmul.f32 %v1707, %v1720
  %v1722 = vadd.f32 %v1721, 0.014752088
  %v1723 = vmul.f32 %v1707, %v1722
  %v1724 = vadd.f32 %v1723, 0.112945676
  %v1725 = vmul.f32 %v1707, %v1724
  %v1726 = vadd.f32 %v1725, 0.4994258
  %v1727 = vmul.f32 %v1707, %v1726
  %v1728 = vadd.f32 %v1727, 1.0
  %v1729 = vrcp.pop %v1728
  %v1730 = vmul.f32 %v1728, %v1729
  %v1731 = vsub.f32 1.0, %v1730
  %v1732 = vmul.f32 %v1729, %v1731
  %v1733 = vadd.f32 %v1729, %v1732
  %vm1734 = vweird.f32 %v1728
  %vm1735 = vweird.f32 %v1729
  %vm1736 = vmor %vm1734, %vm1735
  %v1737 = vsel %vm1736, %v1729, %v1733
  %v1738 = vand.u32 2147483647, %v1728
  %vm1739 = vcmp.eq.f32.partialorder %v1738, 8.507059e+37
  %v1740 = vand.u32 %v1728, 2147483648
  %v1741 = vor.u32 1.1754944e-38, %v1740
  %v1742 = vsel %vm1739, %v1741, %v1737
  %v1743 = vmul.f32 %v1718, %v1742
  %v1744 = vmin.f32 %v1743, 1.0
  %v1745 = vmax.f32 %v1744, -1.0
  %v1746 = vmul.f32 %v590, %v590
  %v1747 = vmin.f32 16.0, %v1746
  %v1748 = vmul.f32 %v1747, 2.1237322e-06
  %v1749 = vadd.f32 %v1748, 0.00028619796
  %v1750 = vmul.f32 %v1747, %v1749
  %v1751 = vadd.f32 %v1750, 0.0036580483
  %v1752 = vmul.f32 %v1747, %v1751
  %v1753 = vadd.f32 %v1752, 0.05243302
  %v1754 = vmul.f32 %v1747, %v1753
  %v1755 = vadd.f32 %v1754, 0.18741608
  %v1756 = vmul.f32 %v1747, %v1755
  %v1757 = vadd.f32 %v1756, 1.1283791
  %v1758 = vmul.f32 %v590, %v1757
  %v1759 = vmul.f32 %v1747, 3.8918573e-05
  %v1760 = vadd.f32 %v1759, 0.001143296
  %v1761 = vmul.f32 %v1747, %v1760
  %v1762 = vadd.f32 %v1761, 0.014752088
  %v1763 = vmul.f32 %v1747, %v1762
  %v1764 = vadd.f32 %v1763, 0.112945676
  %v1765 = vmul.f32 %v1747, %v1764
  %v1766 = vadd.f32 %v1765, 0.4994258
  %v1767 = vmul.f32 %v1747, %v1766
  %v1768 = vadd.f32 %v1767, 1.0
  %v1769 = vrcp.pop %v1768
  %v1770 = vmul.f32 %v1768, %v1769
  %v1771 = vsub.f32 1.0, %v1770
  %v1772 = vmul.f32 %v1769, %v1771
  %v1773 = vadd.f32 %v1769, %v1772
  %vm1774 = vweird.f32 %v1768
  %vm1775 = vweird.f32 %v1769
  %vm1776 = vmor %vm1774, %vm1775
  %v1777 = vsel %vm1776, %v1769, %v1773
  %v1778 = vand.u32 2147483647, %v1768
  %vm1779 = vcmp.eq.f32.partialorder %v1778, 8.507059e+37
  %v1780 = vand.u32 %v1768, 2147483648
  %v1781 = vor.u32 1.1754944e-38, %v1780
  %v1782 = vsel %vm1779, %v1781, %v1777
  %v1783 = vmul.f32 %v1758, %v1782
  %v1784 = vmin.f32 %v1783, 1.0
  %v1785 = vmax.f32 %v1784, -1.0
  %v1786 = vmul.f32 %v591, %v591
  %v1787 = vmin.f32 16.0, %v1786
  %v1788 = vmul.f32 %v1787, 2.1237322e-06
  %v1789 = vadd.f32 %v1788, 0.00028619796
  %v1790 = vmul.f32 %v1787, %v1789
  %v1791 = vadd.f32 %v1790, 0.0036580483
  %v1792 = vmul.f32 %v1787, %v1791
  %v1793 = vadd.f32 %v1792, 0.05243302
  %v1794 = vmul.f32 %v1787, %v1793
  %v1795 = vadd.f32 %v1794, 0.18741608
  %v1796 = vmul.f32 %v1787, %v1795
  %v1797 = vadd.f32 %v1796, 1.1283791
  %v1798 = vmul.f32 %v591, %v1797
  %v1799 = vmul.f32 %v1787, 3.8918573e-05
  %v1800 = vadd.f32 %v1799, 0.001143296
  %v1801 = vmul.f32 %v1787, %v1800
  %v1802 = vadd.f32 %v1801, 0.014752088
  %v1803 = vmul.f32 %v1787, %v1802
  %v1804 = vadd.f32 %v1803, 0.112945676
  %v1805 = vmul.f32 %v1787, %v1804
  %v1806 = vadd.f32 %v1805, 0.4994258
  %v1807 = vmul.f32 %v1787, %v1806
  %v1808 = vadd.f32 %v1807, 1.0
  %v1809 = vrcp.pop %v1808
  %v1810 = vmul.f32 %v1808, %v1809
  %v1811 = vsub.f32 1.0, %v1810
  %v1812 = vmul.f32 %v1809, %v1811
  %v1813 = vadd.f32 %v1809, %v1812
  %vm1814 = vweird.f32 %v1808
  %vm1815 = vweird.f32 %v1809
  %vm1816 = vmor %vm1814, %vm1815
  %v1817 = vsel %vm1816, %v1809, %v1813
  %v1818 = vand.u32 2147483647, %v1808
  %vm1819 = vcmp.eq.f32.partialorder %v1818, 8.507059e+37
  %v1820 = vand.u32 %v1808, 2147483648
  %v1821 = vor.u32 1.1754944e-38, %v1820
  %v1822 = vsel %vm1819, %v1821, %v1817
  %v1823 = vmul.f32 %v1798, %v1822
  %v1824 = vmin.f32 %v1823, 1.0
  %v1825 = vmax.f32 %v1824, -1.0
  %v1826 = vmul.f32 %v592, %v592
  %v1827 = vmin.f32 16.0, %v1826
  %v1828 = vmul.f32 %v1827, 2.1237322e-06
  %v1829 = vadd.f32 %v1828, 0.00028619796
  %v1830 = vmul.f32 %v1827, %v1829
  %v1831 = vadd.f32 %v1830, 0.0036580483
  %v1832 = vmul.f32 %v1827, %v1831
  %v1833 = vadd.f32 %v1832, 0.05243302
  %v1834 = vmul.f32 %v1827, %v1833
  %v1835 = vadd.f32 %v1834, 0.18741608
  %v1836 = vmul.f32 %v1827, %v1835
  %v1837 = vadd.f32 %v1836, 1.1283791
  %v1838 = vmul.f32 %v592, %v1837
  %v1839 = vmul.f32 %v1827, 3.8918573e-05
  %v1840 = vadd.f32 %v1839, 0.001143296
  %v1841 = vmul.f32 %v1827, %v1840
  %v1842 = vadd.f32 %v1841, 0.014752088
  %v1843 = vmul.f32 %v1827, %v1842
  %v1844 = vadd.f32 %v1843, 0.112945676
  %v1845 = vmul.f32 %v1827, %v1844
  %v1846 = vadd.f32 %v1845, 0.4994258
  %v1847 = vmul.f32 %v1827, %v1846
  %v1848 = vadd.f32 %v1847, 1.0
  %v1849 = vrcp.pop %v1848
  %v1850 = vmul.f32 %v1848, %v1849
  %v1851 = vsub.f32 1.0, %v1850
  %v1852 = vmul.f32 %v1849, %v1851
  %v1853 = vadd.f32 %v1849, %v1852
  %vm1854 = vweird.f32 %v1848
  %vm1855 = vweird.f32 %v1849
  %vm1856 = vmor %vm1854, %vm1855
  %v1857 = vsel %vm1856, %v1849, %v1853
  %v1858 = vand.u32 2147483647, %v1848
  %vm1859 = vcmp.eq.f32.partialorder %v1858, 8.507059e+37
  %v1860 = vand.u32 %v1848, 2147483648
  %v1861 = vor.u32 1.1754944e-38, %v1860
  %v1862 = vsel %vm1859, %v1861, %v1857
  %v1863 = vmul.f32 %v1838, %v1862
  %v1864 = vmin.f32 %v1863, 1.0
  %v1865 = vmax.f32 %v1864, -1.0
  %v1866 = vmul.f32 %v593, %v593
  %v1867 = vmin.f32 16.0, %v1866
  %v1868 = vmul.f32 %v1867, 2.1237322e-06
  %v1869 = vadd.f32 %v1868, 0.00028619796
  %v1870 = vmul.f32 %v1867, %v1869
  %v1871 = vadd.f32 %v1870, 0.0036580483
  %v1872 = vmul.f32 %v1867, %v1871
  %v1873 = vadd.f32 %v1872, 0.05243302
  %v1874 = vmul.f32 %v1867, %v1873
  %v1875 = vadd.f32 %v1874, 0.18741608
  %v1876 = vmul.f32 %v1867, %v1875
  %v1877 = vadd.f32 %v1876, 1.1283791
  %v1878 = vmul.f32 %v593, %v1877
  %v1879 = vmul.f32 %v1867, 3.8918573e-05
  %v1880 = vadd.f32 %v1879, 0.001143296
  %v1881 = vmul.f32 %v1867, %v1880
  %v1882 = vadd.f32 %v1881, 0.014752088
  %v1883 = vmul.f32 %v1867, %v1882
  %v1884 = vadd.f32 %v1883, 0.112945676
  %v1885 = vmul.f32 %v1867, %v1884
  %v1886 = vadd.f32 %v1885, 0.4994258
  %v1887 = vmul.f32 %v1867, %v1886
  %v1888 = vadd.f32 %v1887, 1.0
  %v1889 = vrcp.pop %v1888
  %v1890 = vmul.f32 %v1888, %v1889
  %v1891 = vsub.f32 1.0, %v1890
  %v1892 = vmul.f32 %v1889, %v1891
  %v1893 = vadd.f32 %v1889, %v1892
  %vm1894 = vweird.f32 %v1888
  %vm1895 = vweird.f32 %v1889
  %vm1896 = vmor %vm1894, %vm1895
  %v1897 = vsel %vm1896, %v1889, %v1893
  %v1898 = vand.u32 2147483647, %v1888
  %vm1899 = vcmp.eq.f32.partialorder %v1898, 8.507059e+37
  %v1900 = vand.u32 %v1888, 2147483648
  %v1901 = vor.u32 1.1754944e-38, %v1900
  %v1902 = vsel %vm1899, %v1901, %v1897
  %v1903 = vmul.f32 %v1878, %v1902
  %v1904 = vmin.f32 %v1903, 1.0
  %v1905 = vmax.f32 %v1904, -1.0
  %v1906 = vmul.f32 %v594, %v594
  %v1907 = vmin.f32 16.0, %v1906
  %v1908 = vmul.f32 %v1907, 2.1237322e-06
  %v1909 = vadd.f32 %v1908, 0.00028619796
  %v1910 = vmul.f32 %v1907, %v1909
  %v1911 = vadd.f32 %v1910, 0.0036580483
  %v1912 = vmul.f32 %v1907, %v1911
  %v1913 = vadd.f32 %v1912, 0.05243302
  %v1914 = vmul.f32 %v1907, %v1913
  %v1915 = vadd.f32 %v1914, 0.18741608
  %v1916 = vmul.f32 %v1907, %v1915
  %v1917 = vadd.f32 %v1916, 1.1283791
  %v1918 = vmul.f32 %v594, %v1917
  %v1919 = vmul.f32 %v1907, 3.8918573e-05
  %v1920 = vadd.f32 %v1919, 0.001143296
  %v1921 = vmul.f32 %v1907, %v1920
  %v1922 = vadd.f32 %v1921, 0.014752088
  %v1923 = vmul.f32 %v1907, %v1922
  %v1924 = vadd.f32 %v1923, 0.112945676
  %v1925 = vmul.f32 %v1907, %v1924
  %v1926 = vadd.f32 %v1925, 0.4994258
  %v1927 = vmul.f32 %v1907, %v1926
  %v1928 = vadd.f32 %v1927, 1.0
  %v1929 = vrcp.pop %v1928
  %v1930 = vmul.f32 %v1928, %v1929
  %v1931 = vsub.f32 1.0, %v1930
  %v1932 = vmul.f32 %v1929, %v1931
  %v1933 = vadd.f32 %v1929, %v1932
  %vm1934 = vweird.f32 %v1928
  %vm1935 = vweird.f32 %v1929
  %vm1936 = vmor %vm1934, %vm1935
  %v1937 = vsel %vm1936, %v1929, %v1933
  %v1938 = vand.u32 2147483647, %v1928
  %vm1939 = vcmp.eq.f32.partialorder %v1938, 8.507059e+37
  %v1940 = vand.u32 %v1928, 2147483648
  %v1941 = vor.u32 1.1754944e-38, %v1940
  %v1942 = vsel %vm1939, %v1941, %v1937
  %v1943 = vmul.f32 %v1918, %v1942
  %v1944 = vmin.f32 %v1943, 1.0
  %v1945 = vmax.f32 %v1944, -1.0
  %v1946 = vmul.f32 %v595, %v595
  %v1947 = vmin.f32 16.0, %v1946
  %v1948 = vmul.f32 %v1947, 2.1237322e-06
  %v1949 = vadd.f32 %v1948, 0.00028619796
  %v1950 = vmul.f32 %v1947, %v1949
  %v1951 = vadd.f32 %v1950, 0.0036580483
  %v1952 = vmul.f32 %v1947, %v1951
  %v1953 = vadd.f32 %v1952, 0.05243302
  %v1954 = vmul.f32 %v1947, %v1953
  %v1955 = vadd.f32 %v1954, 0.18741608
  %v1956 = vmul.f32 %v1947, %v1955
  %v1957 = vadd.f32 %v1956, 1.1283791
  %v1958 = vmul.f32 %v595, %v1957
  %v1959 = vmul.f32 %v1947, 3.8918573e-05
  %v1960 = vadd.f32 %v1959, 0.001143296
  %v1961 = vmul.f32 %v1947, %v1960
  %v1962 = vadd.f32 %v1961, 0.014752088
  %v1963 = vmul.f32 %v1947, %v1962
  %v1964 = vadd.f32 %v1963, 0.112945676
  %v1965 = vmul.f32 %v1947, %v1964
  %v1966 = vadd.f32 %v1965, 0.4994258
  %v1967 = vmul.f32 %v1947, %v1966
  %v1968 = vadd.f32 %v1967, 1.0
  %v1969 = vrcp.pop %v1968
  %v1970 = vmul.f32 %v1968, %v1969
  %v1971 = vsub.f32 1.0, %v1970
  %v1972 = vmul.f32 %v1969, %v1971
  %v1973 = vadd.f32 %v1969, %v1972
  %vm1974 = vweird.f32 %v1968
  %vm1975 = vweird.f32 %v1969
  %vm1976 = vmor %vm1974, %vm1975
  %v1977 = vsel %vm1976, %v1969, %v1973
  %v1978 = vand.u32 2147483647, %v1968
  %vm1979 = vcmp.eq.f32.partialorder %v1978, 8.507059e+37
  %v1980 = vand.u32 %v1968, 2147483648
  %v1981 = vor.u32 1.1754944e-38, %v1980
  %v1982 = vsel %vm1979, %v1981, %v1977
  %v1983 = vmul.f32 %v1958, %v1982
  %v1984 = vmin.f32 %v1983, 1.0
  %v1985 = vmax.f32 %v1984, -1.0
  %v1986 = vmul.f32 %v596, %v596
  %v1987 = vmin.f32 16.0, %v1986
  %v1988 = vmul.f32 %v1987, 2.1237322e-06
  %v1989 = vadd.f32 %v1988, 0.00028619796
  %v1990 = vmul.f32 %v1987, %v1989
  %v1991 = vadd.f32 %v1990, 0.0036580483
  %v1992 = vmul.f32 %v1987, %v1991
  %v1993 = vadd.f32 %v1992, 0.05243302
  %v1994 = vmul.f32 %v1987, %v1993
  %v1995 = vadd.f32 %v1994, 0.18741608
  %v1996 = vmul.f32 %v1987, %v1995
  %v1997 = vadd.f32 %v1996, 1.1283791
  %v1998 = vmul.f32 %v596, %v1997
  %v1999 = vmul.f32 %v1987, 3.8918573e-05
  %v2000 = vadd.f32 %v1999, 0.001143296
  %v2001 = vmul.f32 %v1987, %v2000
  %v2002 = vadd.f32 %v2001, 0.014752088
  %v2003 = vmul.f32 %v1987, %v2002
  %v2004 = vadd.f32 %v2003, 0.112945676
  %v2005 = vmul.f32 %v1987, %v2004
  %v2006 = vadd.f32 %v2005, 0.4994258
  %v2007 = vmul.f32 %v1987, %v2006
  %v2008 = vadd.f32 %v2007, 1.0
  %v2009 = vrcp.pop %v2008
  %v2010 = vmul.f32 %v2008, %v2009
  %v2011 = vsub.f32 1.0, %v2010
  %v2012 = vmul.f32 %v2009, %v2011
  %v2013 = vadd.f32 %v2009, %v2012
  %vm2014 = vweird.f32 %v2008
  %vm2015 = vweird.f32 %v2009
  %vm2016 = vmor %vm2014, %vm2015
  %v2017 = vsel %vm2016, %v2009, %v2013
  %v2018 = vand.u32 2147483647, %v2008
  %vm2019 = vcmp.eq.f32.partialorder %v2018, 8.507059e+37
  %v2020 = vand.u32 %v2008, 2147483648
  %v2021 = vor.u32 1.1754944e-38, %v2020
  %v2022 = vsel %vm2019, %v2021, %v2017
  %v2023 = vmul.f32 %v1998, %v2022
  %v2024 = vmin.f32 %v2023, 1.0
  %v2025 = vmax.f32 %v2024, -1.0
  %v2026 = vmul.f32 %v597, %v597
  %v2027 = vmin.f32 16.0, %v2026
  %v2028 = vmul.f32 %v2027, 2.1237322e-06
  %v2029 = vadd.f32 %v2028, 0.00028619796
  %v2030 = vmul.f32 %v2027, %v2029
  %v2031 = vadd.f32 %v2030, 0.0036580483
  %v2032 = vmul.f32 %v2027, %v2031
  %v2033 = vadd.f32 %v2032, 0.05243302
  %v2034 = vmul.f32 %v2027, %v2033
  %v2035 = vadd.f32 %v2034, 0.18741608
  %v2036 = vmul.f32 %v2027, %v2035
  %v2037 = vadd.f32 %v2036, 1.1283791
  %v2038 = vmul.f32 %v597, %v2037
  %v2039 = vmul.f32 %v2027, 3.8918573e-05
  %v2040 = vadd.f32 %v2039, 0.001143296
  %v2041 = vmul.f32 %v2027, %v2040
  %v2042 = vadd.f32 %v2041, 0.014752088
  %v2043 = vmul.f32 %v2027, %v2042
  %v2044 = vadd.f32 %v2043, 0.112945676
  %v2045 = vmul.f32 %v2027, %v2044
  %v2046 = vadd.f32 %v2045, 0.4994258
  %v2047 = vmul.f32 %v2027, %v2046
  %v2048 = vadd.f32 %v2047, 1.0
  %v2049 = vrcp.pop %v2048
  %v2050 = vmul.f32 %v2048, %v2049
  %v2051 = vsub.f32 1.0, %v2050
  %v2052 = vmul.f32 %v2049, %v2051
  %v2053 = vadd.f32 %v2049, %v2052
  %vm2054 = vweird.f32 %v2048
  %vm2055 = vweird.f32 %v2049
  %vm2056 = vmor %vm2054, %vm2055
  %v2057 = vsel %vm2056, %v2049, %v2053
  %v2058 = vand.u32 2147483647, %v2048
  %vm2059 = vcmp.eq.f32.partialorder %v2058, 8.507059e+37
  %v2060 = vand.u32 %v2048, 2147483648
  %v2061 = vor.u32 1.1754944e-38, %v2060
  %v2062 = vsel %vm2059, %v2061, %v2057
  %v2063 = vmul.f32 %v2038, %v2062
  %v2064 = vmin.f32 %v2063, 1.0
  %v2065 = vmax.f32 %v2064, -1.0
  %v2066 = vmul.f32 %v598, %v598
  %v2067 = vmin.f32 16.0, %v2066
  %v2068 = vmul.f32 %v2067, 2.1237322e-06
  %v2069 = vadd.f32 %v2068, 0.00028619796
  %v2070 = vmul.f32 %v2067, %v2069
  %v2071 = vadd.f32 %v2070, 0.0036580483
  %v2072 = vmul.f32 %v2067, %v2071
  %v2073 = vadd.f32 %v2072, 0.05243302
  %v2074 = vmul.f32 %v2067, %v2073
  %v2075 = vadd.f32 %v2074, 0.18741608
  %v2076 = vmul.f32 %v2067, %v2075
  %v2077 = vadd.f32 %v2076, 1.1283791
  %v2078 = vmul.f32 %v598, %v2077
  %v2079 = vmul.f32 %v2067, 3.8918573e-05
  %v2080 = vadd.f32 %v2079, 0.001143296
  %v2081 = vmul.f32 %v2067, %v2080
  %v2082 = vadd.f32 %v2081, 0.014752088
  %v2083 = vmul.f32 %v2067, %v2082
  %v2084 = vadd.f32 %v2083, 0.112945676
  %v2085 = vmul.f32 %v2067, %v2084
  %v2086 = vadd.f32 %v2085, 0.4994258
  %v2087 = vmul.f32 %v2067, %v2086
  %v2088 = vadd.f32 %v2087, 1.0
  %v2089 = vrcp.pop %v2088
  %v2090 = vmul.f32 %v2088, %v2089
  %v2091 = vsub.f32 1.0, %v2090
  %v2092 = vmul.f32 %v2089, %v2091
  %v2093 = vadd.f32 %v2089, %v2092
  %vm2094 = vweird.f32 %v2088
  %vm2095 = vweird.f32 %v2089
  %vm2096 = vmor %vm2094, %vm2095
  %v2097 = vsel %vm2096, %v2089, %v2093
  %v2098 = vand.u32 2147483647, %v2088
  %vm2099 = vcmp.eq.f32.partialorder %v2098, 8.507059e+37
  %v2100 = vand.u32 %v2088, 2147483648
  %v2101 = vor.u32 1.1754944e-38, %v2100
  %v2102 = vsel %vm2099, %v2101, %v2097
  %v2103 = vmul.f32 %v2078, %v2102
  %v2104 = vmin.f32 %v2103, 1.0
  %v2105 = vmax.f32 %v2104, -1.0
  %v2106 = vmul.f32 %v599, %v599
  %v2107 = vmin.f32 16.0, %v2106
  %v2108 = vmul.f32 %v2107, 2.1237322e-06
  %v2109 = vadd.f32 %v2108, 0.00028619796
  %v2110 = vmul.f32 %v2107, %v2109
  %v2111 = vadd.f32 %v2110, 0.0036580483
  %v2112 = vmul.f32 %v2107, %v2111
  %v2113 = vadd.f32 %v2112, 0.05243302
  %v2114 = vmul.f32 %v2107, %v2113
  %v2115 = vadd.f32 %v2114, 0.18741608
  %v2116 = vmul.f32 %v2107, %v2115
  %v2117 = vadd.f32 %v2116, 1.1283791
  %v2118 = vmul.f32 %v599, %v2117
  %v2119 = vmul.f32 %v2107, 3.8918573e-05
  %v2120 = vadd.f32 %v2119, 0.001143296
  %v2121 = vmul.f32 %v2107, %v2120
  %v2122 = vadd.f32 %v2121, 0.014752088
  %v2123 = vmul.f32 %v2107, %v2122
  %v2124 = vadd.f32 %v2123, 0.112945676
  %v2125 = vmul.f32 %v2107, %v2124
  %v2126 = vadd.f32 %v2125, 0.4994258
  %v2127 = vmul.f32 %v2107, %v2126
  %v2128 = vadd.f32 %v2127, 1.0
  %v2129 = vrcp.pop %v2128
  %v2130 = vmul.f32 %v2128, %v2129
  %v2131 = vsub.f32 1.0, %v2130
  %v2132 = vmul.f32 %v2129, %v2131
  %v2133 = vadd.f32 %v2129, %v2132
  %vm2134 = vweird.f32 %v2128
  %vm2135 = vweird.f32 %v2129
  %vm2136 = vmor %vm2134, %vm2135
  %v2137 = vsel %vm2136, %v2129, %v2133
  %v2138 = vand.u32 2147483647, %v2128
  %vm2139 = vcmp.eq.f32.partialorder %v2138, 8.507059e+37
  %v2140 = vand.u32 %v2128, 2147483648
  %v2141 = vor.u32 1.1754944e-38, %v2140
  %v2142 = vsel %vm2139, %v2141, %v2137
  %v2143 = vmul.f32 %v2118, %v2142
  %v2144 = vmin.f32 %v2143, 1.0
  %v2145 = vmax.f32 %v2144, -1.0
  %v2146 = vmul.f32 %v600, %v600
  %v2147 = vmin.f32 16.0, %v2146
  %v2148 = vmul.f32 %v2147, 2.1237322e-06
  %v2149 = vadd.f32 %v2148, 0.00028619796
  %v2150 = vmul.f32 %v2147, %v2149
  %v2151 = vadd.f32 %v2150, 0.0036580483
  %v2152 = vmul.f32 %v2147, %v2151
  %v2153 = vadd.f32 %v2152, 0.05243302
  %v2154 = vmul.f32 %v2147, %v2153
  %v2155 = vadd.f32 %v2154, 0.18741608
  %v2156 = vmul.f32 %v2147, %v2155
  %v2157 = vadd.f32 %v2156, 1.1283791
  %v2158 = vmul.f32 %v600, %v2157
  %v2159 = vmul.f32 %v2147, 3.8918573e-05
  %v2160 = vadd.f32 %v2159, 0.001143296
  %v2161 = vmul.f32 %v2147, %v2160
  %v2162 = vadd.f32 %v2161, 0.014752088
  %v2163 = vmul.f32 %v2147, %v2162
  %v2164 = vadd.f32 %v2163, 0.112945676
  %v2165 = vmul.f32 %v2147, %v2164
  %v2166 = vadd.f32 %v2165, 0.4994258
  %v2167 = vmul.f32 %v2147, %v2166
  %v2168 = vadd.f32 %v2167, 1.0
  %v2169 = vrcp.pop %v2168
  %v2170 = vmul.f32 %v2168, %v2169
  %v2171 = vsub.f32 1.0, %v2170
  %v2172 = vmul.f32 %v2169, %v2171
  %v2173 = vadd.f32 %v2169, %v2172
  %vm2174 = vweird.f32 %v2168
  %vm2175 = vweird.f32 %v2169
  %vm2176 = vmor %vm2174, %vm2175
  %v2177 = vsel %vm2176, %v2169, %v2173
  %v2178 = vand.u32 2147483647, %v2168
  %vm2179 = vcmp.eq.f32.partialorder %v2178, 8.507059e+37
  %v2180 = vand.u32 %v2168, 2147483648
  %v2181 = vor.u32 1.1754944e-38, %v2180
  %v2182 = vsel %vm2179, %v2181, %v2177
  %v2183 = vmul.f32 %v2158, %v2182
  %v2184 = vmin.f32 %v2183, 1.0
  %v2185 = vmax.f32 %v2184, -1.0
  %v2186 = vmul.f32 %v601, %v601
  %v2187 = vmin.f32 16.0, %v2186
  %v2188 = vmul.f32 %v2187, 2.1237322e-06
  %v2189 = vadd.f32 %v2188, 0.00028619796
  %v2190 = vmul.f32 %v2187, %v2189
  %v2191 = vadd.f32 %v2190, 0.0036580483
  %v2192 = vmul.f32 %v2187, %v2191
  %v2193 = vadd.f32 %v2192, 0.05243302
  %v2194 = vmul.f32 %v2187, %v2193
  %v2195 = vadd.f32 %v2194, 0.18741608
  %v2196 = vmul.f32 %v2187, %v2195
  %v2197 = vadd.f32 %v2196, 1.1283791
  %v2198 = vmul.f32 %v601, %v2197
  %v2199 = vmul.f32 %v2187, 3.8918573e-05
  %v2200 = vadd.f32 %v2199, 0.001143296
  %v2201 = vmul.f32 %v2187, %v2200
  %v2202 = vadd.f32 %v2201, 0.014752088
  %v2203 = vmul.f32 %v2187, %v2202
  %v2204 = vadd.f32 %v2203, 0.112945676
  %v2205 = vmul.f32 %v2187, %v2204
  %v2206 = vadd.f32 %v2205, 0.4994258
  %v2207 = vmul.f32 %v2187, %v2206
  %v2208 = vadd.f32 %v2207, 1.0
  %v2209 = vrcp.pop %v2208
  %v2210 = vmul.f32 %v2208, %v2209
  %v2211 = vsub.f32 1.0, %v2210
  %v2212 = vmul.f32 %v2209, %v2211
  %v2213 = vadd.f32 %v2209, %v2212
  %vm2214 = vweird.f32 %v2208
  %vm2215 = vweird.f32 %v2209
  %vm2216 = vmor %vm2214, %vm2215
  %v2217 = vsel %vm2216, %v2209, %v2213
  %v2218 = vand.u32 2147483647, %v2208
  %vm2219 = vcmp.eq.f32.partialorder %v2218, 8.507059e+37
  %v2220 = vand.u32 %v2208, 2147483648
  %v2221 = vor.u32 1.1754944e-38, %v2220
  %v2222 = vsel %vm2219, %v2221, %v2217
  %v2223 = vmul.f32 %v2198, %v2222
  %v2224 = vmin.f32 %v2223, 1.0
  %v2225 = vmax.f32 %v2224, -1.0
  %v2226 = vmul.f32 %v602, %v602
  %v2227 = vmin.f32 16.0, %v2226
  %v2228 = vmul.f32 %v2227, 2.1237322e-06
  %v2229 = vadd.f32 %v2228, 0.00028619796
  %v2230 = vmul.f32 %v2227, %v2229
  %v2231 = vadd.f32 %v2230, 0.0036580483
  %v2232 = vmul.f32 %v2227, %v2231
  %v2233 = vadd.f32 %v2232, 0.05243302
  %v2234 = vmul.f32 %v2227, %v2233
  %v2235 = vadd.f32 %v2234, 0.18741608
  %v2236 = vmul.f32 %v2227, %v2235
  %v2237 = vadd.f32 %v2236, 1.1283791
  %v2238 = vmul.f32 %v602, %v2237
  %v2239 = vmul.f32 %v2227, 3.8918573e-05
  %v2240 = vadd.f32 %v2239, 0.001143296
  %v2241 = vmul.f32 %v2227, %v2240
  %v2242 = vadd.f32 %v2241, 0.014752088
  %v2243 = vmul.f32 %v2227, %v2242
  %v2244 = vadd.f32 %v2243, 0.112945676
  %v2245 = vmul.f32 %v2227, %v2244
  %v2246 = vadd.f32 %v2245, 0.4994258
  %v2247 = vmul.f32 %v2227, %v2246
  %v2248 = vadd.f32 %v2247, 1.0
  %v2249 = vrcp.pop %v2248
  %v2250 = vmul.f32 %v2248, %v2249
  %v2251 = vsub.f32 1.0, %v2250
  %v2252 = vmul.f32 %v2249, %v2251
  %v2253 = vadd.f32 %v2249, %v2252
  %vm2254 = vweird.f32 %v2248
  %vm2255 = vweird.f32 %v2249
  %vm2256 = vmor %vm2254, %vm2255
  %v2257 = vsel %vm2256, %v2249, %v2253
  %v2258 = vand.u32 2147483647, %v2248
  %vm2259 = vcmp.eq.f32.partialorder %v2258, 8.507059e+37
  %v2260 = vand.u32 %v2248, 2147483648
  %v2261 = vor.u32 1.1754944e-38, %v2260
  %v2262 = vsel %vm2259, %v2261, %v2257
  %v2263 = vmul.f32 %v2238, %v2262
  %v2264 = vmin.f32 %v2263, 1.0
  %v2265 = vmax.f32 %v2264, -1.0
  %v2266 = vmul.f32 %v603, %v603
  %v2267 = vmin.f32 16.0, %v2266
  %v2268 = vmul.f32 %v2267, 2.1237322e-06
  %v2269 = vadd.f32 %v2268, 0.00028619796
  %v2270 = vmul.f32 %v2267, %v2269
  %v2271 = vadd.f32 %v2270, 0.0036580483
  %v2272 = vmul.f32 %v2267, %v2271
  %v2273 = vadd.f32 %v2272, 0.05243302
  %v2274 = vmul.f32 %v2267, %v2273
  %v2275 = vadd.f32 %v2274, 0.18741608
  %v2276 = vmul.f32 %v2267, %v2275
  %v2277 = vadd.f32 %v2276, 1.1283791
  %v2278 = vmul.f32 %v603, %v2277
  %v2279 = vmul.f32 %v2267, 3.8918573e-05
  %v2280 = vadd.f32 %v2279, 0.001143296
  %v2281 = vmul.f32 %v2267, %v2280
  %v2282 = vadd.f32 %v2281, 0.014752088
  %v2283 = vmul.f32 %v2267, %v2282
  %v2284 = vadd.f32 %v2283, 0.112945676
  %v2285 = vmul.f32 %v2267, %v2284
  %v2286 = vadd.f32 %v2285, 0.4994258
  %v2287 = vmul.f32 %v2267, %v2286
  %v2288 = vadd.f32 %v2287, 1.0
  %v2289 = vrcp.pop %v2288
  %v2290 = vmul.f32 %v2288, %v2289
  %v2291 = vsub.f32 1.0, %v2290
  %v2292 = vmul.f32 %v2289, %v2291
  %v2293 = vadd.f32 %v2289, %v2292
  %vm2294 = vweird.f32 %v2288
  %vm2295 = vweird.f32 %v2289
  %vm2296 = vmor %vm2294, %vm2295
  %v2297 = vsel %vm2296, %v2289, %v2293
  %v2298 = vand.u32 2147483647, %v2288
  %vm2299 = vcmp.eq.f32.partialorder %v2298, 8.507059e+37
  %v2300 = vand.u32 %v2288, 2147483648
  %v2301 = vor.u32 1.1754944e-38, %v2300
  %v2302 = vsel %vm2299, %v2301, %v2297
  %v2303 = vmul.f32 %v2278, %v2302
  %v2304 = vmin.f32 %v2303, 1.0
  %v2305 = vmax.f32 %v2304, -1.0
  %v2306 = vmul.f32 %v604, %v604
  %v2307 = vmin.f32 16.0, %v2306
  %v2308 = vmul.f32 %v2307, 2.1237322e-06
  %v2309 = vadd.f32 %v2308, 0.00028619796
  %v2310 = vmul.f32 %v2307, %v2309
  %v2311 = vadd.f32 %v2310, 0.0036580483
  %v2312 = vmul.f32 %v2307, %v2311
  %v2313 = vadd.f32 %v2312, 0.05243302
  %v2314 = vmul.f32 %v2307, %v2313
  %v2315 = vadd.f32 %v2314, 0.18741608
  %v2316 = vmul.f32 %v2307, %v2315
  %v2317 = vadd.f32 %v2316, 1.1283791
  %v2318 = vmul.f32 %v604, %v2317
  %v2319 = vmul.f32 %v2307, 3.8918573e-05
  %v2320 = vadd.f32 %v2319, 0.001143296
  %v2321 = vmul.f32 %v2307, %v2320
  %v2322 = vadd.f32 %v2321, 0.014752088
  %v2323 = vmul.f32 %v2307, %v2322
  %v2324 = vadd.f32 %v2323, 0.112945676
  %v2325 = vmul.f32 %v2307, %v2324
  %v2326 = vadd.f32 %v2325, 0.4994258
  %v2327 = vmul.f32 %v2307, %v2326
  %v2328 = vadd.f32 %v2327, 1.0
  %v2329 = vrcp.pop %v2328
  %v2330 = vmul.f32 %v2328, %v2329
  %v2331 = vsub.f32 1.0, %v2330
  %v2332 = vmul.f32 %v2329, %v2331
  %v2333 = vadd.f32 %v2329, %v2332
  %vm2334 = vweird.f32 %v2328
  %vm2335 = vweird.f32 %v2329
  %vm2336 = vmor %vm2334, %vm2335
  %v2337 = vsel %vm2336, %v2329, %v2333
  %v2338 = vand.u32 2147483647, %v2328
  %vm2339 = vcmp.eq.f32.partialorder %v2338, 8.507059e+37
  %v2340 = vand.u32 %v2328, 2147483648
  %v2341 = vor.u32 1.1754944e-38, %v2340
  %v2342 = vsel %vm2339, %v2341, %v2337
  %v2343 = vmul.f32 %v2318, %v2342
  %v2344 = vmin.f32 %v2343, 1.0
  %v2345 = vmax.f32 %v2344, -1.0
  %v2346 = vmul.f32 %v605, %v605
  %v2347 = vmin.f32 16.0, %v2346
  %v2348 = vmul.f32 %v2347, 2.1237322e-06
  %v2349 = vadd.f32 %v2348, 0.00028619796
  %v2350 = vmul.f32 %v2347, %v2349
  %v2351 = vadd.f32 %v2350, 0.0036580483
  %v2352 = vmul.f32 %v2347, %v2351
  %v2353 = vadd.f32 %v2352, 0.05243302
  %v2354 = vmul.f32 %v2347, %v2353
  %v2355 = vadd.f32 %v2354, 0.18741608
  %v2356 = vmul.f32 %v2347, %v2355
  %v2357 = vadd.f32 %v2356, 1.1283791
  %v2358 = vmul.f32 %v605, %v2357
  %v2359 = vmul.f32 %v2347, 3.8918573e-05
  %v2360 = vadd.f32 %v2359, 0.001143296
  %v2361 = vmul.f32 %v2347, %v2360
  %v2362 = vadd.f32 %v2361, 0.014752088
  %v2363 = vmul.f32 %v2347, %v2362
  %v2364 = vadd.f32 %v2363, 0.112945676
  %v2365 = vmul.f32 %v2347, %v2364
  %v2366 = vadd.f32 %v2365, 0.4994258
  %v2367 = vmul.f32 %v2347, %v2366
  %v2368 = vadd.f32 %v2367, 1.0
  %v2369 = vrcp.pop %v2368
  %v2370 = vmul.f32 %v2368, %v2369
  %v2371 = vsub.f32 1.0, %v2370
  %v2372 = vmul.f32 %v2369, %v2371
  %v2373 = vadd.f32 %v2369, %v2372
  %vm2374 = vweird.f32 %v2368
  %vm2375 = vweird.f32 %v2369
  %vm2376 = vmor %vm2374, %vm2375
  %v2377 = vsel %vm2376, %v2369, %v2373
  %v2378 = vand.u32 2147483647, %v2368
  %vm2379 = vcmp.eq.f32.partialorder %v2378, 8.507059e+37
  %v2380 = vand.u32 %v2368, 2147483648
  %v2381 = vor.u32 1.1754944e-38, %v2380
  %v2382 = vsel %vm2379, %v2381, %v2377
  %v2383 = vmul.f32 %v2358, %v2382
  %v2384 = vmin.f32 %v2383, 1.0
  %v2385 = vmax.f32 %v2384, -1.0
  %v2386 = vmul.f32 %v606, %v606
  %v2387 = vmin.f32 16.0, %v2386
  %v2388 = vmul.f32 %v2387, 2.1237322e-06
  %v2389 = vadd.f32 %v2388, 0.00028619796
  %v2390 = vmul.f32 %v2387, %v2389
  %v2391 = vadd.f32 %v2390, 0.0036580483
  %v2392 = vmul.f32 %v2387, %v2391
  %v2393 = vadd.f32 %v2392, 0.05243302
  %v2394 = vmul.f32 %v2387, %v2393
  %v2395 = vadd.f32 %v2394, 0.18741608
  %v2396 = vmul.f32 %v2387, %v2395
  %v2397 = vadd.f32 %v2396, 1.1283791
  %v2398 = vmul.f32 %v606, %v2397
  %v2399 = vmul.f32 %v2387, 3.8918573e-05
  %v2400 = vadd.f32 %v2399, 0.001143296
  %v2401 = vmul.f32 %v2387, %v2400
  %v2402 = vadd.f32 %v2401, 0.014752088
  %v2403 = vmul.f32 %v2387, %v2402
  %v2404 = vadd.f32 %v2403, 0.112945676
  %v2405 = vmul.f32 %v2387, %v2404
  %v2406 = vadd.f32 %v2405, 0.4994258
  %v2407 = vmul.f32 %v2387, %v2406
  %v2408 = vadd.f32 %v2407, 1.0
  %v2409 = vrcp.pop %v2408
  %v2410 = vmul.f32 %v2408, %v2409
  %v2411 = vsub.f32 1.0, %v2410
  %v2412 = vmul.f32 %v2409, %v2411
  %v2413 = vadd.f32 %v2409, %v2412
  %vm2414 = vweird.f32 %v2408
  %vm2415 = vweird.f32 %v2409
  %vm2416 = vmor %vm2414, %vm2415
  %v2417 = vsel %vm2416, %v2409, %v2413
  %v2418 = vand.u32 2147483647, %v2408
  %vm2419 = vcmp.eq.f32.partialorder %v2418, 8.507059e+37
  %v2420 = vand.u32 %v2408, 2147483648
  %v2421 = vor.u32 1.1754944e-38, %v2420
  %v2422 = vsel %vm2419, %v2421, %v2417
  %v2423 = vmul.f32 %v2398, %v2422
  %v2424 = vmin.f32 %v2423, 1.0
  %v2425 = vmax.f32 %v2424, -1.0
  %v2426 = vmul.f32 %v607, %v607
  %v2427 = vmin.f32 16.0, %v2426
  %v2428 = vmul.f32 %v2427, 2.1237322e-06
  %v2429 = vadd.f32 %v2428, 0.00028619796
  %v2430 = vmul.f32 %v2427, %v2429
  %v2431 = vadd.f32 %v2430, 0.0036580483
  %v2432 = vmul.f32 %v2427, %v2431
  %v2433 = vadd.f32 %v2432, 0.05243302
  %v2434 = vmul.f32 %v2427, %v2433
  %v2435 = vadd.f32 %v2434, 0.18741608
  %v2436 = vmul.f32 %v2427, %v2435
  %v2437 = vadd.f32 %v2436, 1.1283791
  %v2438 = vmul.f32 %v607, %v2437
  %v2439 = vmul.f32 %v2427, 3.8918573e-05
  %v2440 = vadd.f32 %v2439, 0.001143296
  %v2441 = vmul.f32 %v2427, %v2440
  %v2442 = vadd.f32 %v2441, 0.014752088
  %v2443 = vmul.f32 %v2427, %v2442
  %v2444 = vadd.f32 %v2443, 0.112945676
  %v2445 = vmul.f32 %v2427, %v2444
  %v2446 = vadd.f32 %v2445, 0.4994258
  %v2447 = vmul.f32 %v2427, %v2446
  %v2448 = vadd.f32 %v2447, 1.0
  %v2449 = vrcp.pop %v2448
  %v2450 = vmul.f32 %v2448, %v2449
  %v2451 = vsub.f32 1.0, %v2450
  %v2452 = vmul.f32 %v2449, %v2451
  %v2453 = vadd.f32 %v2449, %v2452
  %vm2454 = vweird.f32 %v2448
  %vm2455 = vweird.f32 %v2449
  %vm2456 = vmor %vm2454, %vm2455
  %v2457 = vsel %vm2456, %v2449, %v2453
  %v2458 = vand.u32 2147483647, %v2448
  %vm2459 = vcmp.eq.f32.partialorder %v2458, 8.507059e+37
  %v2460 = vand.u32 %v2448, 2147483648
  %v2461 = vor.u32 1.1754944e-38, %v2460
  %v2462 = vsel %vm2459, %v2461, %v2457
  %v2463 = vmul.f32 %v2438, %v2462
  %v2464 = vmin.f32 %v2463, 1.0
  %v2465 = vmax.f32 %v2464, -1.0
  %v2466 = vmul.f32 %v608, %v608
  %v2467 = vmin.f32 16.0, %v2466
  %v2468 = vmul.f32 %v2467, 2.1237322e-06
  %v2469 = vadd.f32 %v2468, 0.00028619796
  %v2470 = vmul.f32 %v2467, %v2469
  %v2471 = vadd.f32 %v2470, 0.0036580483
  %v2472 = vmul.f32 %v2467, %v2471
  %v2473 = vadd.f32 %v2472, 0.05243302
  %v2474 = vmul.f32 %v2467, %v2473
  %v2475 = vadd.f32 %v2474, 0.18741608
  %v2476 = vmul.f32 %v2467, %v2475
  %v2477 = vadd.f32 %v2476, 1.1283791
  %v2478 = vmul.f32 %v608, %v2477
  %v2479 = vmul.f32 %v2467, 3.8918573e-05
  %v2480 = vadd.f32 %v2479, 0.001143296
  %v2481 = vmul.f32 %v2467, %v2480
  %v2482 = vadd.f32 %v2481, 0.014752088
  %v2483 = vmul.f32 %v2467, %v2482
  %v2484 = vadd.f32 %v2483, 0.112945676
  %v2485 = vmul.f32 %v2467, %v2484
  %v2486 = vadd.f32 %v2485, 0.4994258
  %v2487 = vmul.f32 %v2467, %v2486
  %v2488 = vadd.f32 %v2487, 1.0
  %v2489 = vrcp.pop %v2488
  %v2490 = vmul.f32 %v2488, %v2489
  %v2491 = vsub.f32 1.0, %v2490
  %v2492 = vmul.f32 %v2489, %v2491
  %v2493 = vadd.f32 %v2489, %v2492
  %vm2494 = vweird.f32 %v2488
  %vm2495 = vweird.f32 %v2489
  %vm2496 = vmor %vm2494, %vm2495
  %v2497 = vsel %vm2496, %v2489, %v2493
  %v2498 = vand.u32 2147483647, %v2488
  %vm2499 = vcmp.eq.f32.partialorder %v2498, 8.507059e+37
  %v2500 = vand.u32 %v2488, 2147483648
  %v2501 = vor.u32 1.1754944e-38, %v2500
  %v2502 = vsel %vm2499, %v2501, %v2497
  %v2503 = vmul.f32 %v2478, %v2502
  %v2504 = vmin.f32 %v2503, 1.0
  %v2505 = vmax.f32 %v2504, -1.0
  %v2506 = vmul.f32 %v609, %v609
  %v2507 = vmin.f32 16.0, %v2506
  %v2508 = vmul.f32 %v2507, 2.1237322e-06
  %v2509 = vadd.f32 %v2508, 0.00028619796
  %v2510 = vmul.f32 %v2507, %v2509
  %v2511 = vadd.f32 %v2510, 0.0036580483
  %v2512 = vmul.f32 %v2507, %v2511
  %v2513 = vadd.f32 %v2512, 0.05243302
  %v2514 = vmul.f32 %v2507, %v2513
  %v2515 = vadd.f32 %v2514, 0.18741608
  %v2516 = vmul.f32 %v2507, %v2515
  %v2517 = vadd.f32 %v2516, 1.1283791
  %v2518 = vmul.f32 %v609, %v2517
  %v2519 = vmul.f32 %v2507, 3.8918573e-05
  %v2520 = vadd.f32 %v2519, 0.001143296
  %v2521 = vmul.f32 %v2507, %v2520
  %v2522 = vadd.f32 %v2521, 0.014752088
  %v2523 = vmul.f32 %v2507, %v2522
  %v2524 = vadd.f32 %v2523, 0.112945676
  %v2525 = vmul.f32 %v2507, %v2524
  %v2526 = vadd.f32 %v2525, 0.4994258
  %v2527 = vmul.f32 %v2507, %v2526
  %v2528 = vadd.f32 %v2527, 1.0
  %v2529 = vrcp.pop %v2528
  %v2530 = vmul.f32 %v2528, %v2529
  %v2531 = vsub.f32 1.0, %v2530
  %v2532 = vmul.f32 %v2529, %v2531
  %v2533 = vadd.f32 %v2529, %v2532
  %vm2534 = vweird.f32 %v2528
  %vm2535 = vweird.f32 %v2529
  %vm2536 = vmor %vm2534, %vm2535
  %v2537 = vsel %vm2536, %v2529, %v2533
  %v2538 = vand.u32 2147483647, %v2528
  %vm2539 = vcmp.eq.f32.partialorder %v2538, 8.507059e+37
  %v2540 = vand.u32 %v2528, 2147483648
  %v2541 = vor.u32 1.1754944e-38, %v2540
  %v2542 = vsel %vm2539, %v2541, %v2537
  %v2543 = vmul.f32 %v2518, %v2542
  %v2544 = vmin.f32 %v2543, 1.0
  %v2545 = vmax.f32 %v2544, -1.0
  %v2546 = vmul.f32 %v610, %v610
  %v2547 = vmin.f32 16.0, %v2546
  %v2548 = vmul.f32 %v2547, 2.1237322e-06
  %v2549 = vadd.f32 %v2548, 0.00028619796
  %v2550 = vmul.f32 %v2547, %v2549
  %v2551 = vadd.f32 %v2550, 0.0036580483
  %v2552 = vmul.f32 %v2547, %v2551
  %v2553 = vadd.f32 %v2552, 0.05243302
  %v2554 = vmul.f32 %v2547, %v2553
  %v2555 = vadd.f32 %v2554, 0.18741608
  %v2556 = vmul.f32 %v2547, %v2555
  %v2557 = vadd.f32 %v2556, 1.1283791
  %v2558 = vmul.f32 %v610, %v2557
  %v2559 = vmul.f32 %v2547, 3.8918573e-05
  %v2560 = vadd.f32 %v2559, 0.001143296
  %v2561 = vmul.f32 %v2547, %v2560
  %v2562 = vadd.f32 %v2561, 0.014752088
  %v2563 = vmul.f32 %v2547, %v2562
  %v2564 = vadd.f32 %v2563, 0.112945676
  %v2565 = vmul.f32 %v2547, %v2564
  %v2566 = vadd.f32 %v2565, 0.4994258
  %v2567 = vmul.f32 %v2547, %v2566
  %v2568 = vadd.f32 %v2567, 1.0
  %v2569 = vrcp.pop %v2568
  %v2570 = vmul.f32 %v2568, %v2569
  %v2571 = vsub.f32 1.0, %v2570
  %v2572 = vmul.f32 %v2569, %v2571
  %v2573 = vadd.f32 %v2569, %v2572
  %vm2574 = vweird.f32 %v2568
  %vm2575 = vweird.f32 %v2569
  %vm2576 = vmor %vm2574, %vm2575
  %v2577 = vsel %vm2576, %v2569, %v2573
  %v2578 = vand.u32 2147483647, %v2568
  %vm2579 = vcmp.eq.f32.partialorder %v2578, 8.507059e+37
  %v2580 = vand.u32 %v2568, 2147483648
  %v2581 = vor.u32 1.1754944e-38, %v2580
  %v2582 = vsel %vm2579, %v2581, %v2577
  %v2583 = vmul.f32 %v2558, %v2582
  %v2584 = vmin.f32 %v2583, 1.0
  %v2585 = vmax.f32 %v2584, -1.0
  %v2586 = vmul.f32 %v611, %v611
  %v2587 = vmin.f32 16.0, %v2586
  %v2588 = vmul.f32 %v2587, 2.1237322e-06
  %v2589 = vadd.f32 %v2588, 0.00028619796
  %v2590 = vmul.f32 %v2587, %v2589
  %v2591 = vadd.f32 %v2590, 0.0036580483
  %v2592 = vmul.f32 %v2587, %v2591
  %v2593 = vadd.f32 %v2592, 0.05243302
  %v2594 = vmul.f32 %v2587, %v2593
  %v2595 = vadd.f32 %v2594, 0.18741608
  %v2596 = vmul.f32 %v2587, %v2595
  %v2597 = vadd.f32 %v2596, 1.1283791
  %v2598 = vmul.f32 %v611, %v2597
  %v2599 = vmul.f32 %v2587, 3.8918573e-05
  %v2600 = vadd.f32 %v2599, 0.001143296
  %v2601 = vmul.f32 %v2587, %v2600
  %v2602 = vadd.f32 %v2601, 0.014752088
  %v2603 = vmul.f32 %v2587, %v2602
  %v2604 = vadd.f32 %v2603, 0.112945676
  %v2605 = vmul.f32 %v2587, %v2604
  %v2606 = vadd.f32 %v2605, 0.4994258
  %v2607 = vmul.f32 %v2587, %v2606
  %v2608 = vadd.f32 %v2607, 1.0
  %v2609 = vrcp.pop %v2608
  %v2610 = vmul.f32 %v2608, %v2609
  %v2611 = vsub.f32 1.0, %v2610
  %v2612 = vmul.f32 %v2609, %v2611
  %v2613 = vadd.f32 %v2609, %v2612
  %vm2614 = vweird.f32 %v2608
  %vm2615 = vweird.f32 %v2609
  %vm2616 = vmor %vm2614, %vm2615
  %v2617 = vsel %vm2616, %v2609, %v2613
  %v2618 = vand.u32 2147483647, %v2608
  %vm2619 = vcmp.eq.f32.partialorder %v2618, 8.507059e+37
  %v2620 = vand.u32 %v2608, 2147483648
  %v2621 = vor.u32 1.1754944e-38, %v2620
  %v2622 = vsel %vm2619, %v2621, %v2617
  %v2623 = vmul.f32 %v2598, %v2622
  %v2624 = vmin.f32 %v2623, 1.0
  %v2625 = vmax.f32 %v2624, -1.0
  %v2626 = vmul.f32 %v612, %v612
  %v2627 = vmin.f32 16.0, %v2626
  %v2628 = vmul.f32 %v2627, 2.1237322e-06
  %v2629 = vadd.f32 %v2628, 0.00028619796
  %v2630 = vmul.f32 %v2627, %v2629
  %v2631 = vadd.f32 %v2630, 0.0036580483
  %v2632 = vmul.f32 %v2627, %v2631
  %v2633 = vadd.f32 %v2632, 0.05243302
  %v2634 = vmul.f32 %v2627, %v2633
  %v2635 = vadd.f32 %v2634, 0.18741608
  %v2636 = vmul.f32 %v2627, %v2635
  %v2637 = vadd.f32 %v2636, 1.1283791
  %v2638 = vmul.f32 %v612, %v2637
  %v2639 = vmul.f32 %v2627, 3.8918573e-05
  %v2640 = vadd.f32 %v2639, 0.001143296
  %v2641 = vmul.f32 %v2627, %v2640
  %v2642 = vadd.f32 %v2641, 0.014752088
  %v2643 = vmul.f32 %v2627, %v2642
  %v2644 = vadd.f32 %v2643, 0.112945676
  %v2645 = vmul.f32 %v2627, %v2644
  %v2646 = vadd.f32 %v2645, 0.4994258
  %v2647 = vmul.f32 %v2627, %v2646
  %v2648 = vadd.f32 %v2647, 1.0
  %v2649 = vrcp.pop %v2648
  %v2650 = vmul.f32 %v2648, %v2649
  %v2651 = vsub.f32 1.0, %v2650
  %v2652 = vmul.f32 %v2649, %v2651
  %v2653 = vadd.f32 %v2649, %v2652
  %vm2654 = vweird.f32 %v2648
  %vm2655 = vweird.f32 %v2649
  %vm2656 = vmor %vm2654, %vm2655
  %v2657 = vsel %vm2656, %v2649, %v2653
  %v2658 = vand.u32 2147483647, %v2648
  %vm2659 = vcmp.eq.f32.partialorder %v2658, 8.507059e+37
  %v2660 = vand.u32 %v2648, 2147483648
  %v2661 = vor.u32 1.1754944e-38, %v2660
  %v2662 = vsel %vm2659, %v2661, %v2657
  %v2663 = vmul.f32 %v2638, %v2662
  %v2664 = vmin.f32 %v2663, 1.0
  %v2665 = vmax.f32 %v2664, -1.0
  %v2666 = vmul.f32 %v613, %v613
  %v2667 = vmin.f32 16.0, %v2666
  %v2668 = vmul.f32 %v2667, 2.1237322e-06
  %v2669 = vadd.f32 %v2668, 0.00028619796
  %v2670 = vmul.f32 %v2667, %v2669
  %v2671 = vadd.f32 %v2670, 0.0036580483
  %v2672 = vmul.f32 %v2667, %v2671
  %v2673 = vadd.f32 %v2672, 0.05243302
  %v2674 = vmul.f32 %v2667, %v2673
  %v2675 = vadd.f32 %v2674, 0.18741608
  %v2676 = vmul.f32 %v2667, %v2675
  %v2677 = vadd.f32 %v2676, 1.1283791
  %v2678 = vmul.f32 %v613, %v2677
  %v2679 = vmul.f32 %v2667, 3.8918573e-05
  %v2680 = vadd.f32 %v2679, 0.001143296
  %v2681 = vmul.f32 %v2667, %v2680
  %v2682 = vadd.f32 %v2681, 0.014752088
  %v2683 = vmul.f32 %v2667, %v2682
  %v2684 = vadd.f32 %v2683, 0.112945676
  %v2685 = vmul.f32 %v2667, %v2684
  %v2686 = vadd.f32 %v2685, 0.4994258
  %v2687 = vmul.f32 %v2667, %v2686
  %v2688 = vadd.f32 %v2687, 1.0
  %v2689 = vrcp.pop %v2688
  %v2690 = vmul.f32 %v2688, %v2689
  %v2691 = vsub.f32 1.0, %v2690
  %v2692 = vmul.f32 %v2689, %v2691
  %v2693 = vadd.f32 %v2689, %v2692
  %vm2694 = vweird.f32 %v2688
  %vm2695 = vweird.f32 %v2689
  %vm2696 = vmor %vm2694, %vm2695
  %v2697 = vsel %vm2696, %v2689, %v2693
  %v2698 = vand.u32 2147483647, %v2688
  %vm2699 = vcmp.eq.f32.partialorder %v2698, 8.507059e+37
  %v2700 = vand.u32 %v2688, 2147483648
  %v2701 = vor.u32 1.1754944e-38, %v2700
  %v2702 = vsel %vm2699, %v2701, %v2697
  %v2703 = vmul.f32 %v2678, %v2702
  %v2704 = vmin.f32 %v2703, 1.0
  %v2705 = vmax.f32 %v2704, -1.0
  %v2706 = vmul.f32 %v614, %v614
  %v2707 = vmin.f32 16.0, %v2706
  %v2708 = vmul.f32 %v2707, 2.1237322e-06
  %v2709 = vadd.f32 %v2708, 0.00028619796
  %v2710 = vmul.f32 %v2707, %v2709
  %v2711 = vadd.f32 %v2710, 0.0036580483
  %v2712 = vmul.f32 %v2707, %v2711
  %v2713 = vadd.f32 %v2712, 0.05243302
  %v2714 = vmul.f32 %v2707, %v2713
  %v2715 = vadd.f32 %v2714, 0.18741608
  %v2716 = vmul.f32 %v2707, %v2715
  %v2717 = vadd.f32 %v2716, 1.1283791
  %v2718 = vmul.f32 %v614, %v2717
  %v2719 = vmul.f32 %v2707, 3.8918573e-05
  %v2720 = vadd.f32 %v2719, 0.001143296
  %v2721 = vmul.f32 %v2707, %v2720
  %v2722 = vadd.f32 %v2721, 0.014752088
  %v2723 = vmul.f32 %v2707, %v2722
  %v2724 = vadd.f32 %v2723, 0.112945676
  %v2725 = vmul.f32 %v2707, %v2724
  %v2726 = vadd.f32 %v2725, 0.4994258
  %v2727 = vmul.f32 %v2707, %v2726
  %v2728 = vadd.f32 %v2727, 1.0
  %v2729 = vrcp.pop %v2728
  %v2730 = vmul.f32 %v2728, %v2729
  %v2731 = vsub.f32 1.0, %v2730
  %v2732 = vmul.f32 %v2729, %v2731
  %v2733 = vadd.f32 %v2729, %v2732
  %vm2734 = vweird.f32 %v2728
  %vm2735 = vweird.f32 %v2729
  %vm2736 = vmor %vm2734, %vm2735
  %v2737 = vsel %vm2736, %v2729, %v2733
  %v2738 = vand.u32 2147483647, %v2728
  %vm2739 = vcmp.eq.f32.partialorder %v2738, 8.507059e+37
  %v2740 = vand.u32 %v2728, 2147483648
  %v2741 = vor.u32 1.1754944e-38, %v2740
  %v2742 = vsel %vm2739, %v2741, %v2737
  %v2743 = vmul.f32 %v2718, %v2742
  %v2744 = vmin.f32 %v2743, 1.0
  %v2745 = vmax.f32 %v2744, -1.0
  %v2746 = vmul.f32 %v615, %v615
  %v2747 = vmin.f32 16.0, %v2746
  %v2748 = vmul.f32 %v2747, 2.1237322e-06
  %v2749 = vadd.f32 %v2748, 0.00028619796
  %v2750 = vmul.f32 %v2747, %v2749
  %v2751 = vadd.f32 %v2750, 0.0036580483
  %v2752 = vmul.f32 %v2747, %v2751
  %v2753 = vadd.f32 %v2752, 0.05243302
  %v2754 = vmul.f32 %v2747, %v2753
  %v2755 = vadd.f32 %v2754, 0.18741608
  %v2756 = vmul.f32 %v2747, %v2755
  %v2757 = vadd.f32 %v2756, 1.1283791
  %v2758 = vmul.f32 %v615, %v2757
  %v2759 = vmul.f32 %v2747, 3.8918573e-05
  %v2760 = vadd.f32 %v2759, 0.001143296
  %v2761 = vmul.f32 %v2747, %v2760
  %v2762 = vadd.f32 %v2761, 0.014752088
  %v2763 = vmul.f32 %v2747, %v2762
  %v2764 = vadd.f32 %v2763, 0.112945676
  %v2765 = vmul.f32 %v2747, %v2764
  %v2766 = vadd.f32 %v2765, 0.4994258
  %v2767 = vmul.f32 %v2747, %v2766
  %v2768 = vadd.f32 %v2767, 1.0
  %v2769 = vrcp.pop %v2768
  %v2770 = vmul.f32 %v2768, %v2769
  %v2771 = vsub.f32 1.0, %v2770
  %v2772 = vmul.f32 %v2769, %v2771
  %v2773 = vadd.f32 %v2769, %v2772
  %vm2774 = vweird.f32 %v2768
  %vm2775 = vweird.f32 %v2769
  %vm2776 = vmor %vm2774, %vm2775
  %v2777 = vsel %vm2776, %v2769, %v2773
  %v2778 = vand.u32 2147483647, %v2768
  %vm2779 = vcmp.eq.f32.partialorder %v2778, 8.507059e+37
  %v2780 = vand.u32 %v2768, 2147483648
  %v2781 = vor.u32 1.1754944e-38, %v2780
  %v2782 = vsel %vm2779, %v2781, %v2777
  %v2783 = vmul.f32 %v2758, %v2782
  %v2784 = vmin.f32 %v2783, 1.0
  %v2785 = vmax.f32 %v2784, -1.0
  %v2786 = vmul.f32 %v616, %v616
  %v2787 = vmin.f32 16.0, %v2786
  %v2788 = vmul.f32 %v2787, 2.1237322e-06
  %v2789 = vadd.f32 %v2788, 0.00028619796
  %v2790 = vmul.f32 %v2787, %v2789
  %v2791 = vadd.f32 %v2790, 0.0036580483
  %v2792 = vmul.f32 %v2787, %v2791
  %v2793 = vadd.f32 %v2792, 0.05243302
  %v2794 = vmul.f32 %v2787, %v2793
  %v2795 = vadd.f32 %v2794, 0.18741608
  %v2796 = vmul.f32 %v2787, %v2795
  %v2797 = vadd.f32 %v2796, 1.1283791
  %v2798 = vmul.f32 %v616, %v2797
  %v2799 = vmul.f32 %v2787, 3.8918573e-05
  %v2800 = vadd.f32 %v2799, 0.001143296
  %v2801 = vmul.f32 %v2787, %v2800
  %v2802 = vadd.f32 %v2801, 0.014752088
  %v2803 = vmul.f32 %v2787, %v2802
  %v2804 = vadd.f32 %v2803, 0.112945676
  %v2805 = vmul.f32 %v2787, %v2804
  %v2806 = vadd.f32 %v2805, 0.4994258
  %v2807 = vmul.f32 %v2787, %v2806
  %v2808 = vadd.f32 %v2807, 1.0
  %v2809 = vrcp.pop %v2808
  %v2810 = vmul.f32 %v2808, %v2809
  %v2811 = vsub.f32 1.0, %v2810
  %v2812 = vmul.f32 %v2809, %v2811
  %v2813 = vadd.f32 %v2809, %v2812
  %vm2814 = vweird.f32 %v2808
  %vm2815 = vweird.f32 %v2809
  %vm2816 = vmor %vm2814, %vm2815
  %v2817 = vsel %vm2816, %v2809, %v2813
  %v2818 = vand.u32 2147483647, %v2808
  %vm2819 = vcmp.eq.f32.partialorder %v2818, 8.507059e+37
  %v2820 = vand.u32 %v2808, 2147483648
  %v2821 = vor.u32 1.1754944e-38, %v2820
  %v2822 = vsel %vm2819, %v2821, %v2817
  %v2823 = vmul.f32 %v2798, %v2822
  %v2824 = vmin.f32 %v2823, 1.0
  %v2825 = vmax.f32 %v2824, -1.0
  %v2826 = vmul.f32 %v617, %v617
  %v2827 = vmin.f32 16.0, %v2826
  %v2828 = vmul.f32 %v2827, 2.1237322e-06
  %v2829 = vadd.f32 %v2828, 0.00028619796
  %v2830 = vmul.f32 %v2827, %v2829
  %v2831 = vadd.f32 %v2830, 0.0036580483
  %v2832 = vmul.f32 %v2827, %v2831
  %v2833 = vadd.f32 %v2832, 0.05243302
  %v2834 = vmul.f32 %v2827, %v2833
  %v2835 = vadd.f32 %v2834, 0.18741608
  %v2836 = vmul.f32 %v2827, %v2835
  %v2837 = vadd.f32 %v2836, 1.1283791
  %v2838 = vmul.f32 %v617, %v2837
  %v2839 = vmul.f32 %v2827, 3.8918573e-05
  %v2840 = vadd.f32 %v2839, 0.001143296
  %v2841 = vmul.f32 %v2827, %v2840
  %v2842 = vadd.f32 %v2841, 0.014752088
  %v2843 = vmul.f32 %v2827, %v2842
  %v2844 = vadd.f32 %v2843, 0.112945676
  %v2845 = vmul.f32 %v2827, %v2844
  %v2846 = vadd.f32 %v2845, 0.4994258
  %v2847 = vmul.f32 %v2827, %v2846
  %v2848 = vadd.f32 %v2847, 1.0
  %v2849 = vrcp.pop %v2848
  %v2850 = vmul.f32 %v2848, %v2849
  %v2851 = vsub.f32 1.0, %v2850
  %v2852 = vmul.f32 %v2849, %v2851
  %v2853 = vadd.f32 %v2849, %v2852
  %vm2854 = vweird.f32 %v2848
  %vm2855 = vweird.f32 %v2849
  %vm2856 = vmor %vm2854, %vm2855
  %v2857 = vsel %vm2856, %v2849, %v2853
  %v2858 = vand.u32 2147483647, %v2848
  %vm2859 = vcmp.eq.f32.partialorder %v2858, 8.507059e+37
  %v2860 = vand.u32 %v2848, 2147483648
  %v2861 = vor.u32 1.1754944e-38, %v2860
  %v2862 = vsel %vm2859, %v2861, %v2857
  %v2863 = vmul.f32 %v2838, %v2862
  %v2864 = vmin.f32 %v2863, 1.0
  %v2865 = vmax.f32 %v2864, -1.0
  %v2866 = vmul.f32 %v618, %v618
  %v2867 = vmin.f32 16.0, %v2866
  %v2868 = vmul.f32 %v2867, 2.1237322e-06
  %v2869 = vadd.f32 %v2868, 0.00028619796
  %v2870 = vmul.f32 %v2867, %v2869
  %v2871 = vadd.f32 %v2870, 0.0036580483
  %v2872 = vmul.f32 %v2867, %v2871
  %v2873 = vadd.f32 %v2872, 0.05243302
  %v2874 = vmul.f32 %v2867, %v2873
  %v2875 = vadd.f32 %v2874, 0.18741608
  %v2876 = vmul.f32 %v2867, %v2875
  %v2877 = vadd.f32 %v2876, 1.1283791
  %v2878 = vmul.f32 %v618, %v2877
  %v2879 = vmul.f32 %v2867, 3.8918573e-05
  %v2880 = vadd.f32 %v2879, 0.001143296
  %v2881 = vmul.f32 %v2867, %v2880
  %v2882 = vadd.f32 %v2881, 0.014752088
  %v2883 = vmul.f32 %v2867, %v2882
  %v2884 = vadd.f32 %v2883, 0.112945676
  %v2885 = vmul.f32 %v2867, %v2884
  %v2886 = vadd.f32 %v2885, 0.4994258
  %v2887 = vmul.f32 %v2867, %v2886
  %v2888 = vadd.f32 %v2887, 1.0
  %v2889 = vrcp.pop %v2888
  %v2890 = vmul.f32 %v2888, %v2889
  %v2891 = vsub.f32 1.0, %v2890
  %v2892 = vmul.f32 %v2889, %v2891
  %v2893 = vadd.f32 %v2889, %v2892
  %vm2894 = vweird.f32 %v2888
  %vm2895 = vweird.f32 %v2889
  %vm2896 = vmor %vm2894, %vm2895
  %v2897 = vsel %vm2896, %v2889, %v2893
  %v2898 = vand.u32 2147483647, %v2888
  %vm2899 = vcmp.eq.f32.partialorder %v2898, 8.507059e+37
  %v2900 = vand.u32 %v2888, 2147483648
  %v2901 = vor.u32 1.1754944e-38, %v2900
  %v2902 = vsel %vm2899, %v2901, %v2897
  %v2903 = vmul.f32 %v2878, %v2902
  %v2904 = vmin.f32 %v2903, 1.0
  %v2905 = vmax.f32 %v2904, -1.0
  %v2906 = vmul.f32 %v619, %v619
  %v2907 = vmin.f32 16.0, %v2906
  %v2908 = vmul.f32 %v2907, 2.1237322e-06
  %v2909 = vadd.f32 %v2908, 0.00028619796
  %v2910 = vmul.f32 %v2907, %v2909
  %v2911 = vadd.f32 %v2910, 0.0036580483
  %v2912 = vmul.f32 %v2907, %v2911
  %v2913 = vadd.f32 %v2912, 0.05243302
  %v2914 = vmul.f32 %v2907, %v2913
  %v2915 = vadd.f32 %v2914, 0.18741608
  %v2916 = vmul.f32 %v2907, %v2915
  %v2917 = vadd.f32 %v2916, 1.1283791
  %v2918 = vmul.f32 %v619, %v2917
  %v2919 = vmul.f32 %v2907, 3.8918573e-05
  %v2920 = vadd.f32 %v2919, 0.001143296
  %v2921 = vmul.f32 %v2907, %v2920
  %v2922 = vadd.f32 %v2921, 0.014752088
  %v2923 = vmul.f32 %v2907, %v2922
  %v2924 = vadd.f32 %v2923, 0.112945676
  %v2925 = vmul.f32 %v2907, %v2924
  %v2926 = vadd.f32 %v2925, 0.4994258
  %v2927 = vmul.f32 %v2907, %v2926
  %v2928 = vadd.f32 %v2927, 1.0
  %v2929 = vrcp.pop %v2928
  %v2930 = vmul.f32 %v2928, %v2929
  %v2931 = vsub.f32 1.0, %v2930
  %v2932 = vmul.f32 %v2929, %v2931
  %v2933 = vadd.f32 %v2929, %v2932
  %vm2934 = vweird.f32 %v2928
  %vm2935 = vweird.f32 %v2929
  %vm2936 = vmor %vm2934, %vm2935
  %v2937 = vsel %vm2936, %v2929, %v2933
  %v2938 = vand.u32 2147483647, %v2928
  %vm2939 = vcmp.eq.f32.partialorder %v2938, 8.507059e+37
  %v2940 = vand.u32 %v2928, 2147483648
  %v2941 = vor.u32 1.1754944e-38, %v2940
  %v2942 = vsel %vm2939, %v2941, %v2937
  %v2943 = vmul.f32 %v2918, %v2942
  %v2944 = vmin.f32 %v2943, 1.0
  %v2945 = vmax.f32 %v2944, -1.0
  %v2946 = vmul.f32 %v620, %v620
  %v2947 = vmin.f32 16.0, %v2946
  %v2948 = vmul.f32 %v2947, 2.1237322e-06
  %v2949 = vadd.f32 %v2948, 0.00028619796
  %v2950 = vmul.f32 %v2947, %v2949
  %v2951 = vadd.f32 %v2950, 0.0036580483
  %v2952 = vmul.f32 %v2947, %v2951
  %v2953 = vadd.f32 %v2952, 0.05243302
  %v2954 = vmul.f32 %v2947, %v2953
  %v2955 = vadd.f32 %v2954, 0.18741608
  %v2956 = vmul.f32 %v2947, %v2955
  %v2957 = vadd.f32 %v2956, 1.1283791
  %v2958 = vmul.f32 %v620, %v2957
  %v2959 = vmul.f32 %v2947, 3.8918573e-05
  %v2960 = vadd.f32 %v2959, 0.001143296
  %v2961 = vmul.f32 %v2947, %v2960
  %v2962 = vadd.f32 %v2961, 0.014752088
  %v2963 = vmul.f32 %v2947, %v2962
  %v2964 = vadd.f32 %v2963, 0.112945676
  %v2965 = vmul.f32 %v2947, %v2964
  %v2966 = vadd.f32 %v2965, 0.4994258
  %v2967 = vmul.f32 %v2947, %v2966
  %v2968 = vadd.f32 %v2967, 1.0
  %v2969 = vrcp.pop %v2968
  %v2970 = vmul.f32 %v2968, %v2969
  %v2971 = vsub.f32 1.0, %v2970
  %v2972 = vmul.f32 %v2969, %v2971
  %v2973 = vadd.f32 %v2969, %v2972
  %vm2974 = vweird.f32 %v2968
  %vm2975 = vweird.f32 %v2969
  %vm2976 = vmor %vm2974, %vm2975
  %v2977 = vsel %vm2976, %v2969, %v2973
  %v2978 = vand.u32 2147483647, %v2968
  %vm2979 = vcmp.eq.f32.partialorder %v2978, 8.507059e+37
  %v2980 = vand.u32 %v2968, 2147483648
  %v2981 = vor.u32 1.1754944e-38, %v2980
  %v2982 = vsel %vm2979, %v2981, %v2977
  %v2983 = vmul.f32 %v2958, %v2982
  %v2984 = vmin.f32 %v2983, 1.0
  %v2985 = vmax.f32 %v2984, -1.0
  %v2986 = vmul.f32 %v621, %v621
  %v2987 = vmin.f32 16.0, %v2986
  %v2988 = vmul.f32 %v2987, 2.1237322e-06
  %v2989 = vadd.f32 %v2988, 0.00028619796
  %v2990 = vmul.f32 %v2987, %v2989
  %v2991 = vadd.f32 %v2990, 0.0036580483
  %v2992 = vmul.f32 %v2987, %v2991
  %v2993 = vadd.f32 %v2992, 0.05243302
  %v2994 = vmul.f32 %v2987, %v2993
  %v2995 = vadd.f32 %v2994, 0.18741608
  %v2996 = vmul.f32 %v2987, %v2995
  %v2997 = vadd.f32 %v2996, 1.1283791
  %v2998 = vmul.f32 %v621, %v2997
  %v2999 = vmul.f32 %v2987, 3.8918573e-05
  %v3000 = vadd.f32 %v2999, 0.001143296
  %v3001 = vmul.f32 %v2987, %v3000
  %v3002 = vadd.f32 %v3001, 0.014752088
  %v3003 = vmul.f32 %v2987, %v3002
  %v3004 = vadd.f32 %v3003, 0.112945676
  %v3005 = vmul.f32 %v2987, %v3004
  %v3006 = vadd.f32 %v3005, 0.4994258
  %v3007 = vmul.f32 %v2987, %v3006
  %v3008 = vadd.f32 %v3007, 1.0
  %v3009 = vrcp.pop %v3008
  %v3010 = vmul.f32 %v3008, %v3009
  %v3011 = vsub.f32 1.0, %v3010
  %v3012 = vmul.f32 %v3009, %v3011
  %v3013 = vadd.f32 %v3009, %v3012
  %vm3014 = vweird.f32 %v3008
  %vm3015 = vweird.f32 %v3009
  %vm3016 = vmor %vm3014, %vm3015
  %v3017 = vsel %vm3016, %v3009, %v3013
  %v3018 = vand.u32 2147483647, %v3008
  %vm3019 = vcmp.eq.f32.partialorder %v3018, 8.507059e+37
  %v3020 = vand.u32 %v3008, 2147483648
  %v3021 = vor.u32 1.1754944e-38, %v3020
  %v3022 = vsel %vm3019, %v3021, %v3017
  %v3023 = vmul.f32 %v2998, %v3022
  %v3024 = vmin.f32 %v3023, 1.0
  %v3025 = vmax.f32 %v3024, -1.0
  %v3026 = vmul.f32 %v622, %v622
  %v3027 = vmin.f32 16.0, %v3026
  %v3028 = vmul.f32 %v3027, 2.1237322e-06
  %v3029 = vadd.f32 %v3028, 0.00028619796
  %v3030 = vmul.f32 %v3027, %v3029
  %v3031 = vadd.f32 %v3030, 0.0036580483
  %v3032 = vmul.f32 %v3027, %v3031
  %v3033 = vadd.f32 %v3032, 0.05243302
  %v3034 = vmul.f32 %v3027, %v3033
  %v3035 = vadd.f32 %v3034, 0.18741608
  %v3036 = vmul.f32 %v3027, %v3035
  %v3037 = vadd.f32 %v3036, 1.1283791
  %v3038 = vmul.f32 %v622, %v3037
  %v3039 = vmul.f32 %v3027, 3.8918573e-05
  %v3040 = vadd.f32 %v3039, 0.001143296
  %v3041 = vmul.f32 %v3027, %v3040
  %v3042 = vadd.f32 %v3041, 0.014752088
  %v3043 = vmul.f32 %v3027, %v3042
  %v3044 = vadd.f32 %v3043, 0.112945676
  %v3045 = vmul.f32 %v3027, %v3044
  %v3046 = vadd.f32 %v3045, 0.4994258
  %v3047 = vmul.f32 %v3027, %v3046
  %v3048 = vadd.f32 %v3047, 1.0
  %v3049 = vrcp.pop %v3048
  %v3050 = vmul.f32 %v3048, %v3049
  %v3051 = vsub.f32 1.0, %v3050
  %v3052 = vmul.f32 %v3049, %v3051
  %v3053 = vadd.f32 %v3049, %v3052
  %vm3054 = vweird.f32 %v3048
  %vm3055 = vweird.f32 %v3049
  %vm3056 = vmor %vm3054, %vm3055
  %v3057 = vsel %vm3056, %v3049, %v3053
  %v3058 = vand.u32 2147483647, %v3048
  %vm3059 = vcmp.eq.f32.partialorder %v3058, 8.507059e+37
  %v3060 = vand.u32 %v3048, 2147483648
  %v3061 = vor.u32 1.1754944e-38, %v3060
  %v3062 = vsel %vm3059, %v3061, %v3057
  %v3063 = vmul.f32 %v3038, %v3062
  %v3064 = vmin.f32 %v3063, 1.0
  %v3065 = vmax.f32 %v3064, -1.0
  %v3066 = vmul.f32 %v623, %v623
  %v3067 = vmin.f32 16.0, %v3066
  %v3068 = vmul.f32 %v3067, 2.1237322e-06
  %v3069 = vadd.f32 %v3068, 0.00028619796
  %v3070 = vmul.f32 %v3067, %v3069
  %v3071 = vadd.f32 %v3070, 0.0036580483
  %v3072 = vmul.f32 %v3067, %v3071
  %v3073 = vadd.f32 %v3072, 0.05243302
  %v3074 = vmul.f32 %v3067, %v3073
  %v3075 = vadd.f32 %v3074, 0.18741608
  %v3076 = vmul.f32 %v3067, %v3075
  %v3077 = vadd.f32 %v3076, 1.1283791
  %v3078 = vmul.f32 %v623, %v3077
  %v3079 = vmul.f32 %v3067, 3.8918573e-05
  %v3080 = vadd.f32 %v3079, 0.001143296
  %v3081 = vmul.f32 %v3067, %v3080
  %v3082 = vadd.f32 %v3081, 0.014752088
  %v3083 = vmul.f32 %v3067, %v3082
  %v3084 = vadd.f32 %v3083, 0.112945676
  %v3085 = vmul.f32 %v3067, %v3084
  %v3086 = vadd.f32 %v3085, 0.4994258
  %v3087 = vmul.f32 %v3067, %v3086
  %v3088 = vadd.f32 %v3087, 1.0
  %v3089 = vrcp.pop %v3088
  %v3090 = vmul.f32 %v3088, %v3089
  %v3091 = vsub.f32 1.0, %v3090
  %v3092 = vmul.f32 %v3089, %v3091
  %v3093 = vadd.f32 %v3089, %v3092
  %vm3094 = vweird.f32 %v3088
  %vm3095 = vweird.f32 %v3089
  %vm3096 = vmor %vm3094, %vm3095
  %v3097 = vsel %vm3096, %v3089, %v3093
  %v3098 = vand.u32 2147483647, %v3088
  %vm3099 = vcmp.eq.f32.partialorder %v3098, 8.507059e+37
  %v3100 = vand.u32 %v3088, 2147483648
  %v3101 = vor.u32 1.1754944e-38, %v3100
  %v3102 = vsel %vm3099, %v3101, %v3097
  %v3103 = vmul.f32 %v3078, %v3102
  %v3104 = vmin.f32 %v3103, 1.0
  %v3105 = vmax.f32 %v3104, -1.0
  %v3106 = vmul.f32 %v624, %v624
  %v3107 = vmin.f32 16.0, %v3106
  %v3108 = vmul.f32 %v3107, 2.1237322e-06
  %v3109 = vadd.f32 %v3108, 0.00028619796
  %v3110 = vmul.f32 %v3107, %v3109
  %v3111 = vadd.f32 %v3110, 0.0036580483
  %v3112 = vmul.f32 %v3107, %v3111
  %v3113 = vadd.f32 %v3112, 0.05243302
  %v3114 = vmul.f32 %v3107, %v3113
  %v3115 = vadd.f32 %v3114, 0.18741608
  %v3116 = vmul.f32 %v3107, %v3115
  %v3117 = vadd.f32 %v3116, 1.1283791
  %v3118 = vmul.f32 %v624, %v3117
  %v3119 = vmul.f32 %v3107, 3.8918573e-05
  %v3120 = vadd.f32 %v3119, 0.001143296
  %v3121 = vmul.f32 %v3107, %v3120
  %v3122 = vadd.f32 %v3121, 0.014752088
  %v3123 = vmul.f32 %v3107, %v3122
  %v3124 = vadd.f32 %v3123, 0.112945676
  %v3125 = vmul.f32 %v3107, %v3124
  %v3126 = vadd.f32 %v3125, 0.4994258
  %v3127 = vmul.f32 %v3107, %v3126
  %v3128 = vadd.f32 %v3127, 1.0
  %v3129 = vrcp.pop %v3128
  %v3130 = vmul.f32 %v3128, %v3129
  %v3131 = vsub.f32 1.0, %v3130
  %v3132 = vmul.f32 %v3129, %v3131
  %v3133 = vadd.f32 %v3129, %v3132
  %vm3134 = vweird.f32 %v3128
  %vm3135 = vweird.f32 %v3129
  %vm3136 = vmor %vm3134, %vm3135
  %v3137 = vsel %vm3136, %v3129, %v3133
  %v3138 = vand.u32 2147483647, %v3128
  %vm3139 = vcmp.eq.f32.partialorder %v3138, 8.507059e+37
  %v3140 = vand.u32 %v3128, 2147483648
  %v3141 = vor.u32 1.1754944e-38, %v3140
  %v3142 = vsel %vm3139, %v3141, %v3137
  %v3143 = vmul.f32 %v3118, %v3142
  %v3144 = vmin.f32 %v3143, 1.0
  %v3145 = vmax.f32 %v3144, -1.0
  %v3146 = vmul.f32 %v625, %v625
  %v3147 = vmin.f32 16.0, %v3146
  %v3148 = vmul.f32 %v3147, 2.1237322e-06
  %v3149 = vadd.f32 %v3148, 0.00028619796
  %v3150 = vmul.f32 %v3147, %v3149
  %v3151 = vadd.f32 %v3150, 0.0036580483
  %v3152 = vmul.f32 %v3147, %v3151
  %v3153 = vadd.f32 %v3152, 0.05243302
  %v3154 = vmul.f32 %v3147, %v3153
  %v3155 = vadd.f32 %v3154, 0.18741608
  %v3156 = vmul.f32 %v3147, %v3155
  %v3157 = vadd.f32 %v3156, 1.1283791
  %v3158 = vmul.f32 %v625, %v3157
  %v3159 = vmul.f32 %v3147, 3.8918573e-05
  %v3160 = vadd.f32 %v3159, 0.001143296
  %v3161 = vmul.f32 %v3147, %v3160
  %v3162 = vadd.f32 %v3161, 0.014752088
  %v3163 = vmul.f32 %v3147, %v3162
  %v3164 = vadd.f32 %v3163, 0.112945676
  %v3165 = vmul.f32 %v3147, %v3164
  %v3166 = vadd.f32 %v3165, 0.4994258
  %v3167 = vmul.f32 %v3147, %v3166
  %v3168 = vadd.f32 %v3167, 1.0
  %v3169 = vrcp.pop %v3168
  %v3170 = vmul.f32 %v3168, %v3169
  %v3171 = vsub.f32 1.0, %v3170
  %v3172 = vmul.f32 %v3169, %v3171
  %v3173 = vadd.f32 %v3169, %v3172
  %vm3174 = vweird.f32 %v3168
  %vm3175 = vweird.f32 %v3169
  %vm3176 = vmor %vm3174, %vm3175
  %v3177 = vsel %vm3176, %v3169, %v3173
  %v3178 = vand.u32 2147483647, %v3168
  %vm3179 = vcmp.eq.f32.partialorder %v3178, 8.507059e+37
  %v3180 = vand.u32 %v3168, 2147483648
  %v3181 = vor.u32 1.1754944e-38, %v3180
  %v3182 = vsel %vm3179, %v3181, %v3177
  %v3183 = vmul.f32 %v3158, %v3182
  %v3184 = vmin.f32 %v3183, 1.0
  %v3185 = vmax.f32 %v3184, -1.0
  %v3186 = vadd.f32 %v665, 1.0
  %v3187 = vadd.f32 %v705, 1.0
  %v3188 = vadd.f32 %v745, 1.0
  %v3189 = vadd.f32 %v785, 1.0
  %v3190 = vadd.f32 %v825, 1.0
  %v3191 = vadd.f32 %v865, 1.0
  %v3192 = vadd.f32 %v905, 1.0
  %v3193 = vadd.f32 %v945, 1.0
  %v3194 = vadd.f32 %v985, 1.0
  %v3195 = vadd.f32 %v1025, 1.0
  %v3196 = vadd.f32 %v1065, 1.0
  %v3197 = vadd.f32 %v1105, 1.0
  %v3198 = vadd.f32 %v1145, 1.0
  %v3199 = vadd.f32 %v1185, 1.0
  %v3200 = vadd.f32 %v1225, 1.0
  %v3201 = vadd.f32 %v1265, 1.0
  %v3202 = vadd.f32 %v1305, 1.0
  %v3203 = vadd.f32 %v1345, 1.0
  %v3204 = vadd.f32 %v1385, 1.0
  %v3205 = vadd.f32 %v1425, 1.0
  %v3206 = vadd.f32 %v1465, 1.0
  %v3207 = vadd.f32 %v1505, 1.0
  %v3208 = vadd.f32 %v1545, 1.0
  %v3209 = vadd.f32 %v1585, 1.0
  %v3210 = vadd.f32 %v1625, 1.0
  %v3211 = vadd.f32 %v1665, 1.0
  %v3212 = vadd.f32 %v1705, 1.0
  %v3213 = vadd.f32 %v1745, 1.0
  %v3214 = vadd.f32 %v1785, 1.0
  %v3215 = vadd.f32 %v1825, 1.0
  %v3216 = vadd.f32 %v1865, 1.0
  %v3217 = vadd.f32 %v1905, 1.0
  %v3218 = vadd.f32 %v1945, 1.0
  %v3219 = vadd.f32 %v1985, 1.0
  %v3220 = vadd.f32 %v2025, 1.0
  %v3221 = vadd.f32 %v2065, 1.0
  %v3222 = vadd.f32 %v2105, 1.0
  %v3223 = vadd.f32 %v2145, 1.0
  %v3224 = vadd.f32 %v2185, 1.0
  %v3225 = vadd.f32 %v2225, 1.0
  %v3226 = vadd.f32 %v2265, 1.0
  %v3227 = vadd.f32 %v2305, 1.0
  %v3228 = vadd.f32 %v2345, 1.0
  %v3229 = vadd.f32 %v2385, 1.0
  %v3230 = vadd.f32 %v2425, 1.0
  %v3231 = vadd.f32 %v2465, 1.0
  %v3232 = vadd.f32 %v2505, 1.0
  %v3233 = vadd.f32 %v2545, 1.0
  %v3234 = vadd.f32 %v2585, 1.0
  %v3235 = vadd.f32 %v2625, 1.0
  %v3236 = vadd.f32 %v2665, 1.0
  %v3237 = vadd.f32 %v2705, 1.0
  %v3238 = vadd.f32 %v2745, 1.0
  %v3239 = vadd.f32 %v2785, 1.0
  %v3240 = vadd.f32 %v2825, 1.0
  %v3241 = vadd.f32 %v2865, 1.0
  %v3242 = vadd.f32 %v2905, 1.0
  %v3243 = vadd.f32 %v2945, 1.0
  %v3244 = vadd.f32 %v2985, 1.0
  %v3245 = vadd.f32 %v3025, 1.0
  %v3246 = vadd.f32 %v3065, 1.0
  %v3247 = vadd.f32 %v3105, 1.0
  %v3248 = vadd.f32 %v3145, 1.0
  %v3249 = vadd.f32 %v3185, 1.0
  %v3250 = vmul.f32 %v498, %v3186
  %v3251 = vmul.f32 %v499, %v3187
  %v3252 = vmul.f32 %v500, %v3188
  %v3253 = vmul.f32 %v501, %v3189
  %v3254 = vmul.f32 %v502, %v3190
  %v3255 = vmul.f32 %v503, %v3191
  %v3256 = vmul.f32 %v504, %v3192
  %v3257 = vmul.f32 %v505, %v3193
  %v3258 = vmul.f32 %v506, %v3194
  %v3259 = vmul.f32 %v507, %v3195
  %v3260 = vmul.f32 %v508, %v3196
  %v3261 = vmul.f32 %v509, %v3197
  %v3262 = vmul.f32 %v510, %v3198
  %v3263 = vmul.f32 %v511, %v3199
  %v3264 = vmul.f32 %v512, %v3200
  %v3265 = vmul.f32 %v513, %v3201
  %v3266 = vmul.f32 %v514, %v3202
  %v3267 = vmul.f32 %v515, %v3203
  %v3268 = vmul.f32 %v516, %v3204
  %v3269 = vmul.f32 %v517, %v3205
  %v3270 = vmul.f32 %v518, %v3206
  %v3271 = vmul.f32 %v519, %v3207
  %v3272 = vmul.f32 %v520, %v3208
  %v3273 = vmul.f32 %v521, %v3209
  %v3274 = vmul.f32 %v522, %v3210
  %v3275 = vmul.f32 %v523, %v3211
  %v3276 = vmul.f32 %v524, %v3212
  %v3277 = vmul.f32 %v525, %v3213
  %v3278 = vmul.f32 %v526, %v3214
  %v3279 = vmul.f32 %v527, %v3215
  %v3280 = vmul.f32 %v528, %v3216
  %v3281 = vmul.f32 %v529, %v3217
  %v3282 = vmul.f32 %v530, %v3218
  %v3283 = vmul.f32 %v531, %v3219
  %v3284 = vmul.f32 %v532, %v3220
  %v3285 = vmul.f32 %v533, %v3221
  %v3286 = vmul.f32 %v534, %v3222
  %v3287 = vmul.f32 %v535, %v3223
  %v3288 = vmul.f32 %v536, %v3224
  %v3289 = vmul.f32 %v537, %v3225
  %v3290 = vmul.f32 %v538, %v3226
  %v3291 = vmul.f32 %v539, %v3227
  %v3292 = vmul.f32 %v540, %v3228
  %v3293 = vmul.f32 %v541, %v3229
  %v3294 = vmul.f32 %v542, %v3230
  %v3295 = vmul.f32 %v543, %v3231
  %v3296 = vmul.f32 %v544, %v3232
  %v3297 = vmul.f32 %v545, %v3233
  %v3298 = vmul.f32 %v546, %v3234
  %v3299 = vmul.f32 %v547, %v3235
  %v3300 = vmul.f32 %v548, %v3236
  %v3301 = vmul.f32 %v549, %v3237
  %v3302 = vmul.f32 %v550, %v3238
  %v3303 = vmul.f32 %v551, %v3239
  %v3304 = vmul.f32 %v552, %v3240
  %v3305 = vmul.f32 %v553, %v3241
  %v3306 = vmul.f32 %v554, %v3242
  %v3307 = vmul.f32 %v555, %v3243
  %v3308 = vmul.f32 %v556, %v3244
  %v3309 = vmul.f32 %v557, %v3245
  %v3310 = vmul.f32 %v558, %v3246
  %v3311 = vmul.f32 %v559, %v3247
  %v3312 = vmul.f32 %v560, %v3248
  %v3313 = vmul.f32 %v561, %v3249
  %v3314 = vld [vmem:[%s4] sm:$0xff]
  %v3315 = vld [vmem:[%s4 + $0x8] sm:$0xff]
  %v3316 = vld [vmem:[%s4 + $0x10] sm:$0xff]
  %v3317 = vld [vmem:[%s4 + $0x18] sm:$0xff]
  %v3318 = vld [vmem:[%s4 + $0x20] sm:$0xff]
  %v3319 = vld [vmem:[%s4 + $0x28] sm:$0xff]
  %v3320 = vld [vmem:[%s4 + $0x30] sm:$0xff]
  %v3321 = vld [vmem:[%s4 + $0x38] sm:$0xff]
  %v3322 = vld [vmem:[%s4 + $0x40] sm:$0xff]
  %v3323 = vld [vmem:[%s4 + $0x48] sm:$0xff]
  %v3324 = vld [vmem:[%s4 + $0x50] sm:$0xff]
  %v3325 = vld [vmem:[%s4 + $0x58] sm:$0xff]
  %v3326 = vld [vmem:[%s4 + $0x60] sm:$0xff]
  %v3327 = vld [vmem:[%s4 + $0x68] sm:$0xff]
  %v3328 = vld [vmem:[%s4 + $0x70] sm:$0xff]
  %v3329 = vld [vmem:[%s4 + $0x78] sm:$0xff]
  %v3330 = vld [vmem:[%s5] sm:$0x1]
  %v3332 = vperm.slane %v3330, 0
  %3334 = vmatpush.msra.mxu0 %v3329
  %3335 = vmatpush.msra.mxu0 %v3328
  %3336 = vmatpush.msra.mxu0 %v3327
  %3337 = vmatpush.msra.mxu0 %v3326
  %3338 = vmatpush.msra.mxu0 %v3325
  %3339 = vmatpush.msra.mxu0 %v3324
  %3340 = vmatpush.msra.mxu0 %v3323
  %3341 = vmatpush.msra.mxu0 %v3322
  %3342 = vmatpush.msra.mxu0 %v3321
  %3343 = vmatpush.msra.mxu0 %v3320
  %3344 = vmatpush.msra.mxu0 %v3319
  %3345 = vmatpush.msra.mxu0 %v3318
  %3346 = vmatpush.msra.mxu0 %v3317
  %3347 = vmatpush.msra.mxu0 %v3316
  %3348 = vmatpush.msra.mxu0 %v3315
  %3349 = vmatpush.msra.mxu0 %v3314
  %3350 = vmatmul.f32.gmra.mxu0 %v3250
  %v3351 = vpop.f32.mrf.mxu0
  %v3352 = vadd.f32 %v3332, %v3351
  %3353 = vmatmul.f32.gmra.mxu0 %v3251
  %v3354 = vpop.f32.mrf.mxu0
  %v3355 = vadd.f32 %v3332, %v3354
  %3356 = vmatmul.f32.gmra.mxu0 %v3252
  %v3357 = vpop.f32.mrf.mxu0
  %v3358 = vadd.f32 %v3332, %v3357
  %3359 = vmatmul.f32.gmra.mxu0 %v3253
  %v3360 = vpop.f32.mrf.mxu0
  %v3361 = vadd.f32 %v3332, %v3360
  %3362 = vmatmul.f32.gmra.mxu0 %v3254
  %v3363 = vpop.f32.mrf.mxu0
  %v3364 = vadd.f32 %v3332, %v3363
  %3365 = vmatmul.f32.gmra.mxu0 %v3255
  %v3366 = vpop.f32.mrf.mxu0
  %v3367 = vadd.f32 %v3332, %v3366
  %3368 = vmatmul.f32.gmra.mxu0 %v3256
  %v3369 = vpop.f32.mrf.mxu0
  %v3370 = vadd.f32 %v3332, %v3369
  %3371 = vmatmul.f32.gmra.mxu0 %v3257
  %v3372 = vpop.f32.mrf.mxu0
  %v3373 = vadd.f32 %v3332, %v3372
  %3374 = vmatmul.f32.gmra.mxu0 %v3258
  %v3375 = vpop.f32.mrf.mxu0
  %v3376 = vadd.f32 %v3332, %v3375
  %3377 = vmatmul.f32.gmra.mxu0 %v3259
  %v3378 = vpop.f32.mrf.mxu0
  %v3379 = vadd.f32 %v3332, %v3378
  %3380 = vmatmul.f32.gmra.mxu0 %v3260
  %v3381 = vpop.f32.mrf.mxu0
  %v3382 = vadd.f32 %v3332, %v3381
  %3383 = vmatmul.f32.gmra.mxu0 %v3261
  %v3384 = vpop.f32.mrf.mxu0
  %v3385 = vadd.f32 %v3332, %v3384
  %3386 = vmatmul.f32.gmra.mxu0 %v3262
  %v3387 = vpop.f32.mrf.mxu0
  %v3388 = vadd.f32 %v3332, %v3387
  %3389 = vmatmul.f32.gmra.mxu0 %v3263
  %v3390 = vpop.f32.mrf.mxu0
  %v3391 = vadd.f32 %v3332, %v3390
  %3392 = vmatmul.f32.gmra.mxu0 %v3264
  %v3393 = vpop.f32.mrf.mxu0
  %v3394 = vadd.f32 %v3332, %v3393
  %3395 = vmatmul.f32.gmra.mxu0 %v3265
  %v3396 = vpop.f32.mrf.mxu0
  %v3397 = vadd.f32 %v3332, %v3396
  %3398 = vmatmul.f32.gmra.mxu0 %v3266
  %v3399 = vpop.f32.mrf.mxu0
  %v3400 = vadd.f32 %v3332, %v3399
  %3401 = vmatmul.f32.gmra.mxu0 %v3267
  %v3402 = vpop.f32.mrf.mxu0
  %v3403 = vadd.f32 %v3332, %v3402
  %3404 = vmatmul.f32.gmra.mxu0 %v3268
  %v3405 = vpop.f32.mrf.mxu0
  %v3406 = vadd.f32 %v3332, %v3405
  %3407 = vmatmul.f32.gmra.mxu0 %v3269
  %v3408 = vpop.f32.mrf.mxu0
  %v3409 = vadd.f32 %v3332, %v3408
  %3410 = vmatmul.f32.gmra.mxu0 %v3270
  %v3411 = vpop.f32.mrf.mxu0
  %v3412 = vadd.f32 %v3332, %v3411
  %3413 = vmatmul.f32.gmra.mxu0 %v3271
  %v3414 = vpop.f32.mrf.mxu0
  %v3415 = vadd.f32 %v3332, %v3414
  %3416 = vmatmul.f32.gmra.mxu0 %v3272
  %v3417 = vpop.f32.mrf.mxu0
  %v3418 = vadd.f32 %v3332, %v3417
  %3419 = vmatmul.f32.gmra.mxu0 %v3273
  %v3420 = vpop.f32.mrf.mxu0
  %v3421 = vadd.f32 %v3332, %v3420
  %3422 = vmatmul.f32.gmra.mxu0 %v3274
  %v3423 = vpop.f32.mrf.mxu0
  %v3424 = vadd.f32 %v3332, %v3423
  %3425 = vmatmul.f32.gmra.mxu0 %v3275
  %v3426 = vpop.f32.mrf.mxu0
  %v3427 = vadd.f32 %v3332, %v3426
  %3428 = vmatmul.f32.gmra.mxu0 %v3276
  %v3429 = vpop.f32.mrf.mxu0
  %v3430 = vadd.f32 %v3332, %v3429
  %3431 = vmatmul.f32.gmra.mxu0 %v3277
  %v3432 = vpop.f32.mrf.mxu0
  %v3433 = vadd.f32 %v3332, %v3432
  %3434 = vmatmul.f32.gmra.mxu0 %v3278
  %v3435 = vpop.f32.mrf.mxu0
  %v3436 = vadd.f32 %v3332, %v3435
  %3437 = vmatmul.f32.gmra.mxu0 %v3279
  %v3438 = vpop.f32.mrf.mxu0
  %v3439 = vadd.f32 %v3332, %v3438
  %3440 = vmatmul.f32.gmra.mxu0 %v3280
  %v3441 = vpop.f32.mrf.mxu0
  %v3442 = vadd.f32 %v3332, %v3441
  %3443 = vmatmul.f32.gmra.mxu0 %v3281
  %v3444 = vpop.f32.mrf.mxu0
  %v3445 = vadd.f32 %v3332, %v3444
  %3446 = vmatmul.f32.gmra.mxu0 %v3282
  %v3447 = vpop.f32.mrf.mxu0
  %v3448 = vadd.f32 %v3332, %v3447
  %3449 = vmatmul.f32.gmra.mxu0 %v3283
  %v3450 = vpop.f32.mrf.mxu0
  %v3451 = vadd.f32 %v3332, %v3450
  %3452 = vmatmul.f32.gmra.mxu0 %v3284
  %v3453 = vpop.f32.mrf.mxu0
  %v3454 = vadd.f32 %v3332, %v3453
  %3455 = vmatmul.f32.gmra.mxu0 %v3285
  %v3456 = vpop.f32.mrf.mxu0
  %v3457 = vadd.f32 %v3332, %v3456
  %3458 = vmatmul.f32.gmra.mxu0 %v3286
  %v3459 = vpop.f32.mrf.mxu0
  %v3460 = vadd.f32 %v3332, %v3459
  %3461 = vmatmul.f32.gmra.mxu0 %v3287
  %v3462 = vpop.f32.mrf.mxu0
  %v3463 = vadd.f32 %v3332, %v3462
  %3464 = vmatmul.f32.gmra.mxu0 %v3288
  %v3465 = vpop.f32.mrf.mxu0
  %v3466 = vadd.f32 %v3332, %v3465
  %3467 = vmatmul.f32.gmra.mxu0 %v3289
  %v3468 = vpop.f32.mrf.mxu0
  %v3469 = vadd.f32 %v3332, %v3468
  %3470 = vmatmul.f32.gmra.mxu0 %v3290
  %v3471 = vpop.f32.mrf.mxu0
  %v3472 = vadd.f32 %v3332, %v3471
  %3473 = vmatmul.f32.gmra.mxu0 %v3291
  %v3474 = vpop.f32.mrf.mxu0
  %v3475 = vadd.f32 %v3332, %v3474
  %3476 = vmatmul.f32.gmra.mxu0 %v3292
  %v3477 = vpop.f32.mrf.mxu0
  %v3478 = vadd.f32 %v3332, %v3477
  %3479 = vmatmul.f32.gmra.mxu0 %v3293
  %v3480 = vpop.f32.mrf.mxu0
  %v3481 = vadd.f32 %v3332, %v3480
  %3482 = vmatmul.f32.gmra.mxu0 %v3294
  %v3483 = vpop.f32.mrf.mxu0
  %v3484 = vadd.f32 %v3332, %v3483
  %3485 = vmatmul.f32.gmra.mxu0 %v3295
  %v3486 = vpop.f32.mrf.mxu0
  %v3487 = vadd.f32 %v3332, %v3486
  %3488 = vmatmul.f32.gmra.mxu0 %v3296
  %v3489 = vpop.f32.mrf.mxu0
  %v3490 = vadd.f32 %v3332, %v3489
  %3491 = vmatmul.f32.gmra.mxu0 %v3297
  %v3492 = vpop.f32.mrf.mxu0
  %v3493 = vadd.f32 %v3332, %v3492
  %3494 = vmatmul.f32.gmra.mxu0 %v3298
  %v3495 = vpop.f32.mrf.mxu0
  %v3496 = vadd.f32 %v3332, %v3495
  %3497 = vmatmul.f32.gmra.mxu0 %v3299
  %v3498 = vpop.f32.mrf.mxu0
  %v3499 = vadd.f32 %v3332, %v3498
  %3500 = vmatmul.f32.gmra.mxu0 %v3300
  %v3501 = vpop.f32.mrf.mxu0
  %v3502 = vadd.f32 %v3332, %v3501
  %3503 = vmatmul.f32.gmra.mxu0 %v3301
  %v3504 = vpop.f32.mrf.mxu0
  %v3505 = vadd.f32 %v3332, %v3504
  %3506 = vmatmul.f32.gmra.mxu0 %v3302
  %v3507 = vpop.f32.mrf.mxu0
  %v3508 = vadd.f32 %v3332, %v3507
  %3509 = vmatmul.f32.gmra.mxu0 %v3303
  %v3510 = vpop.f32.mrf.mxu0
  %v3511 = vadd.f32 %v3332, %v3510
  %3512 = vmatmul.f32.gmra.mxu0 %v3304
  %v3513 = vpop.f32.mrf.mxu0
  %v3514 = vadd.f32 %v3332, %v3513
  %3515 = vmatmul.f32.gmra.mxu0 %v3305
  %v3516 = vpop.f32.mrf.mxu0
  %v3517 = vadd.f32 %v3332, %v3516
  %3518 = vmatmul.f32.gmra.mxu0 %v3306
  %v3519 = vpop.f32.mrf.mxu0
  %v3520 = vadd.f32 %v3332, %v3519
  %3521 = vmatmul.f32.gmra.mxu0 %v3307
  %v3522 = vpop.f32.mrf.mxu0
  %v3523 = vadd.f32 %v3332, %v3522
  %3524 = vmatmul.f32.gmra.mxu0 %v3308
  %v3525 = vpop.f32.mrf.mxu0
  %v3526 = vadd.f32 %v3332, %v3525
  %3527 = vmatmul.f32.gmra.mxu0 %v3309
  %v3528 = vpop.f32.mrf.mxu0
  %v3529 = vadd.f32 %v3332, %v3528
  %3530 = vmatmul.f32.gmra.mxu0 %v3310
  %v3531 = vpop.f32.mrf.mxu0
  %v3532 = vadd.f32 %v3332, %v3531
  %3533 = vmatmul.f32.gmra.mxu0 %v3311
  %v3534 = vpop.f32.mrf.mxu0
  %v3535 = vadd.f32 %v3332, %v3534
  %3536 = vmatmul.f32.gmra.mxu0 %v3312
  %v3537 = vpop.f32.mrf.mxu0
  %v3538 = vadd.f32 %v3332, %v3537
  %3539 = vmatmul.f32.gmra.mxu0 %v3313
  %v3540 = vpop.f32.mrf.mxu0
  %v3541 = vadd.f32 %v3332, %v3540
  %3542 = vdwg.mxu0
  %v3543 = vld [vmem:[%s1] sm:$0xff]
  %v3544 = vld [vmem:[%s1 + $0x8] sm:$0xff]
  %v3545 = vld [vmem:[%s1 + $0x10] sm:$0xff]
  %v3546 = vld [vmem:[%s1 + $0x18] sm:$0xff]
  %v3547 = vld [vmem:[%s1 + $0x20] sm:$0xff]
  %v3548 = vld [vmem:[%s1 + $0x28] sm:$0xff]
  %v3549 = vld [vmem:[%s1 + $0x30] sm:$0xff]
  %v3550 = vld [vmem:[%s1 + $0x38] sm:$0xff]
  %v3551 = vld [vmem:[%s1 + $0x40] sm:$0xff]
  %v3552 = vld [vmem:[%s1 + $0x48] sm:$0xff]
  %v3553 = vld [vmem:[%s1 + $0x50] sm:$0xff]
  %v3554 = vld [vmem:[%s1 + $0x58] sm:$0xff]
  %v3555 = vld [vmem:[%s1 + $0x60] sm:$0xff]
  %v3556 = vld [vmem:[%s1 + $0x68] sm:$0xff]
  %v3557 = vld [vmem:[%s1 + $0x70] sm:$0xff]
  %v3558 = vld [vmem:[%s1 + $0x78] sm:$0xff]
  %v3559 = vld [vmem:[%s1 + $0x80] sm:$0xff]
  %v3560 = vld [vmem:[%s1 + $0x88] sm:$0xff]
  %v3561 = vld [vmem:[%s1 + $0x90] sm:$0xff]
  %v3562 = vld [vmem:[%s1 + $0x98] sm:$0xff]
  %v3563 = vld [vmem:[%s1 + $0xa0] sm:$0xff]
  %v3564 = vld [vmem:[%s1 + $0xa8] sm:$0xff]
  %v3565 = vld [vmem:[%s1 + $0xb0] sm:$0xff]
  %v3566 = vld [vmem:[%s1 + $0xb8] sm:$0xff]
  %v3567 = vld [vmem:[%s1 + $0xc0] sm:$0xff]
  %v3568 = vld [vmem:[%s1 + $0xc8] sm:$0xff]
  %v3569 = vld [vmem:[%s1 + $0xd0] sm:$0xff]
  %v3570 = vld [vmem:[%s1 + $0xd8] sm:$0xff]
  %v3571 = vld [vmem:[%s1 + $0xe0] sm:$0xff]
  %v3572 = vld [vmem:[%s1 + $0xe8] sm:$0xff]
  %v3573 = vld [vmem:[%s1 + $0xf0] sm:$0xff]
  %v3574 = vld [vmem:[%s1 + $0xf8] sm:$0xff]
  %v3575 = vld [vmem:[%s1 + $0x100] sm:$0xff]
  %v3576 = vld [vmem:[%s1 + $0x108] sm:$0xff]
  %v3577 = vld [vmem:[%s1 + $0x110] sm:$0xff]
  %v3578 = vld [vmem:[%s1 + $0x118] sm:$0xff]
  %v3579 = vld [vmem:[%s1 + $0x120] sm:$0xff]
  %v3580 = vld [vmem:[%s1 + $0x128] sm:$0xff]
  %v3581 = vld [vmem:[%s1 + $0x130] sm:$0xff]
  %v3582 = vld [vmem:[%s1 + $0x138] sm:$0xff]
  %v3583 = vld [vmem:[%s1 + $0x140] sm:$0xff]
  %v3584 = vld [vmem:[%s1 + $0x148] sm:$0xff]
  %v3585 = vld [vmem:[%s1 + $0x150] sm:$0xff]
  %v3586 = vld [vmem:[%s1 + $0x158] sm:$0xff]
  %v3587 = vld [vmem:[%s1 + $0x160] sm:$0xff]
  %v3588 = vld [vmem:[%s1 + $0x168] sm:$0xff]
  %v3589 = vld [vmem:[%s1 + $0x170] sm:$0xff]
  %v3590 = vld [vmem:[%s1 + $0x178] sm:$0xff]
  %v3591 = vld [vmem:[%s1 + $0x180] sm:$0xff]
  %v3592 = vld [vmem:[%s1 + $0x188] sm:$0xff]
  %v3593 = vld [vmem:[%s1 + $0x190] sm:$0xff]
  %v3594 = vld [vmem:[%s1 + $0x198] sm:$0xff]
  %v3595 = vld [vmem:[%s1 + $0x1a0] sm:$0xff]
  %v3596 = vld [vmem:[%s1 + $0x1a8] sm:$0xff]
  %v3597 = vld [vmem:[%s1 + $0x1b0] sm:$0xff]
  %v3598 = vld [vmem:[%s1 + $0x1b8] sm:$0xff]
  %v3599 = vld [vmem:[%s1 + $0x1c0] sm:$0xff]
  %v3600 = vld [vmem:[%s1 + $0x1c8] sm:$0xff]
  %v3601 = vld [vmem:[%s1 + $0x1d0] sm:$0xff]
  %v3602 = vld [vmem:[%s1 + $0x1d8] sm:$0xff]
  %v3603 = vld [vmem:[%s1 + $0x1e0] sm:$0xff]
  %v3604 = vld [vmem:[%s1 + $0x1e8] sm:$0xff]
  %v3605 = vld [vmem:[%s1 + $0x1f0] sm:$0xff]
  %v3606 = vld [vmem:[%s1 + $0x1f8] sm:$0xff]
  %v3607 = vsel %vm92, %v3543, 0.0
  %v3608 = vsel %vm92, %v3544, 0.0
  %v3609 = vsel %vm92, %v3545, 0.0
  %v3610 = vsel %vm92, %v3546, 0.0
  %v3611 = vsel %vm92, %v3547, 0.0
  %v3612 = vsel %vm92, %v3548, 0.0
  %v3613 = vsel %vm92, %v3549, 0.0
  %v3614 = vsel %vm92, %v3550, 0.0
  %v3615 = vsel %vm92, %v3551, 0.0
  %v3616 = vsel %vm92, %v3552, 0.0
  %v3617 = vsel %vm92, %v3553, 0.0
  %v3618 = vsel %vm92, %v3554, 0.0
  %v3619 = vsel %vm92, %v3555, 0.0
  %v3620 = vsel %vm92, %v3556, 0.0
  %v3621 = vsel %vm92, %v3557, 0.0
  %v3622 = vsel %vm92, %v3558, 0.0
  %v3623 = vsel %vm92, %v3559, 0.0
  %v3624 = vsel %vm92, %v3560, 0.0
  %v3625 = vsel %vm92, %v3561, 0.0
  %v3626 = vsel %vm92, %v3562, 0.0
  %v3627 = vsel %vm92, %v3563, 0.0
  %v3628 = vsel %vm92, %v3564, 0.0
  %v3629 = vsel %vm92, %v3565, 0.0
  %v3630 = vsel %vm92, %v3566, 0.0
  %v3631 = vsel %vm92, %v3567, 0.0
  %v3632 = vsel %vm92, %v3568, 0.0
  %v3633 = vsel %vm92, %v3569, 0.0
  %v3634 = vsel %vm92, %v3570, 0.0
  %v3635 = vsel %vm92, %v3571, 0.0
  %v3636 = vsel %vm92, %v3572, 0.0
  %v3637 = vsel %vm92, %v3573, 0.0
  %v3638 = vsel %vm92, %v3574, 0.0
  %v3639 = vsel %vm92, %v3575, 0.0
  %v3640 = vsel %vm92, %v3576, 0.0
  %v3641 = vsel %vm92, %v3577, 0.0
  %v3642 = vsel %vm92, %v3578, 0.0
  %v3643 = vsel %vm92, %v3579, 0.0
  %v3644 = vsel %vm92, %v3580, 0.0
  %v3645 = vsel %vm92, %v3581, 0.0
  %v3646 = vsel %vm92, %v3582, 0.0
  %v3647 = vsel %vm92, %v3583, 0.0
  %v3648 = vsel %vm92, %v3584, 0.0
  %v3649 = vsel %vm92, %v3585, 0.0
  %v3650 = vsel %vm92, %v3586, 0.0
  %v3651 = vsel %vm92, %v3587, 0.0
  %v3652 = vsel %vm92, %v3588, 0.0
  %v3653 = vsel %vm92, %v3589, 0.0
  %v3654 = vsel %vm92, %v3590, 0.0
  %v3655 = vsel %vm92, %v3591, 0.0
  %v3656 = vsel %vm92, %v3592, 0.0
  %v3657 = vsel %vm92, %v3593, 0.0
  %v3658 = vsel %vm92, %v3594, 0.0
  %v3659 = vsel %vm92, %v3595, 0.0
  %v3660 = vsel %vm92, %v3596, 0.0
  %v3661 = vsel %vm92, %v3597, 0.0
  %v3662 = vsel %vm92, %v3598, 0.0
  %v3663 = vsel %vm92, %v3599, 0.0
  %v3664 = vsel %vm92, %v3600, 0.0
  %v3665 = vsel %vm92, %v3601, 0.0
  %v3666 = vsel %vm92, %v3602, 0.0
  %v3667 = vsel %vm92, %v3603, 0.0
  %v3668 = vsel %vm92, %v3604, 0.0
  %v3669 = vsel %vm92, %v3605, 0.0
  %v3670 = vsel %vm92, %v3606, 0.0
  %v3671 = vadd.f32 %v3607, %v3352
  %v3672 = vadd.f32 %v3608, %v3355
  %v3673 = vadd.f32 %v3609, %v3358
  %v3674 = vadd.f32 %v3610, %v3361
  %v3675 = vadd.f32 %v3611, %v3364
  %v3676 = vadd.f32 %v3612, %v3367
  %v3677 = vadd.f32 %v3613, %v3370
  %v3678 = vadd.f32 %v3614, %v3373
  %v3679 = vadd.f32 %v3615, %v3376
  %v3680 = vadd.f32 %v3616, %v3379
  %v3681 = vadd.f32 %v3617, %v3382
  %v3682 = vadd.f32 %v3618, %v3385
  %v3683 = vadd.f32 %v3619, %v3388
  %v3684 = vadd.f32 %v3620, %v3391
  %v3685 = vadd.f32 %v3621, %v3394
  %v3686 = vadd.f32 %v3622, %v3397
  %v3687 = vadd.f32 %v3623, %v3400
  %v3688 = vadd.f32 %v3624, %v3403
  %v3689 = vadd.f32 %v3625, %v3406
  %v3690 = vadd.f32 %v3626, %v3409
  %v3691 = vadd.f32 %v3627, %v3412
  %v3692 = vadd.f32 %v3628, %v3415
  %v3693 = vadd.f32 %v3629, %v3418
  %v3694 = vadd.f32 %v3630, %v3421
  %v3695 = vadd.f32 %v3631, %v3424
  %v3696 = vadd.f32 %v3632, %v3427
  %v3697 = vadd.f32 %v3633, %v3430
  %v3698 = vadd.f32 %v3634, %v3433
  %v3699 = vadd.f32 %v3635, %v3436
  %v3700 = vadd.f32 %v3636, %v3439
  %v3701 = vadd.f32 %v3637, %v3442
  %v3702 = vadd.f32 %v3638, %v3445
  %v3703 = vadd.f32 %v3639, %v3448
  %v3704 = vadd.f32 %v3640, %v3451
  %v3705 = vadd.f32 %v3641, %v3454
  %v3706 = vadd.f32 %v3642, %v3457
  %v3707 = vadd.f32 %v3643, %v3460
  %v3708 = vadd.f32 %v3644, %v3463
  %v3709 = vadd.f32 %v3645, %v3466
  %v3710 = vadd.f32 %v3646, %v3469
  %v3711 = vadd.f32 %v3647, %v3472
  %v3712 = vadd.f32 %v3648, %v3475
  %v3713 = vadd.f32 %v3649, %v3478
  %v3714 = vadd.f32 %v3650, %v3481
  %v3715 = vadd.f32 %v3651, %v3484
  %v3716 = vadd.f32 %v3652, %v3487
  %v3717 = vadd.f32 %v3653, %v3490
  %v3718 = vadd.f32 %v3654, %v3493
  %v3719 = vadd.f32 %v3655, %v3496
  %v3720 = vadd.f32 %v3656, %v3499
  %v3721 = vadd.f32 %v3657, %v3502
  %v3722 = vadd.f32 %v3658, %v3505
  %v3723 = vadd.f32 %v3659, %v3508
  %v3724 = vadd.f32 %v3660, %v3511
  %v3725 = vadd.f32 %v3661, %v3514
  %v3726 = vadd.f32 %v3662, %v3517
  %v3727 = vadd.f32 %v3663, %v3520
  %v3728 = vadd.f32 %v3664, %v3523
  %v3729 = vadd.f32 %v3665, %v3526
  %v3730 = vadd.f32 %v3666, %v3529
  %v3731 = vadd.f32 %v3667, %v3532
  %v3732 = vadd.f32 %v3668, %v3535
  %v3733 = vadd.f32 %v3669, %v3538
  %v3734 = vadd.f32 %v3670, %v3541
  %3735 = vst [vmem:[%s6] sm:$0xff] %v3671
  %3736 = vst [vmem:[%s6 + $0x8] sm:$0xff] %v3672
  %3737 = vst [vmem:[%s6 + $0x10] sm:$0xff] %v3673
  %3738 = vst [vmem:[%s6 + $0x18] sm:$0xff] %v3674
  %3739 = vst [vmem:[%s6 + $0x20] sm:$0xff] %v3675
  %3740 = vst [vmem:[%s6 + $0x28] sm:$0xff] %v3676
  %3741 = vst [vmem:[%s6 + $0x30] sm:$0xff] %v3677
  %3742 = vst [vmem:[%s6 + $0x38] sm:$0xff] %v3678
  %3743 = vst [vmem:[%s6 + $0x40] sm:$0xff] %v3679
  %3744 = vst [vmem:[%s6 + $0x48] sm:$0xff] %v3680
  %3745 = vst [vmem:[%s6 + $0x50] sm:$0xff] %v3681
  %3746 = vst [vmem:[%s6 + $0x58] sm:$0xff] %v3682
  %3747 = vst [vmem:[%s6 + $0x60] sm:$0xff] %v3683
  %3748 = vst [vmem:[%s6 + $0x68] sm:$0xff] %v3684
  %3749 = vst [vmem:[%s6 + $0x70] sm:$0xff] %v3685
  %3750 = vst [vmem:[%s6 + $0x78] sm:$0xff] %v3686
  %3751 = vst [vmem:[%s6 + $0x80] sm:$0xff] %v3687
  %3752 = vst [vmem:[%s6 + $0x88] sm:$0xff] %v3688
  %3753 = vst [vmem:[%s6 + $0x90] sm:$0xff] %v3689
  %3754 = vst [vmem:[%s6 + $0x98] sm:$0xff] %v3690
  %3755 = vst [vmem:[%s6 + $0xa0] sm:$0xff] %v3691
  %3756 = vst [vmem:[%s6 + $0xa8] sm:$0xff] %v3692
  %3757 = vst [vmem:[%s6 + $0xb0] sm:$0xff] %v3693
  %3758 = vst [vmem:[%s6 + $0xb8] sm:$0xff] %v3694
  %3759 = vst [vmem:[%s6 + $0xc0] sm:$0xff] %v3695
  %3760 = vst [vmem:[%s6 + $0xc8] sm:$0xff] %v3696
  %3761 = vst [vmem:[%s6 + $0xd0] sm:$0xff] %v3697
  %3762 = vst [vmem:[%s6 + $0xd8] sm:$0xff] %v3698
  %3763 = vst [vmem:[%s6 + $0xe0] sm:$0xff] %v3699
  %3764 = vst [vmem:[%s6 + $0xe8] sm:$0xff] %v3700
  %3765 = vst [vmem:[%s6 + $0xf0] sm:$0xff] %v3701
  %3766 = vst [vmem:[%s6 + $0xf8] sm:$0xff] %v3702
  %3767 = vst [vmem:[%s6 + $0x100] sm:$0xff] %v3703
  %3768 = vst [vmem:[%s6 + $0x108] sm:$0xff] %v3704
  %3769 = vst [vmem:[%s6 + $0x110] sm:$0xff] %v3705
  %3770 = vst [vmem:[%s6 + $0x118] sm:$0xff] %v3706
  %3771 = vst [vmem:[%s6 + $0x120] sm:$0xff] %v3707
  %3772 = vst [vmem:[%s6 + $0x128] sm:$0xff] %v3708
  %3773 = vst [vmem:[%s6 + $0x130] sm:$0xff] %v3709
  %3774 = vst [vmem:[%s6 + $0x138] sm:$0xff] %v3710
  %3775 = vst [vmem:[%s6 + $0x140] sm:$0xff] %v3711
  %3776 = vst [vmem:[%s6 + $0x148] sm:$0xff] %v3712
  %3777 = vst [vmem:[%s6 + $0x150] sm:$0xff] %v3713
  %3778 = vst [vmem:[%s6 + $0x158] sm:$0xff] %v3714
  %3779 = vst [vmem:[%s6 + $0x160] sm:$0xff] %v3715
  %3780 = vst [vmem:[%s6 + $0x168] sm:$0xff] %v3716
  %3781 = vst [vmem:[%s6 + $0x170] sm:$0xff] %v3717
  %3782 = vst [vmem:[%s6 + $0x178] sm:$0xff] %v3718
  %3783 = vst [vmem:[%s6 + $0x180] sm:$0xff] %v3719
  %3784 = vst [vmem:[%s6 + $0x188] sm:$0xff] %v3720
  %3785 = vst [vmem:[%s6 + $0x190] sm:$0xff] %v3721
  %3786 = vst [vmem:[%s6 + $0x198] sm:$0xff] %v3722
  %3787 = vst [vmem:[%s6 + $0x1a0] sm:$0xff] %v3723
  %3788 = vst [vmem:[%s6 + $0x1a8] sm:$0xff] %v3724
  %3789 = vst [vmem:[%s6 + $0x1b0] sm:$0xff] %v3725
  %3790 = vst [vmem:[%s6 + $0x1b8] sm:$0xff] %v3726
  %3791 = vst [vmem:[%s6 + $0x1c0] sm:$0xff] %v3727
  %3792 = vst [vmem:[%s6 + $0x1c8] sm:$0xff] %v3728
  %3793 = vst [vmem:[%s6 + $0x1d0] sm:$0xff] %v3729
  %3794 = vst [vmem:[%s6 + $0x1d8] sm:$0xff] %v3730
  %3795 = vst [vmem:[%s6 + $0x1e0] sm:$0xff] %v3731
  %3796 = vst [vmem:[%s6 + $0x1e8] sm:$0xff] %v3732
  %3797 = vst [vmem:[%s6 + $0x1f0] sm:$0xff] %v3733
  %3798 = vst [vmem:[%s6 + $0x1f8] sm:$0xff] %v3734
  // Predicated region
  $region26: #{conv_encoder.3} parent=0 // pred_check
    _
  $region27: #{conv_encoder.3} parent=0 // pred_check_branch
    %3800 = sbr.rel (0) target = $region29
  $region28: #{conv_encoder.3} parent=0 // pred_region
    _
  $region29: #{conv_encoder.3} parent=0 // pred_fallthru
    _
  // Predicated region
  $region30: #{conv_encoder.3} parent=0 // pred_check
    _
  $region31: #{conv_encoder.3} parent=0 // pred_check_branch
    %3802 = sbr.rel (0) target = $region33
  $region32: #{conv_encoder.3} parent=0 // pred_region
    _
  $region33: #{conv_encoder.3} parent=0 // pred_fallthru
    _

</llo_original>
